<compile_context>
chip_gen: v5e
topology: v5e:2x2
jax: 0.10.0
libtpu: 0.0.40
codegen_flags: <defaults>
</compile_context>

<pallas_src>
import functools

import jax
import jax.numpy as jnp
import numpy as np
from jax import lax
from jax.experimental import pallas as pl
from jax.experimental.pallas import tpu as pltpu

NEG_SLOPE = 0.01   # nn.LeakyReLU() default negative_slope
RES_SCALE = 0.2

# Tap order t = (oy+1)*3 + (ox+1) == ky*3 + kx, matching the weight packing.
_TAPS = tuple((oy, ox) for oy in (-1, 0, 1) for ox in (-1, 0, 1))


# ----------------------------- Pallas kernel -------------------------------

def _rrdb_kernel(*refs, H, W, filters, gs, n_blocks, n_layers):
    """Fused ResInResDenseBlock forward for a single batch element.

    refs layout:
      x_ref              : (1, F, H*W)            f32   input feature map
      w_refs[i], i<5     : (n_blocks, F, (i+1)*gs) bf16  packed conv weights,
                           col = g*gs + t*F + c  <->  w[ky,kx, g*F+c, o]
      b_ref              : (n_blocks*n_layers, F, 1) f32 biases
      o_ref              : (1, F, H*W)            f32   output feature map
      slab_ref (scratch) : (n_layers*gs, H*W)     f32   incremental im2col slab
    """
    F = filters
    HW = H * W
    x_ref = refs[0]
    w_refs = refs[1:1 + n_layers]
    b_ref = refs[1 + n_layers]
    o_ref = refs[2 + n_layers]
    slab_ref = refs[3 + n_layers]

    # Horizontal validity masks over flattened output positions (once per call).
    # Vertical out-of-image taps are fully covered by the truncated flat-shift
    # ranges below (margins stay zero), so no vertical mask is needed.
    w_idx = lax.broadcasted_iota(jnp.int32, (1, HW), 1) % W
    mask_l = w_idx >= 1          # source column w-1 in-bounds (ox == -1)
    mask_r = w_idx <= W - 2      # source column w+1 in-bounds (ox == +1)

    # Zero the slab once: halo margins and channel-pad rows must hold finite
    # zeros (they are re-used untouched across layers / dense blocks).
    slab_ref[...] = jnp.zeros(slab_ref.shape, slab_ref.dtype)

    def append_group(g, vals_f32):
        """Write `vals` (F, HW) as dense group g of the slab: one spatially
        shifted + boundary-masked copy per conv tap (each channel is shifted
        exactly once, not once per consuming layer)."""
        base = g * gs
        for t, (oy, ox) in enumerate(_TAPS):
            d = oy * W + ox                      # flat source offset of this tap
            src0, dst0 = max(0, d), max(0, -d)
            L = HW - abs(d)
            v = vals_f32[:, src0:src0 + L]
            if ox == -1:
                v = jnp.where(mask_l[:, dst0:dst0 + L], v, 0.0)
            elif ox == 1:
                v = jnp.where(mask_r[:, dst0:dst0 + L], v, 0.0)
            r0 = base + t * F
            slab_ref[r0:r0 + F, dst0:dst0 + L] = v.astype(slab_ref.dtype)
            # Columns outside [dst0, dst0+L) stay zero (out-of-image rows).

    x0 = x_ref[0]                                # (F, HW) f32, RRDB input
    y = x0
    for b in range(n_blocks):
        block_in = y
        append_group(0, block_in)                # dense state starts as block input
        out = None
        for i in range(n_layers):
            lidx = b * n_layers + i
            ncols = (i + 1) * gs                 # only contract populated groups
            # Single lane-dense MXU matmul: (F, ncols) x (ncols, HW) -> (F, HW).
            acc = jnp.dot(w_refs[i][b],
                          slab_ref[:ncols, :].astype(jnp.bfloat16),
                          preferred_element_type=jnp.float32)
            acc = acc + b_ref[lidx]              # bias (F, 1) broadcast, f32
            if i < n_layers - 1:
                acc = jnp.where(acc >= 0, acc, NEG_SLOPE * acc)   # LeakyReLU
                append_group(i + 1, acc)                          # dense concat
            out = acc
        y = out * RES_SCALE + block_in           # DenseResBlock residual
    y = y * RES_SCALE + x0                       # RRDB residual
    o_ref[0] = y.astype(o_ref.dtype)             # full-width lane-dense store


# ------------------------- Module forward (glue) ---------------------------

def _pack_weight(w, gs, filters):
    """(3, 3, cin, cout) HWIO -> (cout, ngroups*gs), col = g*gs + t*F + c."""
    kh, kw, cin, cout = w.shape
    ng = cin // filters
    wt = jnp.transpose(w, (3, 2, 0, 1)).reshape(cout, ng, filters, kh * kw)
    wt = jnp.transpose(wt, (0, 1, 3, 2)).reshape(cout, ng, kh * kw * filters)
    wt = jnp.pad(wt, ((0, 0), (0, 0), (0, gs - kh * kw * filters)))
    return wt.reshape(cout, ng * gs)


def res_in_res_dense_block(x_nchw, params):
    """ResInResDenseBlock.forward (NCHW in / NCHW out, like PyTorch)."""
    N, C, H, W = x_nchw.shape
    F = C
    n_blocks = len(params)
    n_layers = len(params[0])
    HW = H * W
    gs = ((9 * F + 7) // 8) * 8                  # sublane-aligned group stride

    # Per-layer weight stacks across the 3 dense blocks (no zero cols in HBM).
    w_lists = []
    for i in range(n_layers):
        ws = [_pack_weight(params[b][i][0], gs, F) for b in range(n_blocks)]
        w_lists.append(jnp.stack(ws).astype(jnp.bfloat16))   # (n_blocks, F, (i+1)*gs)
    b_all = jnp.stack([b for blk in params for (_, b) in blk]
                      ).reshape(n_blocks * n_layers, F, 1).astype(jnp.float32)

    x_flat = x_nchw.reshape(N, C, HW)            # free reshape: NCHW -> (N, C, H*W)

    kernel = functools.partial(
        _rrdb_kernel, H=H, W=W, filters=F, gs=gs,
        n_blocks=n_blocks, n_layers=n_layers)

    in_specs = [pl.BlockSpec((1, C, HW), lambda n: (n, 0, 0))]
    for i in range(n_layers):
        in_specs.append(
            pl.BlockSpec((n_blocks, F, (i + 1) * gs), lambda n: (0, 0, 0)))
    in_specs.append(
        pl.BlockSpec((n_blocks * n_layers, F, 1), lambda n: (0, 0, 0)))

    out = pl.pallas_call(
        kernel,
        out_shape=jax.ShapeDtypeStruct((N, C, HW), x_nchw.dtype),
        grid_spec=pltpu.PrefetchScalarGridSpec(
            num_scalar_prefetch=0,
            grid=(N,),
            in_specs=in_specs,
            out_specs=pl.BlockSpec((1, C, HW), lambda n: (n, 0, 0)),
            scratch_shapes=[pltpu.VMEM((n_layers * gs, HW), jnp.float32)],
        ),
        compiler_params=pltpu.CompilerParams(
            dimension_semantics=("parallel",)),
    )(x_flat, *w_lists, b_all)
    return out.reshape(N, C, H, W)


# ---------------------------- Parameter init --------------------------------

def init_params(key, filters):
    """Deterministic init mirroring nn.Conv2d default (uniform +/- 1/sqrt(fan_in))."""
    params = []
    for _ in range(3):                           # 3 DenseResBlocks
        block_params = []
        for i in range(1, 6):                    # 5 conv layers, cin = i*filters
            cin = i * filters
            key, kw, kb = jax.random.split(key, 3)
            fan_in = cin * 3 * 3
            bound = 1.0 / np.sqrt(fan_in)
            w = jax.random.uniform(kw, (3, 3, cin, filters), jnp.float32,
                                   minval=-bound, maxval=bound)
            b = jax.random.uniform(kb, (filters,), jnp.float32,
                                   minval=-bound, maxval=bound)
            block_params.append((w, b))
        params.append(block_params)
    return params


# ------------------------------ Reference -----------------------------------

def _conv3x3_ref(x_nhwc, w, b, apply_lrelu, cast_bf16):
    if cast_bf16:   # mirror the kernel's bf16 matmul operands, f32 accumulation
        x_nhwc = x_nhwc.astype(jnp.bfloat16).astype(jnp.float32)
        w = w.astype(jnp.bfloat16).astype(jnp.float32)
    y = lax.conv_general_dilated(
        x_nhwc, w, window_strides=(1, 1), padding="SAME",
        dimension_numbers=("NHWC", "HWIO", "NHWC"),
        precision=lax.Precision.HIGHEST)
    y = y + b
    if apply_lrelu:
        y = jnp.where(y >= 0, y, NEG_SLOPE * y)
    return y


def _ref_forward(x_nchw, params, cast_bf16):
    x = jnp.transpose(x_nchw, (0, 2, 3, 1))
    y = x
    for block_params in params:
        inp = y
        out = y
        n = len(block_params)
        for i, (w, b) in enumerate(block_params):
            out = _conv3x3_ref(inp, w, b, i < n - 1, cast_bf16)
            inp = jnp.concatenate([inp, out], axis=-1)
        y = out * RES_SCALE + y
    y = y * RES_SCALE + x
    return jnp.transpose(y, (0, 3, 1, 2))


# --------------------------------- Main --------------------------------------

if __name__ == "__main__":
    key = jax.random.PRNGKey(0)
    k_x, k_p = jax.random.split(key)

    filters = 4
    N, C, H, W = 2, filters, 16, 16
    x = jax.random.normal(k_x, (N, C, H, W), jnp.float32)    # NCHW, like PyTorch

    params = init_params(k_p, filters)

    fwd = jax.jit(res_in_res_dense_block)
    out = jax.block_until_ready(fwd(x, params))

    # Tight check vs. a reference that mirrors the kernel's bf16 matmul operands
    # (f32 accumulation) -> validates conv/concat/residual semantics exactly.
    ref_bf16 = jax.block_until_ready(_ref_forward(x, params, cast_bf16=True))
    np.testing.assert_allclose(np.asarray(out), np.asarray(ref_bf16),
                               rtol=1e-3, atol=1e-3)

    # Loose check vs. the pure f32 reference (bf16 matmul operands are a
    # deliberate perf choice; accuracy impact is small for this residual block).
    ref_f32 = jax.block_until_ready(_ref_forward(x, params, cast_bf16=False))
    np.testing.assert_allclose(np.asarray(out), np.asarray(ref_f32),
                               rtol=5e-2, atol=5e-2)

    print("KERNEL_OK")
</pallas_src>

<mosaic_0001>
module attributes {stable_mosaic.version = 11 : i64} {
  func.func @_rrdb_kernel(%arg0: i32, %arg1: memref<1x4x256xf32, #tpu.memory_space<vmem>>, %arg2: memref<3x4x40xbf16, #tpu.memory_space<vmem>>, %arg3: memref<3x4x80xbf16, #tpu.memory_space<vmem>>, %arg4: memref<3x4x120xbf16, #tpu.memory_space<vmem>>, %arg5: memref<3x4x160xbf16, #tpu.memory_space<vmem>>, %arg6: memref<3x4x200xbf16, #tpu.memory_space<vmem>>, %arg7: memref<15x4x1xf32, #tpu.memory_space<vmem>>, %arg8: memref<1x4x256xf32, #tpu.memory_space<vmem>>, %arg9: memref<200x256xf32, #tpu.memory_space<vmem>>) attributes {dimension_semantics = [#tpu.dimension_semantics<parallel>], iteration_bounds = array<i64: 2>, scalar_prefetch = 0 : i64, scratch_operands = 1 : i64, tpu.core_type = #tpu.core_type<tc>, window_params = [{transform_indices = @transform_0, window_bounds = array<i64: 1, 4, 256>}, {pipeline_mode = #tpu.pipeline_mode<synchronous>, transform_indices = @transform_1, window_bounds = array<i64: 3, 4, 40>}, {pipeline_mode = #tpu.pipeline_mode<synchronous>, transform_indices = @transform_2, window_bounds = array<i64: 3, 4, 80>}, {pipeline_mode = #tpu.pipeline_mode<synchronous>, transform_indices = @transform_3, window_bounds = array<i64: 3, 4, 120>}, {pipeline_mode = #tpu.pipeline_mode<synchronous>, transform_indices = @transform_4, window_bounds = array<i64: 3, 4, 160>}, {pipeline_mode = #tpu.pipeline_mode<synchronous>, transform_indices = @transform_5, window_bounds = array<i64: 3, 4, 200>}, {pipeline_mode = #tpu.pipeline_mode<synchronous>, transform_indices = @transform_6, window_bounds = array<i64: 15, 4, 1>}, {transform_indices = @transform_7, window_bounds = array<i64: 1, 4, 256>}]} {
    %0 = tpu.iota {dimensions = array<i32: 1>} : vector<1x256xi32>
    %c16_i32 = arith.constant 16 : i32
    %c0_i32 = arith.constant 0 : i32
    %1 = arith.cmpi eq, %c16_i32, %c0_i32 : i32
    %c1_i32 = arith.constant 1 : i32
    %2 = arith.select %1, %c1_i32, %c16_i32 : i32
    %3 = vector.broadcast %2 : i32 to vector<1x256xi32>
    %4 = arith.remsi %0, %3 : vector<1x256xi32>
    %c0_i32_0 = arith.constant 0 : i32
    %5 = vector.broadcast %c0_i32_0 : i32 to vector<1x256xi32>
    %6 = arith.cmpi ne, %4, %5 : vector<1x256xi32>
    %c0_i32_1 = arith.constant 0 : i32
    %7 = vector.broadcast %c0_i32_1 : i32 to vector<1x256xi32>
    %8 = arith.cmpi slt, %4, %7 : vector<1x256xi32>
    %c0_i32_2 = arith.constant 0 : i32
    %9 = arith.cmpi slt, %2, %c0_i32_2 : i32
    %10 = vector.broadcast %9 : i1 to vector<1x256xi1>
    %11 = vector.broadcast %10 : vector<1x256xi1> to vector<1x256xi1>
    %12 = arith.xori %8, %11 : vector<1x256xi1>
    %13 = arith.andi %12, %6 : vector<1x256xi1>
    %14 = vector.broadcast %2 : i32 to vector<1x256xi32>
    %15 = arith.addi %4, %14 : vector<1x256xi32>
    %16 = arith.select %13, %15, %4 : vector<1x256xi1>, vector<1x256xi32>
    %c1_i32_3 = arith.constant 1 : i32
    %17 = vector.broadcast %c1_i32_3 : i32 to vector<1x256xi32>
    %18 = arith.cmpi sge, %16, %17 : vector<1x256xi32>
    %c14_i32 = arith.constant 14 : i32
    %19 = vector.broadcast %c14_i32 : i32 to vector<1x256xi32>
    %20 = arith.cmpi sle, %16, %19 : vector<1x256xi32>
    %cst = arith.constant 0.000000e+00 : f32
    %21 = vector.broadcast %cst : f32 to vector<200x256xf32>
    %c0 = arith.constant 0 : index
    %c0_4 = arith.constant 0 : index
    %22 = vector.load %arg9[%c0, %c0_4] : memref<200x256xf32, #tpu.memory_space<vmem>>, vector<200x256xf32>
    tpu.vector_store %arg9[%c0, %c0_4], %21 {strides = array<i32>} : memref<200x256xf32, #tpu.memory_space<vmem>>, vector<200x256xf32>,
    %c0_5 = arith.constant 0 : index
    %c0_6 = arith.constant 0 : index
    %c0_7 = arith.constant 0 : index
    %23 = vector.load %arg1[%c0_5, %c0_6, %c0_7] : memref<1x4x256xf32, #tpu.memory_space<vmem>>, vector<1x4x256xf32>
    %24 = vector.shape_cast %23 : vector<1x4x256xf32> to vector<4x256xf32>
    %25 = vector.extract_strided_slice %24 {offsets = [0, 0], sizes = [4, 239], strides = [1, 1]} : vector<4x256xf32> to vector<4x239xf32>
    %26 = vector.extract_strided_slice %18 {offsets = [0, 17], sizes = [1, 239], strides = [1, 1]} : vector<1x256xi1> to vector<1x239xi1>
    %cst_8 = arith.constant 0.000000e+00 : f32
    %27 = vector.shape_cast %26 : vector<1x239xi1> to vector<1x239xi1>
    %28 = vector.broadcast %27 : vector<1x239xi1> to vector<4x239xi1>
    %29 = vector.broadcast %cst_8 : f32 to vector<4x239xf32>
    %30 = arith.select %28, %25, %29 : vector<4x239xi1>, vector<4x239xf32>
    %c0_9 = arith.constant 0 : index
    %c17 = arith.constant 17 : index
    %31 = vector.load %arg9[%c0_9, %c17] : memref<200x256xf32, #tpu.memory_space<vmem>>, vector<4x239xf32>
    tpu.vector_store %arg9[%c0_9, %c17], %30 {strides = array<i32>} : memref<200x256xf32, #tpu.memory_space<vmem>>, vector<4x239xf32>,
    %32 = vector.extract_strided_slice %24 {offsets = [0, 0], sizes = [4, 240], strides = [1, 1]} : vector<4x256xf32> to vector<4x240xf32>
    %c4 = arith.constant 4 : index
    %c16 = arith.constant 16 : index
    %33 = vector.load %arg9[%c4, %c16] : memref<200x256xf32, #tpu.memory_space<vmem>>, vector<4x240xf32>
    tpu.vector_store %arg9[%c4, %c16], %32 {strides = array<i32>} : memref<200x256xf32, #tpu.memory_space<vmem>>, vector<4x240xf32>,
    %34 = vector.extract_strided_slice %24 {offsets = [0, 0], sizes = [4, 241], strides = [1, 1]} : vector<4x256xf32> to vector<4x241xf32>
    %35 = vector.extract_strided_slice %20 {offsets = [0, 15], sizes = [1, 241], strides = [1, 1]} : vector<1x256xi1> to vector<1x241xi1>
    %cst_10 = arith.constant 0.000000e+00 : f32
    %36 = vector.shape_cast %35 : vector<1x241xi1> to vector<1x241xi1>
    %37 = vector.broadcast %36 : vector<1x241xi1> to vector<4x241xi1>
    %38 = vector.broadcast %cst_10 : f32 to vector<4x241xf32>
    %39 = arith.select %37, %34, %38 : vector<4x241xi1>, vector<4x241xf32>
    %c8 = arith.constant 8 : index
    %c15 = arith.constant 15 : index
    %40 = vector.load %arg9[%c8, %c15] : memref<200x256xf32, #tpu.memory_space<vmem>>, vector<4x241xf32>
    tpu.vector_store %arg9[%c8, %c15], %39 {strides = array<i32>} : memref<200x256xf32, #tpu.memory_space<vmem>>, vector<4x241xf32>,
    %41 = vector.extract_strided_slice %24 {offsets = [0, 0], sizes = [4, 255], strides = [1, 1]} : vector<4x256xf32> to vector<4x255xf32>
    %42 = vector.extract_strided_slice %18 {offsets = [0, 1], sizes = [1, 255], strides = [1, 1]} : vector<1x256xi1> to vector<1x255xi1>
    %cst_11 = arith.constant 0.000000e+00 : f32
    %43 = vector.shape_cast %42 : vector<1x255xi1> to vector<1x255xi1>
    %44 = vector.broadcast %43 : vector<1x255xi1> to vector<4x255xi1>
    %45 = vector.broadcast %cst_11 : f32 to vector<4x255xf32>
    %46 = arith.select %44, %41, %45 : vector<4x255xi1>, vector<4x255xf32>
    %c12 = arith.constant 12 : index
    %c1 = arith.constant 1 : index
    %47 = vector.load %arg9[%c12, %c1] : memref<200x256xf32, #tpu.memory_space<vmem>>, vector<4x255xf32>
    tpu.vector_store %arg9[%c12, %c1], %46 {strides = array<i32>} : memref<200x256xf32, #tpu.memory_space<vmem>>, vector<4x255xf32>,
    %c16_12 = arith.constant 16 : index
    %c0_13 = arith.constant 0 : index
    %48 = vector.load %arg9[%c16_12, %c0_13] : memref<200x256xf32, #tpu.memory_space<vmem>>, vector<4x256xf32>
    tpu.vector_store %arg9[%c16_12, %c0_13], %24 {strides = array<i32>} : memref<200x256xf32, #tpu.memory_space<vmem>>, vector<4x256xf32>,
    %49 = vector.extract_strided_slice %24 {offsets = [0, 1], sizes = [4, 255], strides = [1, 1]} : vector<4x256xf32> to vector<4x255xf32>
    %50 = vector.extract_strided_slice %20 {offsets = [0, 0], sizes = [1, 255], strides = [1, 1]} : vector<1x256xi1> to vector<1x255xi1>
    %cst_14 = arith.constant 0.000000e+00 : f32
    %51 = vector.shape_cast %50 : vector<1x255xi1> to vector<1x255xi1>
    %52 = vector.broadcast %51 : vector<1x255xi1> to vector<4x255xi1>
    %53 = vector.broadcast %cst_14 : f32 to vector<4x255xf32>
    %54 = arith.select %52, %49, %53 : vector<4x255xi1>, vector<4x255xf32>
    %c20 = arith.constant 20 : index
    %c0_15 = arith.constant 0 : index
    %55 = vector.load %arg9[%c20, %c0_15] : memref<200x256xf32, #tpu.memory_space<vmem>>, vector<4x255xf32>
    tpu.vector_store %arg9[%c20, %c0_15], %54 {strides = array<i32>} : memref<200x256xf32, #tpu.memory_space<vmem>>, vector<4x255xf32>,
    %56 = vector.extract_strided_slice %24 {offsets = [0, 15], sizes = [4, 241], strides = [1, 1]} : vector<4x256xf32> to vector<4x241xf32>
    %57 = vector.extract_strided_slice %18 {offsets = [0, 0], sizes = [1, 241], strides = [1, 1]} : vector<1x256xi1> to vector<1x241xi1>
    %cst_16 = arith.constant 0.000000e+00 : f32
    %58 = vector.shape_cast %57 : vector<1x241xi1> to vector<1x241xi1>
    %59 = vector.broadcast %58 : vector<1x241xi1> to vector<4x241xi1>
    %60 = vector.broadcast %cst_16 : f32 to vector<4x241xf32>
    %61 = arith.select %59, %56, %60 : vector<4x241xi1>, vector<4x241xf32>
    %c24 = arith.constant 24 : index
    %c0_17 = arith.constant 0 : index
    %62 = vector.load %arg9[%c24, %c0_17] : memref<200x256xf32, #tpu.memory_space<vmem>>, vector<4x241xf32>
    tpu.vector_store %arg9[%c24, %c0_17], %61 {strides = array<i32>} : memref<200x256xf32, #tpu.memory_space<vmem>>, vector<4x241xf32>,
    %63 = vector.extract_strided_slice %24 {offsets = [0, 16], sizes = [4, 240], strides = [1, 1]} : vector<4x256xf32> to vector<4x240xf32>
    %c28 = arith.constant 28 : index
    %c0_18 = arith.constant 0 : index
    %64 = vector.load %arg9[%c28, %c0_18] : memref<200x256xf32, #tpu.memory_space<vmem>>, vector<4x240xf32>
    tpu.vector_store %arg9[%c28, %c0_18], %63 {strides = array<i32>} : memref<200x256xf32, #tpu.memory_space<vmem>>, vector<4x240xf32>,
    %65 = vector.extract_strided_slice %24 {offsets = [0, 17], sizes = [4, 239], strides = [1, 1]} : vector<4x256xf32> to vector<4x239xf32>
    %66 = vector.extract_strided_slice %20 {offsets = [0, 0], sizes = [1, 239], strides = [1, 1]} : vector<1x256xi1> to vector<1x239xi1>
    %cst_19 = arith.constant 0.000000e+00 : f32
    %67 = vector.shape_cast %66 : vector<1x239xi1> to vector<1x239xi1>
    %68 = vector.broadcast %67 : vector<1x239xi1> to vector<4x239xi1>
    %69 = vector.broadcast %cst_19 : f32 to vector<4x239xf32>
    %70 = arith.select %68, %65, %69 : vector<4x239xi1>, vector<4x239xf32>
    %c32 = arith.constant 32 : index
    %c0_20 = arith.constant 0 : index
    %71 = vector.load %arg9[%c32, %c0_20] : memref<200x256xf32, #tpu.memory_space<vmem>>, vector<4x239xf32>
    tpu.vector_store %arg9[%c32, %c0_20], %70 {strides = array<i32>} : memref<200x256xf32, #tpu.memory_space<vmem>>, vector<4x239xf32>,
    %c0_21 = arith.constant 0 : index
    %c0_22 = arith.constant 0 : index
    %c0_23 = arith.constant 0 : index
    %72 = vector.load %arg2[%c0_21, %c0_22, %c0_23] : memref<3x4x40xbf16, #tpu.memory_space<vmem>>, vector<1x4x40xbf16>
    %73 = vector.shape_cast %72 : vector<1x4x40xbf16> to vector<4x40xbf16>
    %c0_24 = arith.constant 0 : index
    %c0_25 = arith.constant 0 : index
    %74 = vector.load %arg9[%c0_24, %c0_25] : memref<200x256xf32, #tpu.memory_space<vmem>>, vector<40x256xf32>
    %75 = arith.truncf %74 : vector<40x256xf32> to vector<40x256xbf16>
    %cst_26 = arith.constant dense<0.000000e+00> : vector<4x256xf32>
    %76 = tpu.matmul %73, %75, %cst_26 {dimension_numbers = #tpu.dot_dimension_numbers<[1], [0], [0], [1], [0, 0, 1, 1], [], []>} : vector<4x40xbf16>, vector<40x256xbf16>, vector<4x256xf32> -> vector<4x256xf32>
    %c0_27 = arith.constant 0 : index
    %c0_28 = arith.constant 0 : index
    %c0_29 = arith.constant 0 : index
    %77 = vector.load %arg7[%c0_27, %c0_28, %c0_29] : memref<15x4x1xf32, #tpu.memory_space<vmem>>, vector<1x4x1xf32>
    %78 = vector.shape_cast %77 : vector<1x4x1xf32> to vector<4x1xf32>
    %79 = vector.broadcast %78 : vector<4x1xf32> to vector<4x256xf32>
    %80 = arith.addf %76, %79 : vector<4x256xf32>
    %cst_30 = arith.constant 0.000000e+00 : f32
    %81 = vector.broadcast %cst_30 : f32 to vector<4x256xf32>
    %82 = arith.cmpf oge, %80, %81 : vector<4x256xf32>
    %cst_31 = arith.constant 0.00999999977 : f32
    %83 = vector.broadcast %cst_31 : f32 to vector<4x256xf32>
    %84 = arith.mulf %83, %80 : vector<4x256xf32>
    %85 = arith.select %82, %80, %84 : vector<4x256xi1>, vector<4x256xf32>
    %86 = vector.extract_strided_slice %85 {offsets = [0, 0], sizes = [4, 239], strides = [1, 1]} : vector<4x256xf32> to vector<4x239xf32>
    %87 = vector.extract_strided_slice %18 {offsets = [0, 17], sizes = [1, 239], strides = [1, 1]} : vector<1x256xi1> to vector<1x239xi1>
    %cst_32 = arith.constant 0.000000e+00 : f32
    %88 = vector.shape_cast %87 : vector<1x239xi1> to vector<1x239xi1>
    %89 = vector.broadcast %88 : vector<1x239xi1> to vector<4x239xi1>
    %90 = vector.broadcast %cst_32 : f32 to vector<4x239xf32>
    %91 = arith.select %89, %86, %90 : vector<4x239xi1>, vector<4x239xf32>
    %c40 = arith.constant 40 : index
    %c17_33 = arith.constant 17 : index
    %92 = vector.load %arg9[%c40, %c17_33] : memref<200x256xf32, #tpu.memory_space<vmem>>, vector<4x239xf32>
    tpu.vector_store %arg9[%c40, %c17_33], %91 {strides = array<i32>} : memref<200x256xf32, #tpu.memory_space<vmem>>, vector<4x239xf32>,
    %93 = vector.extract_strided_slice %85 {offsets = [0, 0], sizes = [4, 240], strides = [1, 1]} : vector<4x256xf32> to vector<4x240xf32>
    %c44 = arith.constant 44 : index
    %c16_34 = arith.constant 16 : index
    %94 = vector.load %arg9[%c44, %c16_34] : memref<200x256xf32, #tpu.memory_space<vmem>>, vector<4x240xf32>
    tpu.vector_store %arg9[%c44, %c16_34], %93 {strides = array<i32>} : memref<200x256xf32, #tpu.memory_space<vmem>>, vector<4x240xf32>,
    %95 = vector.extract_strided_slice %85 {offsets = [0, 0], sizes = [4, 241], strides = [1, 1]} : vector<4x256xf32> to vector<4x241xf32>
    %96 = vector.extract_strided_slice %20 {offsets = [0, 15], sizes = [1, 241], strides = [1, 1]} : vector<1x256xi1> to vector<1x241xi1>
    %cst_35 = arith.constant 0.000000e+00 : f32
    %97 = vector.shape_cast %96 : vector<1x241xi1> to vector<1x241xi1>
    %98 = vector.broadcast %97 : vector<1x241xi1> to vector<4x241xi1>
    %99 = vector.broadcast %cst_35 : f32 to vector<4x241xf32>
    %100 = arith.select %98, %95, %99 : vector<4x241xi1>, vector<4x241xf32>
    %c48 = arith.constant 48 : index
    %c15_36 = arith.constant 15 : index
    %101 = vector.load %arg9[%c48, %c15_36] : memref<200x256xf32, #tpu.memory_space<vmem>>, vector<4x241xf32>
    tpu.vector_store %arg9[%c48, %c15_36], %100 {strides = array<i32>} : memref<200x256xf32, #tpu.memory_space<vmem>>, vector<4x241xf32>,
    %102 = vector.extract_strided_slice %85 {offsets = [0, 0], sizes = [4, 255], strides = [1, 1]} : vector<4x256xf32> to vector<4x255xf32>
    %103 = vector.extract_strided_slice %18 {offsets = [0, 1], sizes = [1, 255], strides = [1, 1]} : vector<1x256xi1> to vector<1x255xi1>
    %cst_37 = arith.constant 0.000000e+00 : f32
    %104 = vector.shape_cast %103 : vector<1x255xi1> to vector<1x255xi1>
    %105 = vector.broadcast %104 : vector<1x255xi1> to vector<4x255xi1>
    %106 = vector.broadcast %cst_37 : f32 to vector<4x255xf32>
    %107 = arith.select %105, %102, %106 : vector<4x255xi1>, vector<4x255xf32>
    %c52 = arith.constant 52 : index
    %c1_38 = arith.constant 1 : index
    %108 = vector.load %arg9[%c52, %c1_38] : memref<200x256xf32, #tpu.memory_space<vmem>>, vector<4x255xf32>
    tpu.vector_store %arg9[%c52, %c1_38], %107 {strides = array<i32>} : memref<200x256xf32, #tpu.memory_space<vmem>>, vector<4x255xf32>,
    %c56 = arith.constant 56 : index
    %c0_39 = arith.constant 0 : index
    %109 = vector.load %arg9[%c56, %c0_39] : memref<200x256xf32, #tpu.memory_space<vmem>>, vector<4x256xf32>
    tpu.vector_store %arg9[%c56, %c0_39], %85 {strides = array<i32>} : memref<200x256xf32, #tpu.memory_space<vmem>>, vector<4x256xf32>,
    %110 = vector.extract_strided_slice %85 {offsets = [0, 1], sizes = [4, 255], strides = [1, 1]} : vector<4x256xf32> to vector<4x255xf32>
    %111 = vector.extract_strided_slice %20 {offsets = [0, 0], sizes = [1, 255], strides = [1, 1]} : vector<1x256xi1> to vector<1x255xi1>
    %cst_40 = arith.constant 0.000000e+00 : f32
    %112 = vector.shape_cast %111 : vector<1x255xi1> to vector<1x255xi1>
    %113 = vector.broadcast %112 : vector<1x255xi1> to vector<4x255xi1>
    %114 = vector.broadcast %cst_40 : f32 to vector<4x255xf32>
    %115 = arith.select %113, %110, %114 : vector<4x255xi1>, vector<4x255xf32>
    %c60 = arith.constant 60 : index
    %c0_41 = arith.constant 0 : index
    %116 = vector.load %arg9[%c60, %c0_41] : memref<200x256xf32, #tpu.memory_space<vmem>>, vector<4x255xf32>
    tpu.vector_store %arg9[%c60, %c0_41], %115 {strides = array<i32>} : memref<200x256xf32, #tpu.memory_space<vmem>>, vector<4x255xf32>,
    %117 = vector.extract_strided_slice %85 {offsets = [0, 15], sizes = [4, 241], strides = [1, 1]} : vector<4x256xf32> to vector<4x241xf32>
    %118 = vector.extract_strided_slice %18 {offsets = [0, 0], sizes = [1, 241], strides = [1, 1]} : vector<1x256xi1> to vector<1x241xi1>
    %cst_42 = arith.constant 0.000000e+00 : f32
    %119 = vector.shape_cast %118 : vector<1x241xi1> to vector<1x241xi1>
    %120 = vector.broadcast %119 : vector<1x241xi1> to vector<4x241xi1>
    %121 = vector.broadcast %cst_42 : f32 to vector<4x241xf32>
    %122 = arith.select %120, %117, %121 : vector<4x241xi1>, vector<4x241xf32>
    %c64 = arith.constant 64 : index
    %c0_43 = arith.constant 0 : index
    %123 = vector.load %arg9[%c64, %c0_43] : memref<200x256xf32, #tpu.memory_space<vmem>>, vector<4x241xf32>
    tpu.vector_store %arg9[%c64, %c0_43], %122 {strides = array<i32>} : memref<200x256xf32, #tpu.memory_space<vmem>>, vector<4x241xf32>,
    %124 = vector.extract_strided_slice %85 {offsets = [0, 16], sizes = [4, 240], strides = [1, 1]} : vector<4x256xf32> to vector<4x240xf32>
    %c68 = arith.constant 68 : index
    %c0_44 = arith.constant 0 : index
    %125 = vector.load %arg9[%c68, %c0_44] : memref<200x256xf32, #tpu.memory_space<vmem>>, vector<4x240xf32>
    tpu.vector_store %arg9[%c68, %c0_44], %124 {strides = array<i32>} : memref<200x256xf32, #tpu.memory_space<vmem>>, vector<4x240xf32>,
    %126 = vector.extract_strided_slice %85 {offsets = [0, 17], sizes = [4, 239], strides = [1, 1]} : vector<4x256xf32> to vector<4x239xf32>
    %127 = vector.extract_strided_slice %20 {offsets = [0, 0], sizes = [1, 239], strides = [1, 1]} : vector<1x256xi1> to vector<1x239xi1>
    %cst_45 = arith.constant 0.000000e+00 : f32
    %128 = vector.shape_cast %127 : vector<1x239xi1> to vector<1x239xi1>
    %129 = vector.broadcast %128 : vector<1x239xi1> to vector<4x239xi1>
    %130 = vector.broadcast %cst_45 : f32 to vector<4x239xf32>
    %131 = arith.select %129, %126, %130 : vector<4x239xi1>, vector<4x239xf32>
    %c72 = arith.constant 72 : index
    %c0_46 = arith.constant 0 : index
    %132 = vector.load %arg9[%c72, %c0_46] : memref<200x256xf32, #tpu.memory_space<vmem>>, vector<4x239xf32>
    tpu.vector_store %arg9[%c72, %c0_46], %131 {strides = array<i32>} : memref<200x256xf32, #tpu.memory_space<vmem>>, vector<4x239xf32>,
    %c0_47 = arith.constant 0 : index
    %c0_48 = arith.constant 0 : index
    %c0_49 = arith.constant 0 : index
    %133 = vector.load %arg3[%c0_47, %c0_48, %c0_49] : memref<3x4x80xbf16, #tpu.memory_space<vmem>>, vector<1x4x80xbf16>
    %134 = vector.shape_cast %133 : vector<1x4x80xbf16> to vector<4x80xbf16>
    %c0_50 = arith.constant 0 : index
    %c0_51 = arith.constant 0 : index
    %135 = vector.load %arg9[%c0_50, %c0_51] : memref<200x256xf32, #tpu.memory_space<vmem>>, vector<80x256xf32>
    %136 = arith.truncf %135 : vector<80x256xf32> to vector<80x256xbf16>
    %cst_52 = arith.constant dense<0.000000e+00> : vector<4x256xf32>
    %137 = tpu.matmul %134, %136, %cst_52 {dimension_numbers = #tpu.dot_dimension_numbers<[1], [0], [0], [1], [0, 0, 1, 1], [], []>} : vector<4x80xbf16>, vector<80x256xbf16>, vector<4x256xf32> -> vector<4x256xf32>
    %c1_53 = arith.constant 1 : index
    %c0_54 = arith.constant 0 : index
    %c0_55 = arith.constant 0 : index
    %138 = vector.load %arg7[%c1_53, %c0_54, %c0_55] : memref<15x4x1xf32, #tpu.memory_space<vmem>>, vector<1x4x1xf32>
    %139 = vector.shape_cast %138 : vector<1x4x1xf32> to vector<4x1xf32>
    %140 = vector.broadcast %139 : vector<4x1xf32> to vector<4x256xf32>
    %141 = arith.addf %137, %140 : vector<4x256xf32>
    %cst_56 = arith.constant 0.000000e+00 : f32
    %142 = vector.broadcast %cst_56 : f32 to vector<4x256xf32>
    %143 = arith.cmpf oge, %141, %142 : vector<4x256xf32>
    %cst_57 = arith.constant 0.00999999977 : f32
    %144 = vector.broadcast %cst_57 : f32 to vector<4x256xf32>
    %145 = arith.mulf %144, %141 : vector<4x256xf32>
    %146 = arith.select %143, %141, %145 : vector<4x256xi1>, vector<4x256xf32>
    %147 = vector.extract_strided_slice %146 {offsets = [0, 0], sizes = [4, 239], strides = [1, 1]} : vector<4x256xf32> to vector<4x239xf32>
    %148 = vector.extract_strided_slice %18 {offsets = [0, 17], sizes = [1, 239], strides = [1, 1]} : vector<1x256xi1> to vector<1x239xi1>
    %cst_58 = arith.constant 0.000000e+00 : f32
    %149 = vector.shape_cast %148 : vector<1x239xi1> to vector<1x239xi1>
    %150 = vector.broadcast %149 : vector<1x239xi1> to vector<4x239xi1>
    %151 = vector.broadcast %cst_58 : f32 to vector<4x239xf32>
    %152 = arith.select %150, %147, %151 : vector<4x239xi1>, vector<4x239xf32>
    %c80 = arith.constant 80 : index
    %c17_59 = arith.constant 17 : index
    %153 = vector.load %arg9[%c80, %c17_59] : memref<200x256xf32, #tpu.memory_space<vmem>>, vector<4x239xf32>
    tpu.vector_store %arg9[%c80, %c17_59], %152 {strides = array<i32>} : memref<200x256xf32, #tpu.memory_space<vmem>>, vector<4x239xf32>,
    %154 = vector.extract_strided_slice %146 {offsets = [0, 0], sizes = [4, 240], strides = [1, 1]} : vector<4x256xf32> to vector<4x240xf32>
    %c84 = arith.constant 84 : index
    %c16_60 = arith.constant 16 : index
    %155 = vector.load %arg9[%c84, %c16_60] : memref<200x256xf32, #tpu.memory_space<vmem>>, vector<4x240xf32>
    tpu.vector_store %arg9[%c84, %c16_60], %154 {strides = array<i32>} : memref<200x256xf32, #tpu.memory_space<vmem>>, vector<4x240xf32>,
    %156 = vector.extract_strided_slice %146 {offsets = [0, 0], sizes = [4, 241], strides = [1, 1]} : vector<4x256xf32> to vector<4x241xf32>
    %157 = vector.extract_strided_slice %20 {offsets = [0, 15], sizes = [1, 241], strides = [1, 1]} : vector<1x256xi1> to vector<1x241xi1>
    %cst_61 = arith.constant 0.000000e+00 : f32
    %158 = vector.shape_cast %157 : vector<1x241xi1> to vector<1x241xi1>
    %159 = vector.broadcast %158 : vector<1x241xi1> to vector<4x241xi1>
    %160 = vector.broadcast %cst_61 : f32 to vector<4x241xf32>
    %161 = arith.select %159, %156, %160 : vector<4x241xi1>, vector<4x241xf32>
    %c88 = arith.constant 88 : index
    %c15_62 = arith.constant 15 : index
    %162 = vector.load %arg9[%c88, %c15_62] : memref<200x256xf32, #tpu.memory_space<vmem>>, vector<4x241xf32>
    tpu.vector_store %arg9[%c88, %c15_62], %161 {strides = array<i32>} : memref<200x256xf32, #tpu.memory_space<vmem>>, vector<4x241xf32>,
    %163 = vector.extract_strided_slice %146 {offsets = [0, 0], sizes = [4, 255], strides = [1, 1]} : vector<4x256xf32> to vector<4x255xf32>
    %164 = vector.extract_strided_slice %18 {offsets = [0, 1], sizes = [1, 255], strides = [1, 1]} : vector<1x256xi1> to vector<1x255xi1>
    %cst_63 = arith.constant 0.000000e+00 : f32
    %165 = vector.shape_cast %164 : vector<1x255xi1> to vector<1x255xi1>
    %166 = vector.broadcast %165 : vector<1x255xi1> to vector<4x255xi1>
    %167 = vector.broadcast %cst_63 : f32 to vector<4x255xf32>
    %168 = arith.select %166, %163, %167 : vector<4x255xi1>, vector<4x255xf32>
    %c92 = arith.constant 92 : index
    %c1_64 = arith.constant 1 : index
    %169 = vector.load %arg9[%c92, %c1_64] : memref<200x256xf32, #tpu.memory_space<vmem>>, vector<4x255xf32>
    tpu.vector_store %arg9[%c92, %c1_64], %168 {strides = array<i32>} : memref<200x256xf32, #tpu.memory_space<vmem>>, vector<4x255xf32>,
    %c96 = arith.constant 96 : index
    %c0_65 = arith.constant 0 : index
    %170 = vector.load %arg9[%c96, %c0_65] : memref<200x256xf32, #tpu.memory_space<vmem>>, vector<4x256xf32>
    tpu.vector_store %arg9[%c96, %c0_65], %146 {strides = array<i32>} : memref<200x256xf32, #tpu.memory_space<vmem>>, vector<4x256xf32>,
    %171 = vector.extract_strided_slice %146 {offsets = [0, 1], sizes = [4, 255], strides = [1, 1]} : vector<4x256xf32> to vector<4x255xf32>
    %172 = vector.extract_strided_slice %20 {offsets = [0, 0], sizes = [1, 255], strides = [1, 1]} : vector<1x256xi1> to vector<1x255xi1>
    %cst_66 = arith.constant 0.000000e+00 : f32
    %173 = vector.shape_cast %172 : vector<1x255xi1> to vector<1x255xi1>
    %174 = vector.broadcast %173 : vector<1x255xi1> to vector<4x255xi1>
    %175 = vector.broadcast %cst_66 : f32 to vector<4x255xf32>
    %176 = arith.select %174, %171, %175 : vector<4x255xi1>, vector<4x255xf32>
    %c100 = arith.constant 100 : index
    %c0_67 = arith.constant 0 : index
    %177 = vector.load %arg9[%c100, %c0_67] : memref<200x256xf32, #tpu.memory_space<vmem>>, vector<4x255xf32>
    tpu.vector_store %arg9[%c100, %c0_67], %176 {strides = array<i32>} : memref<200x256xf32, #tpu.memory_space<vmem>>, vector<4x255xf32>,
    %178 = vector.extract_strided_slice %146 {offsets = [0, 15], sizes = [4, 241], strides = [1, 1]} : vector<4x256xf32> to vector<4x241xf32>
    %179 = vector.extract_strided_slice %18 {offsets = [0, 0], sizes = [1, 241], strides = [1, 1]} : vector<1x256xi1> to vector<1x241xi1>
    %cst_68 = arith.constant 0.000000e+00 : f32
    %180 = vector.shape_cast %179 : vector<1x241xi1> to vector<1x241xi1>
    %181 = vector.broadcast %180 : vector<1x241xi1> to vector<4x241xi1>
    %182 = vector.broadcast %cst_68 : f32 to vector<4x241xf32>
    %183 = arith.select %181, %178, %182 : vector<4x241xi1>, vector<4x241xf32>
    %c104 = arith.constant 104 : index
    %c0_69 = arith.constant 0 : index
    %184 = vector.load %arg9[%c104, %c0_69] : memref<200x256xf32, #tpu.memory_space<vmem>>, vector<4x241xf32>
    tpu.vector_store %arg9[%c104, %c0_69], %183 {strides = array<i32>} : memref<200x256xf32, #tpu.memory_space<vmem>>, vector<4x241xf32>,
    %185 = vector.extract_strided_slice %146 {offsets = [0, 16], sizes = [4, 240], strides = [1, 1]} : vector<4x256xf32> to vector<4x240xf32>
    %c108 = arith.constant 108 : index
    %c0_70 = arith.constant 0 : index
    %186 = vector.load %arg9[%c108, %c0_70] : memref<200x256xf32, #tpu.memory_space<vmem>>, vector<4x240xf32>
    tpu.vector_store %arg9[%c108, %c0_70], %185 {strides = array<i32>} : memref<200x256xf32, #tpu.memory_space<vmem>>, vector<4x240xf32>,
    %187 = vector.extract_strided_slice %146 {offsets = [0, 17], sizes = [4, 239], strides = [1, 1]} : vector<4x256xf32> to vector<4x239xf32>
    %188 = vector.extract_strided_slice %20 {offsets = [0, 0], sizes = [1, 239], strides = [1, 1]} : vector<1x256xi1> to vector<1x239xi1>
    %cst_71 = arith.constant 0.000000e+00 : f32
    %189 = vector.shape_cast %188 : vector<1x239xi1> to vector<1x239xi1>
    %190 = vector.broadcast %189 : vector<1x239xi1> to vector<4x239xi1>
    %191 = vector.broadcast %cst_71 : f32 to vector<4x239xf32>
    %192 = arith.select %190, %187, %191 : vector<4x239xi1>, vector<4x239xf32>
    %c112 = arith.constant 112 : index
    %c0_72 = arith.constant 0 : index
    %193 = vector.load %arg9[%c112, %c0_72] : memref<200x256xf32, #tpu.memory_space<vmem>>, vector<4x239xf32>
    tpu.vector_store %arg9[%c112, %c0_72], %192 {strides = array<i32>} : memref<200x256xf32, #tpu.memory_space<vmem>>, vector<4x239xf32>,
    %c0_73 = arith.constant 0 : index
    %c0_74 = arith.constant 0 : index
    %c0_75 = arith.constant 0 : index
    %194 = vector.load %arg4[%c0_73, %c0_74, %c0_75] : memref<3x4x120xbf16, #tpu.memory_space<vmem>>, vector<1x4x120xbf16>
    %195 = vector.shape_cast %194 : vector<1x4x120xbf16> to vector<4x120xbf16>
    %c0_76 = arith.constant 0 : index
    %c0_77 = arith.constant 0 : index
    %196 = vector.load %arg9[%c0_76, %c0_77] : memref<200x256xf32, #tpu.memory_space<vmem>>, vector<120x256xf32>
    %197 = arith.truncf %196 : vector<120x256xf32> to vector<120x256xbf16>
    %cst_78 = arith.constant dense<0.000000e+00> : vector<4x256xf32>
    %198 = tpu.matmul %195, %197, %cst_78 {dimension_numbers = #tpu.dot_dimension_numbers<[1], [0], [0], [1], [0, 0, 1, 1], [], []>} : vector<4x120xbf16>, vector<120x256xbf16>, vector<4x256xf32> -> vector<4x256xf32>
    %c2 = arith.constant 2 : index
    %c0_79 = arith.constant 0 : index
    %c0_80 = arith.constant 0 : index
    %199 = vector.load %arg7[%c2, %c0_79, %c0_80] : memref<15x4x1xf32, #tpu.memory_space<vmem>>, vector<1x4x1xf32>
    %200 = vector.shape_cast %199 : vector<1x4x1xf32> to vector<4x1xf32>
    %201 = vector.broadcast %200 : vector<4x1xf32> to vector<4x256xf32>
    %202 = arith.addf %198, %201 : vector<4x256xf32>
    %cst_81 = arith.constant 0.000000e+00 : f32
    %203 = vector.broadcast %cst_81 : f32 to vector<4x256xf32>
    %204 = arith.cmpf oge, %202, %203 : vector<4x256xf32>
    %cst_82 = arith.constant 0.00999999977 : f32
    %205 = vector.broadcast %cst_82 : f32 to vector<4x256xf32>
    %206 = arith.mulf %205, %202 : vector<4x256xf32>
    %207 = arith.select %204, %202, %206 : vector<4x256xi1>, vector<4x256xf32>
    %208 = vector.extract_strided_slice %207 {offsets = [0, 0], sizes = [4, 239], strides = [1, 1]} : vector<4x256xf32> to vector<4x239xf32>
    %209 = vector.extract_strided_slice %18 {offsets = [0, 17], sizes = [1, 239], strides = [1, 1]} : vector<1x256xi1> to vector<1x239xi1>
    %cst_83 = arith.constant 0.000000e+00 : f32
    %210 = vector.shape_cast %209 : vector<1x239xi1> to vector<1x239xi1>
    %211 = vector.broadcast %210 : vector<1x239xi1> to vector<4x239xi1>
    %212 = vector.broadcast %cst_83 : f32 to vector<4x239xf32>
    %213 = arith.select %211, %208, %212 : vector<4x239xi1>, vector<4x239xf32>
    %c120 = arith.constant 120 : index
    %c17_84 = arith.constant 17 : index
    %214 = vector.load %arg9[%c120, %c17_84] : memref<200x256xf32, #tpu.memory_space<vmem>>, vector<4x239xf32>
    tpu.vector_store %arg9[%c120, %c17_84], %213 {strides = array<i32>} : memref<200x256xf32, #tpu.memory_space<vmem>>, vector<4x239xf32>,
    %215 = vector.extract_strided_slice %207 {offsets = [0, 0], sizes = [4, 240], strides = [1, 1]} : vector<4x256xf32> to vector<4x240xf32>
    %c124 = arith.constant 124 : index
    %c16_85 = arith.constant 16 : index
    %216 = vector.load %arg9[%c124, %c16_85] : memref<200x256xf32, #tpu.memory_space<vmem>>, vector<4x240xf32>
    tpu.vector_store %arg9[%c124, %c16_85], %215 {strides = array<i32>} : memref<200x256xf32, #tpu.memory_space<vmem>>, vector<4x240xf32>,
    %217 = vector.extract_strided_slice %207 {offsets = [0, 0], sizes = [4, 241], strides = [1, 1]} : vector<4x256xf32> to vector<4x241xf32>
    %218 = vector.extract_strided_slice %20 {offsets = [0, 15], sizes = [1, 241], strides = [1, 1]} : vector<1x256xi1> to vector<1x241xi1>
    %cst_86 = arith.constant 0.000000e+00 : f32
    %219 = vector.shape_cast %218 : vector<1x241xi1> to vector<1x241xi1>
    %220 = vector.broadcast %219 : vector<1x241xi1> to vector<4x241xi1>
    %221 = vector.broadcast %cst_86 : f32 to vector<4x241xf32>
    %222 = arith.select %220, %217, %221 : vector<4x241xi1>, vector<4x241xf32>
    %c128 = arith.constant 128 : index
    %c15_87 = arith.constant 15 : index
    %223 = vector.load %arg9[%c128, %c15_87] : memref<200x256xf32, #tpu.memory_space<vmem>>, vector<4x241xf32>
    tpu.vector_store %arg9[%c128, %c15_87], %222 {strides = array<i32>} : memref<200x256xf32, #tpu.memory_space<vmem>>, vector<4x241xf32>,
    %224 = vector.extract_strided_slice %207 {offsets = [0, 0], sizes = [4, 255], strides = [1, 1]} : vector<4x256xf32> to vector<4x255xf32>
    %225 = vector.extract_strided_slice %18 {offsets = [0, 1], sizes = [1, 255], strides = [1, 1]} : vector<1x256xi1> to vector<1x255xi1>
    %cst_88 = arith.constant 0.000000e+00 : f32
    %226 = vector.shape_cast %225 : vector<1x255xi1> to vector<1x255xi1>
    %227 = vector.broadcast %226 : vector<1x255xi1> to vector<4x255xi1>
    %228 = vector.broadcast %cst_88 : f32 to vector<4x255xf32>
    %229 = arith.select %227, %224, %228 : vector<4x255xi1>, vector<4x255xf32>
    %c132 = arith.constant 132 : index
    %c1_89 = arith.constant 1 : index
    %230 = vector.load %arg9[%c132, %c1_89] : memref<200x256xf32, #tpu.memory_space<vmem>>, vector<4x255xf32>
    tpu.vector_store %arg9[%c132, %c1_89], %229 {strides = array<i32>} : memref<200x256xf32, #tpu.memory_space<vmem>>, vector<4x255xf32>,
    %c136 = arith.constant 136 : index
    %c0_90 = arith.constant 0 : index
    %231 = vector.load %arg9[%c136, %c0_90] : memref<200x256xf32, #tpu.memory_space<vmem>>, vector<4x256xf32>
    tpu.vector_store %arg9[%c136, %c0_90], %207 {strides = array<i32>} : memref<200x256xf32, #tpu.memory_space<vmem>>, vector<4x256xf32>,
    %232 = vector.extract_strided_slice %207 {offsets = [0, 1], sizes = [4, 255], strides = [1, 1]} : vector<4x256xf32> to vector<4x255xf32>
    %233 = vector.extract_strided_slice %20 {offsets = [0, 0], sizes = [1, 255], strides = [1, 1]} : vector<1x256xi1> to vector<1x255xi1>
    %cst_91 = arith.constant 0.000000e+00 : f32
    %234 = vector.shape_cast %233 : vector<1x255xi1> to vector<1x255xi1>
    %235 = vector.broadcast %234 : vector<1x255xi1> to vector<4x255xi1>
    %236 = vector.broadcast %cst_91 : f32 to vector<4x255xf32>
    %237 = arith.select %235, %232, %236 : vector<4x255xi1>, vector<4x255xf32>
    %c140 = arith.constant 140 : index
    %c0_92 = arith.constant 0 : index
    %238 = vector.load %arg9[%c140, %c0_92] : memref<200x256xf32, #tpu.memory_space<vmem>>, vector<4x255xf32>
    tpu.vector_store %arg9[%c140, %c0_92], %237 {strides = array<i32>} : memref<200x256xf32, #tpu.memory_space<vmem>>, vector<4x255xf32>,
    %239 = vector.extract_strided_slice %207 {offsets = [0, 15], sizes = [4, 241], strides = [1, 1]} : vector<4x256xf32> to vector<4x241xf32>
    %240 = vector.extract_strided_slice %18 {offsets = [0, 0], sizes = [1, 241], strides = [1, 1]} : vector<1x256xi1> to vector<1x241xi1>
    %cst_93 = arith.constant 0.000000e+00 : f32
    %241 = vector.shape_cast %240 : vector<1x241xi1> to vector<1x241xi1>
    %242 = vector.broadcast %241 : vector<1x241xi1> to vector<4x241xi1>
    %243 = vector.broadcast %cst_93 : f32 to vector<4x241xf32>
    %244 = arith.select %242, %239, %243 : vector<4x241xi1>, vector<4x241xf32>
    %c144 = arith.constant 144 : index
    %c0_94 = arith.constant 0 : index
    %245 = vector.load %arg9[%c144, %c0_94] : memref<200x256xf32, #tpu.memory_space<vmem>>, vector<4x241xf32>
    tpu.vector_store %arg9[%c144, %c0_94], %244 {strides = array<i32>} : memref<200x256xf32, #tpu.memory_space<vmem>>, vector<4x241xf32>,
    %246 = vector.extract_strided_slice %207 {offsets = [0, 16], sizes = [4, 240], strides = [1, 1]} : vector<4x256xf32> to vector<4x240xf32>
    %c148 = arith.constant 148 : index
    %c0_95 = arith.constant 0 : index
    %247 = vector.load %arg9[%c148, %c0_95] : memref<200x256xf32, #tpu.memory_space<vmem>>, vector<4x240xf32>
    tpu.vector_store %arg9[%c148, %c0_95], %246 {strides = array<i32>} : memref<200x256xf32, #tpu.memory_space<vmem>>, vector<4x240xf32>,
    %248 = vector.extract_strided_slice %207 {offsets = [0, 17], sizes = [4, 239], strides = [1, 1]} : vector<4x256xf32> to vector<4x239xf32>
    %249 = vector.extract_strided_slice %20 {offsets = [0, 0], sizes = [1, 239], strides = [1, 1]} : vector<1x256xi1> to vector<1x239xi1>
    %cst_96 = arith.constant 0.000000e+00 : f32
    %250 = vector.shape_cast %249 : vector<1x239xi1> to vector<1x239xi1>
    %251 = vector.broadcast %250 : vector<1x239xi1> to vector<4x239xi1>
    %252 = vector.broadcast %cst_96 : f32 to vector<4x239xf32>
    %253 = arith.select %251, %248, %252 : vector<4x239xi1>, vector<4x239xf32>
    %c152 = arith.constant 152 : index
    %c0_97 = arith.constant 0 : index
    %254 = vector.load %arg9[%c152, %c0_97] : memref<200x256xf32, #tpu.memory_space<vmem>>, vector<4x239xf32>
    tpu.vector_store %arg9[%c152, %c0_97], %253 {strides = array<i32>} : memref<200x256xf32, #tpu.memory_space<vmem>>, vector<4x239xf32>,
    %c0_98 = arith.constant 0 : index
    %c0_99 = arith.constant 0 : index
    %c0_100 = arith.constant 0 : index
    %255 = vector.load %arg5[%c0_98, %c0_99, %c0_100] : memref<3x4x160xbf16, #tpu.memory_space<vmem>>, vector<1x4x160xbf16>
    %256 = vector.shape_cast %255 : vector<1x4x160xbf16> to vector<4x160xbf16>
    %c0_101 = arith.constant 0 : index
    %c0_102 = arith.constant 0 : index
    %257 = vector.load %arg9[%c0_101, %c0_102] : memref<200x256xf32, #tpu.memory_space<vmem>>, vector<160x256xf32>
    %258 = arith.truncf %257 : vector<160x256xf32> to vector<160x256xbf16>
    %cst_103 = arith.constant dense<0.000000e+00> : vector<4x256xf32>
    %259 = tpu.matmul %256, %258, %cst_103 {dimension_numbers = #tpu.dot_dimension_numbers<[1], [0], [0], [1], [0, 0, 1, 1], [], []>} : vector<4x160xbf16>, vector<160x256xbf16>, vector<4x256xf32> -> vector<4x256xf32>
    %c3 = arith.constant 3 : index
    %c0_104 = arith.constant 0 : index
    %c0_105 = arith.constant 0 : index
    %260 = vector.load %arg7[%c3, %c0_104, %c0_105] : memref<15x4x1xf32, #tpu.memory_space<vmem>>, vector<1x4x1xf32>
    %261 = vector.shape_cast %260 : vector<1x4x1xf32> to vector<4x1xf32>
    %262 = vector.broadcast %261 : vector<4x1xf32> to vector<4x256xf32>
    %263 = arith.addf %259, %262 : vector<4x256xf32>
    %cst_106 = arith.constant 0.000000e+00 : f32
    %264 = vector.broadcast %cst_106 : f32 to vector<4x256xf32>
    %265 = arith.cmpf oge, %263, %264 : vector<4x256xf32>
    %cst_107 = arith.constant 0.00999999977 : f32
    %266 = vector.broadcast %cst_107 : f32 to vector<4x256xf32>
    %267 = arith.mulf %266, %263 : vector<4x256xf32>
    %268 = arith.select %265, %263, %267 : vector<4x256xi1>, vector<4x256xf32>
    %269 = vector.extract_strided_slice %268 {offsets = [0, 0], sizes = [4, 239], strides = [1, 1]} : vector<4x256xf32> to vector<4x239xf32>
    %270 = vector.extract_strided_slice %18 {offsets = [0, 17], sizes = [1, 239], strides = [1, 1]} : vector<1x256xi1> to vector<1x239xi1>
    %cst_108 = arith.constant 0.000000e+00 : f32
    %271 = vector.shape_cast %270 : vector<1x239xi1> to vector<1x239xi1>
    %272 = vector.broadcast %271 : vector<1x239xi1> to vector<4x239xi1>
    %273 = vector.broadcast %cst_108 : f32 to vector<4x239xf32>
    %274 = arith.select %272, %269, %273 : vector<4x239xi1>, vector<4x239xf32>
    %c160 = arith.constant 160 : index
    %c17_109 = arith.constant 17 : index
    %275 = vector.load %arg9[%c160, %c17_109] : memref<200x256xf32, #tpu.memory_space<vmem>>, vector<4x239xf32>
    tpu.vector_store %arg9[%c160, %c17_109], %274 {strides = array<i32>} : memref<200x256xf32, #tpu.memory_space<vmem>>, vector<4x239xf32>,
    %276 = vector.extract_strided_slice %268 {offsets = [0, 0], sizes = [4, 240], strides = [1, 1]} : vector<4x256xf32> to vector<4x240xf32>
    %c164 = arith.constant 164 : index
    %c16_110 = arith.constant 16 : index
    %277 = vector.load %arg9[%c164, %c16_110] : memref<200x256xf32, #tpu.memory_space<vmem>>, vector<4x240xf32>
    tpu.vector_store %arg9[%c164, %c16_110], %276 {strides = array<i32>} : memref<200x256xf32, #tpu.memory_space<vmem>>, vector<4x240xf32>,
    %278 = vector.extract_strided_slice %268 {offsets = [0, 0], sizes = [4, 241], strides = [1, 1]} : vector<4x256xf32> to vector<4x241xf32>
    %279 = vector.extract_strided_slice %20 {offsets = [0, 15], sizes = [1, 241], strides = [1, 1]} : vector<1x256xi1> to vector<1x241xi1>
    %cst_111 = arith.constant 0.000000e+00 : f32
    %280 = vector.shape_cast %279 : vector<1x241xi1> to vector<1x241xi1>
    %281 = vector.broadcast %280 : vector<1x241xi1> to vector<4x241xi1>
    %282 = vector.broadcast %cst_111 : f32 to vector<4x241xf32>
    %283 = arith.select %281, %278, %282 : vector<4x241xi1>, vector<4x241xf32>
    %c168 = arith.constant 168 : index
    %c15_112 = arith.constant 15 : index
    %284 = vector.load %arg9[%c168, %c15_112] : memref<200x256xf32, #tpu.memory_space<vmem>>, vector<4x241xf32>
    tpu.vector_store %arg9[%c168, %c15_112], %283 {strides = array<i32>} : memref<200x256xf32, #tpu.memory_space<vmem>>, vector<4x241xf32>,
    %285 = vector.extract_strided_slice %268 {offsets = [0, 0], sizes = [4, 255], strides = [1, 1]} : vector<4x256xf32> to vector<4x255xf32>
    %286 = vector.extract_strided_slice %18 {offsets = [0, 1], sizes = [1, 255], strides = [1, 1]} : vector<1x256xi1> to vector<1x255xi1>
    %cst_113 = arith.constant 0.000000e+00 : f32
    %287 = vector.shape_cast %286 : vector<1x255xi1> to vector<1x255xi1>
    %288 = vector.broadcast %287 : vector<1x255xi1> to vector<4x255xi1>
    %289 = vector.broadcast %cst_113 : f32 to vector<4x255xf32>
    %290 = arith.select %288, %285, %289 : vector<4x255xi1>, vector<4x255xf32>
    %c172 = arith.constant 172 : index
    %c1_114 = arith.constant 1 : index
    %291 = vector.load %arg9[%c172, %c1_114] : memref<200x256xf32, #tpu.memory_space<vmem>>, vector<4x255xf32>
    tpu.vector_store %arg9[%c172, %c1_114], %290 {strides = array<i32>} : memref<200x256xf32, #tpu.memory_space<vmem>>, vector<4x255xf32>,
    %c176 = arith.constant 176 : index
    %c0_115 = arith.constant 0 : index
    %292 = vector.load %arg9[%c176, %c0_115] : memref<200x256xf32, #tpu.memory_space<vmem>>, vector<4x256xf32>
    tpu.vector_store %arg9[%c176, %c0_115], %268 {strides = array<i32>} : memref<200x256xf32, #tpu.memory_space<vmem>>, vector<4x256xf32>,
    %293 = vector.extract_strided_slice %268 {offsets = [0, 1], sizes = [4, 255], strides = [1, 1]} : vector<4x256xf32> to vector<4x255xf32>
    %294 = vector.extract_strided_slice %20 {offsets = [0, 0], sizes = [1, 255], strides = [1, 1]} : vector<1x256xi1> to vector<1x255xi1>
    %cst_116 = arith.constant 0.000000e+00 : f32
    %295 = vector.shape_cast %294 : vector<1x255xi1> to vector<1x255xi1>
    %296 = vector.broadcast %295 : vector<1x255xi1> to vector<4x255xi1>
    %297 = vector.broadcast %cst_116 : f32 to vector<4x255xf32>
    %298 = arith.select %296, %293, %297 : vector<4x255xi1>, vector<4x255xf32>
    %c180 = arith.constant 180 : index
    %c0_117 = arith.constant 0 : index
    %299 = vector.load %arg9[%c180, %c0_117] : memref<200x256xf32, #tpu.memory_space<vmem>>, vector<4x255xf32>
    tpu.vector_store %arg9[%c180, %c0_117], %298 {strides = array<i32>} : memref<200x256xf32, #tpu.memory_space<vmem>>, vector<4x255xf32>,
    %300 = vector.extract_strided_slice %268 {offsets = [0, 15], sizes = [4, 241], strides = [1, 1]} : vector<4x256xf32> to vector<4x241xf32>
    %301 = vector.extract_strided_slice %18 {offsets = [0, 0], sizes = [1, 241], strides = [1, 1]} : vector<1x256xi1> to vector<1x241xi1>
    %cst_118 = arith.constant 0.000000e+00 : f32
    %302 = vector.shape_cast %301 : vector<1x241xi1> to vector<1x241xi1>
    %303 = vector.broadcast %302 : vector<1x241xi1> to vector<4x241xi1>
    %304 = vector.broadcast %cst_118 : f32 to vector<4x241xf32>
    %305 = arith.select %303, %300, %304 : vector<4x241xi1>, vector<4x241xf32>
    %c184 = arith.constant 184 : index
    %c0_119 = arith.constant 0 : index
    %306 = vector.load %arg9[%c184, %c0_119] : memref<200x256xf32, #tpu.memory_space<vmem>>, vector<4x241xf32>
    tpu.vector_store %arg9[%c184, %c0_119], %305 {strides = array<i32>} : memref<200x256xf32, #tpu.memory_space<vmem>>, vector<4x241xf32>,
    %307 = vector.extract_strided_slice %268 {offsets = [0, 16], sizes = [4, 240], strides = [1, 1]} : vector<4x256xf32> to vector<4x240xf32>
    %c188 = arith.constant 188 : index
    %c0_120 = arith.constant 0 : index
    %308 = vector.load %arg9[%c188, %c0_120] : memref<200x256xf32, #tpu.memory_space<vmem>>, vector<4x240xf32>
    tpu.vector_store %arg9[%c188, %c0_120], %307 {strides = array<i32>} : memref<200x256xf32, #tpu.memory_space<vmem>>, vector<4x240xf32>,
    %309 = vector.extract_strided_slice %268 {offsets = [0, 17], sizes = [4, 239], strides = [1, 1]} : vector<4x256xf32> to vector<4x239xf32>
    %310 = vector.extract_strided_slice %20 {offsets = [0, 0], sizes = [1, 239], strides = [1, 1]} : vector<1x256xi1> to vector<1x239xi1>
    %cst_121 = arith.constant 0.000000e+00 : f32
    %311 = vector.shape_cast %310 : vector<1x239xi1> to vector<1x239xi1>
    %312 = vector.broadcast %311 : vector<1x239xi1> to vector<4x239xi1>
    %313 = vector.broadcast %cst_121 : f32 to vector<4x239xf32>
    %314 = arith.select %312, %309, %313 : vector<4x239xi1>, vector<4x239xf32>
    %c192 = arith.constant 192 : index
    %c0_122 = arith.constant 0 : index
    %315 = vector.load %arg9[%c192, %c0_122] : memref<200x256xf32, #tpu.memory_space<vmem>>, vector<4x239xf32>
    tpu.vector_store %arg9[%c192, %c0_122], %314 {strides = array<i32>} : memref<200x256xf32, #tpu.memory_space<vmem>>, vector<4x239xf32>,
    %c0_123 = arith.constant 0 : index
    %c0_124 = arith.constant 0 : index
    %c0_125 = arith.constant 0 : index
    %316 = vector.load %arg6[%c0_123, %c0_124, %c0_125] : memref<3x4x200xbf16, #tpu.memory_space<vmem>>, vector<1x4x200xbf16>
    %317 = vector.shape_cast %316 : vector<1x4x200xbf16> to vector<4x200xbf16>
    %c0_126 = arith.constant 0 : index
    %c0_127 = arith.constant 0 : index
    %318 = vector.load %arg9[%c0_126, %c0_127] : memref<200x256xf32, #tpu.memory_space<vmem>>, vector<200x256xf32>
    %319 = arith.truncf %318 : vector<200x256xf32> to vector<200x256xbf16>
    %cst_128 = arith.constant dense<0.000000e+00> : vector<4x256xf32>
    %320 = tpu.matmul %317, %319, %cst_128 {dimension_numbers = #tpu.dot_dimension_numbers<[1], [0], [0], [1], [0, 0, 1, 1], [], []>} : vector<4x200xbf16>, vector<200x256xbf16>, vector<4x256xf32> -> vector<4x256xf32>
    %c4_129 = arith.constant 4 : index
    %c0_130 = arith.constant 0 : index
    %c0_131 = arith.constant 0 : index
    %321 = vector.load %arg7[%c4_129, %c0_130, %c0_131] : memref<15x4x1xf32, #tpu.memory_space<vmem>>, vector<1x4x1xf32>
    %322 = vector.shape_cast %321 : vector<1x4x1xf32> to vector<4x1xf32>
    %323 = vector.broadcast %322 : vector<4x1xf32> to vector<4x256xf32>
    %324 = arith.addf %320, %323 : vector<4x256xf32>
    %cst_132 = arith.constant 2.000000e-01 : f32
    %325 = vector.broadcast %cst_132 : f32 to vector<4x256xf32>
    %326 = arith.mulf %324, %325 : vector<4x256xf32>
    %327 = arith.addf %326, %24 : vector<4x256xf32>
    %328 = vector.extract_strided_slice %327 {offsets = [0, 0], sizes = [4, 239], strides = [1, 1]} : vector<4x256xf32> to vector<4x239xf32>
    %329 = vector.extract_strided_slice %18 {offsets = [0, 17], sizes = [1, 239], strides = [1, 1]} : vector<1x256xi1> to vector<1x239xi1>
    %cst_133 = arith.constant 0.000000e+00 : f32
    %330 = vector.shape_cast %329 : vector<1x239xi1> to vector<1x239xi1>
    %331 = vector.broadcast %330 : vector<1x239xi1> to vector<4x239xi1>
    %332 = vector.broadcast %cst_133 : f32 to vector<4x239xf32>
    %333 = arith.select %331, %328, %332 : vector<4x239xi1>, vector<4x239xf32>
    %c0_134 = arith.constant 0 : index
    %c17_135 = arith.constant 17 : index
    %334 = vector.load %arg9[%c0_134, %c17_135] : memref<200x256xf32, #tpu.memory_space<vmem>>, vector<4x239xf32>
    tpu.vector_store %arg9[%c0_134, %c17_135], %333 {strides = array<i32>} : memref<200x256xf32, #tpu.memory_space<vmem>>, vector<4x239xf32>,
    %335 = vector.extract_strided_slice %327 {offsets = [0, 0], sizes = [4, 240], strides = [1, 1]} : vector<4x256xf32> to vector<4x240xf32>
    %c4_136 = arith.constant 4 : index
    %c16_137 = arith.constant 16 : index
    %336 = vector.load %arg9[%c4_136, %c16_137] : memref<200x256xf32, #tpu.memory_space<vmem>>, vector<4x240xf32>
    tpu.vector_store %arg9[%c4_136, %c16_137], %335 {strides = array<i32>} : memref<200x256xf32, #tpu.memory_space<vmem>>, vector<4x240xf32>,
    %337 = vector.extract_strided_slice %327 {offsets = [0, 0], sizes = [4, 241], strides = [1, 1]} : vector<4x256xf32> to vector<4x241xf32>
    %338 = vector.extract_strided_slice %20 {offsets = [0, 15], sizes = [1, 241], strides = [1, 1]} : vector<1x256xi1> to vector<1x241xi1>
    %cst_138 = arith.constant 0.000000e+00 : f32
    %339 = vector.shape_cast %338 : vector<1x241xi1> to vector<1x241xi1>
    %340 = vector.broadcast %339 : vector<1x241xi1> to vector<4x241xi1>
    %341 = vector.broadcast %cst_138 : f32 to vector<4x241xf32>
    %342 = arith.select %340, %337, %341 : vector<4x241xi1>, vector<4x241xf32>
    %c8_139 = arith.constant 8 : index
    %c15_140 = arith.constant 15 : index
    %343 = vector.load %arg9[%c8_139, %c15_140] : memref<200x256xf32, #tpu.memory_space<vmem>>, vector<4x241xf32>
    tpu.vector_store %arg9[%c8_139, %c15_140], %342 {strides = array<i32>} : memref<200x256xf32, #tpu.memory_space<vmem>>, vector<4x241xf32>,
    %344 = vector.extract_strided_slice %327 {offsets = [0, 0], sizes = [4, 255], strides = [1, 1]} : vector<4x256xf32> to vector<4x255xf32>
    %345 = vector.extract_strided_slice %18 {offsets = [0, 1], sizes = [1, 255], strides = [1, 1]} : vector<1x256xi1> to vector<1x255xi1>
    %cst_141 = arith.constant 0.000000e+00 : f32
    %346 = vector.shape_cast %345 : vector<1x255xi1> to vector<1x255xi1>
    %347 = vector.broadcast %346 : vector<1x255xi1> to vector<4x255xi1>
    %348 = vector.broadcast %cst_141 : f32 to vector<4x255xf32>
    %349 = arith.select %347, %344, %348 : vector<4x255xi1>, vector<4x255xf32>
    %c12_142 = arith.constant 12 : index
    %c1_143 = arith.constant 1 : index
    %350 = vector.load %arg9[%c12_142, %c1_143] : memref<200x256xf32, #tpu.memory_space<vmem>>, vector<4x255xf32>
    tpu.vector_store %arg9[%c12_142, %c1_143], %349 {strides = array<i32>} : memref<200x256xf32, #tpu.memory_space<vmem>>, vector<4x255xf32>,
    %c16_144 = arith.constant 16 : index
    %c0_145 = arith.constant 0 : index
    %351 = vector.load %arg9[%c16_144, %c0_145] : memref<200x256xf32, #tpu.memory_space<vmem>>, vector<4x256xf32>
    tpu.vector_store %arg9[%c16_144, %c0_145], %327 {strides = array<i32>} : memref<200x256xf32, #tpu.memory_space<vmem>>, vector<4x256xf32>,
    %352 = vector.extract_strided_slice %327 {offsets = [0, 1], sizes = [4, 255], strides = [1, 1]} : vector<4x256xf32> to vector<4x255xf32>
    %353 = vector.extract_strided_slice %20 {offsets = [0, 0], sizes = [1, 255], strides = [1, 1]} : vector<1x256xi1> to vector<1x255xi1>
    %cst_146 = arith.constant 0.000000e+00 : f32
    %354 = vector.shape_cast %353 : vector<1x255xi1> to vector<1x255xi1>
    %355 = vector.broadcast %354 : vector<1x255xi1> to vector<4x255xi1>
    %356 = vector.broadcast %cst_146 : f32 to vector<4x255xf32>
    %357 = arith.select %355, %352, %356 : vector<4x255xi1>, vector<4x255xf32>
    %c20_147 = arith.constant 20 : index
    %c0_148 = arith.constant 0 : index
    %358 = vector.load %arg9[%c20_147, %c0_148] : memref<200x256xf32, #tpu.memory_space<vmem>>, vector<4x255xf32>
    tpu.vector_store %arg9[%c20_147, %c0_148], %357 {strides = array<i32>} : memref<200x256xf32, #tpu.memory_space<vmem>>, vector<4x255xf32>,
    %359 = vector.extract_strided_slice %327 {offsets = [0, 15], sizes = [4, 241], strides = [1, 1]} : vector<4x256xf32> to vector<4x241xf32>
    %360 = vector.extract_strided_slice %18 {offsets = [0, 0], sizes = [1, 241], strides = [1, 1]} : vector<1x256xi1> to vector<1x241xi1>
    %cst_149 = arith.constant 0.000000e+00 : f32
    %361 = vector.shape_cast %360 : vector<1x241xi1> to vector<1x241xi1>
    %362 = vector.broadcast %361 : vector<1x241xi1> to vector<4x241xi1>
    %363 = vector.broadcast %cst_149 : f32 to vector<4x241xf32>
    %364 = arith.select %362, %359, %363 : vector<4x241xi1>, vector<4x241xf32>
    %c24_150 = arith.constant 24 : index
    %c0_151 = arith.constant 0 : index
    %365 = vector.load %arg9[%c24_150, %c0_151] : memref<200x256xf32, #tpu.memory_space<vmem>>, vector<4x241xf32>
    tpu.vector_store %arg9[%c24_150, %c0_151], %364 {strides = array<i32>} : memref<200x256xf32, #tpu.memory_space<vmem>>, vector<4x241xf32>,
    %366 = vector.extract_strided_slice %327 {offsets = [0, 16], sizes = [4, 240], strides = [1, 1]} : vector<4x256xf32> to vector<4x240xf32>
    %c28_152 = arith.constant 28 : index
    %c0_153 = arith.constant 0 : index
    %367 = vector.load %arg9[%c28_152, %c0_153] : memref<200x256xf32, #tpu.memory_space<vmem>>, vector<4x240xf32>
    tpu.vector_store %arg9[%c28_152, %c0_153], %366 {strides = array<i32>} : memref<200x256xf32, #tpu.memory_space<vmem>>, vector<4x240xf32>,
    %368 = vector.extract_strided_slice %327 {offsets = [0, 17], sizes = [4, 239], strides = [1, 1]} : vector<4x256xf32> to vector<4x239xf32>
    %369 = vector.extract_strided_slice %20 {offsets = [0, 0], sizes = [1, 239], strides = [1, 1]} : vector<1x256xi1> to vector<1x239xi1>
    %cst_154 = arith.constant 0.000000e+00 : f32
    %370 = vector.shape_cast %369 : vector<1x239xi1> to vector<1x239xi1>
    %371 = vector.broadcast %370 : vector<1x239xi1> to vector<4x239xi1>
    %372 = vector.broadcast %cst_154 : f32 to vector<4x239xf32>
    %373 = arith.select %371, %368, %372 : vector<4x239xi1>, vector<4x239xf32>
    %c32_155 = arith.constant 32 : index
    %c0_156 = arith.constant 0 : index
    %374 = vector.load %arg9[%c32_155, %c0_156] : memref<200x256xf32, #tpu.memory_space<vmem>>, vector<4x239xf32>
    tpu.vector_store %arg9[%c32_155, %c0_156], %373 {strides = array<i32>} : memref<200x256xf32, #tpu.memory_space<vmem>>, vector<4x239xf32>,
    %c1_157 = arith.constant 1 : index
    %c0_158 = arith.constant 0 : index
    %c0_159 = arith.constant 0 : index
    %375 = vector.load %arg2[%c1_157, %c0_158, %c0_159] : memref<3x4x40xbf16, #tpu.memory_space<vmem>>, vector<1x4x40xbf16>
    %376 = vector.shape_cast %375 : vector<1x4x40xbf16> to vector<4x40xbf16>
    %c0_160 = arith.constant 0 : index
    %c0_161 = arith.constant 0 : index
    %377 = vector.load %arg9[%c0_160, %c0_161] : memref<200x256xf32, #tpu.memory_space<vmem>>, vector<40x256xf32>
    %378 = arith.truncf %377 : vector<40x256xf32> to vector<40x256xbf16>
    %cst_162 = arith.constant dense<0.000000e+00> : vector<4x256xf32>
    %379 = tpu.matmul %376, %378, %cst_162 {dimension_numbers = #tpu.dot_dimension_numbers<[1], [0], [0], [1], [0, 0, 1, 1], [], []>} : vector<4x40xbf16>, vector<40x256xbf16>, vector<4x256xf32> -> vector<4x256xf32>
    %c5 = arith.constant 5 : index
    %c0_163 = arith.constant 0 : index
    %c0_164 = arith.constant 0 : index
    %380 = vector.load %arg7[%c5, %c0_163, %c0_164] : memref<15x4x1xf32, #tpu.memory_space<vmem>>, vector<1x4x1xf32>
    %381 = vector.shape_cast %380 : vector<1x4x1xf32> to vector<4x1xf32>
    %382 = vector.broadcast %381 : vector<4x1xf32> to vector<4x256xf32>
    %383 = arith.addf %379, %382 : vector<4x256xf32>
    %cst_165 = arith.constant 0.000000e+00 : f32
    %384 = vector.broadcast %cst_165 : f32 to vector<4x256xf32>
    %385 = arith.cmpf oge, %383, %384 : vector<4x256xf32>
    %cst_166 = arith.constant 0.00999999977 : f32
    %386 = vector.broadcast %cst_166 : f32 to vector<4x256xf32>
    %387 = arith.mulf %386, %383 : vector<4x256xf32>
    %388 = arith.select %385, %383, %387 : vector<4x256xi1>, vector<4x256xf32>
    %389 = vector.extract_strided_slice %388 {offsets = [0, 0], sizes = [4, 239], strides = [1, 1]} : vector<4x256xf32> to vector<4x239xf32>
    %390 = vector.extract_strided_slice %18 {offsets = [0, 17], sizes = [1, 239], strides = [1, 1]} : vector<1x256xi1> to vector<1x239xi1>
    %cst_167 = arith.constant 0.000000e+00 : f32
    %391 = vector.shape_cast %390 : vector<1x239xi1> to vector<1x239xi1>
    %392 = vector.broadcast %391 : vector<1x239xi1> to vector<4x239xi1>
    %393 = vector.broadcast %cst_167 : f32 to vector<4x239xf32>
    %394 = arith.select %392, %389, %393 : vector<4x239xi1>, vector<4x239xf32>
    %c40_168 = arith.constant 40 : index
    %c17_169 = arith.constant 17 : index
    %395 = vector.load %arg9[%c40_168, %c17_169] : memref<200x256xf32, #tpu.memory_space<vmem>>, vector<4x239xf32>
    tpu.vector_store %arg9[%c40_168, %c17_169], %394 {strides = array<i32>} : memref<200x256xf32, #tpu.memory_space<vmem>>, vector<4x239xf32>,
    %396 = vector.extract_strided_slice %388 {offsets = [0, 0], sizes = [4, 240], strides = [1, 1]} : vector<4x256xf32> to vector<4x240xf32>
    %c44_170 = arith.constant 44 : index
    %c16_171 = arith.constant 16 : index
    %397 = vector.load %arg9[%c44_170, %c16_171] : memref<200x256xf32, #tpu.memory_space<vmem>>, vector<4x240xf32>
    tpu.vector_store %arg9[%c44_170, %c16_171], %396 {strides = array<i32>} : memref<200x256xf32, #tpu.memory_space<vmem>>, vector<4x240xf32>,
    %398 = vector.extract_strided_slice %388 {offsets = [0, 0], sizes = [4, 241], strides = [1, 1]} : vector<4x256xf32> to vector<4x241xf32>
    %399 = vector.extract_strided_slice %20 {offsets = [0, 15], sizes = [1, 241], strides = [1, 1]} : vector<1x256xi1> to vector<1x241xi1>
    %cst_172 = arith.constant 0.000000e+00 : f32
    %400 = vector.shape_cast %399 : vector<1x241xi1> to vector<1x241xi1>
    %401 = vector.broadcast %400 : vector<1x241xi1> to vector<4x241xi1>
    %402 = vector.broadcast %cst_172 : f32 to vector<4x241xf32>
    %403 = arith.select %401, %398, %402 : vector<4x241xi1>, vector<4x241xf32>
    %c48_173 = arith.constant 48 : index
    %c15_174 = arith.constant 15 : index
    %404 = vector.load %arg9[%c48_173, %c15_174] : memref<200x256xf32, #tpu.memory_space<vmem>>, vector<4x241xf32>
    tpu.vector_store %arg9[%c48_173, %c15_174], %403 {strides = array<i32>} : memref<200x256xf32, #tpu.memory_space<vmem>>, vector<4x241xf32>,
    %405 = vector.extract_strided_slice %388 {offsets = [0, 0], sizes = [4, 255], strides = [1, 1]} : vector<4x256xf32> to vector<4x255xf32>
    %406 = vector.extract_strided_slice %18 {offsets = [0, 1], sizes = [1, 255], strides = [1, 1]} : vector<1x256xi1> to vector<1x255xi1>
    %cst_175 = arith.constant 0.000000e+00 : f32
    %407 = vector.shape_cast %406 : vector<1x255xi1> to vector<1x255xi1>
    %408 = vector.broadcast %407 : vector<1x255xi1> to vector<4x255xi1>
    %409 = vector.broadcast %cst_175 : f32 to vector<4x255xf32>
    %410 = arith.select %408, %405, %409 : vector<4x255xi1>, vector<4x255xf32>
    %c52_176 = arith.constant 52 : index
    %c1_177 = arith.constant 1 : index
    %411 = vector.load %arg9[%c52_176, %c1_177] : memref<200x256xf32, #tpu.memory_space<vmem>>, vector<4x255xf32>
    tpu.vector_store %arg9[%c52_176, %c1_177], %410 {strides = array<i32>} : memref<200x256xf32, #tpu.memory_space<vmem>>, vector<4x255xf32>,
    %c56_178 = arith.constant 56 : index
    %c0_179 = arith.constant 0 : index
    %412 = vector.load %arg9[%c56_178, %c0_179] : memref<200x256xf32, #tpu.memory_space<vmem>>, vector<4x256xf32>
    tpu.vector_store %arg9[%c56_178, %c0_179], %388 {strides = array<i32>} : memref<200x256xf32, #tpu.memory_space<vmem>>, vector<4x256xf32>,
    %413 = vector.extract_strided_slice %388 {offsets = [0, 1], sizes = [4, 255], strides = [1, 1]} : vector<4x256xf32> to vector<4x255xf32>
    %414 = vector.extract_strided_slice %20 {offsets = [0, 0], sizes = [1, 255], strides = [1, 1]} : vector<1x256xi1> to vector<1x255xi1>
    %cst_180 = arith.constant 0.000000e+00 : f32
    %415 = vector.shape_cast %414 : vector<1x255xi1> to vector<1x255xi1>
    %416 = vector.broadcast %415 : vector<1x255xi1> to vector<4x255xi1>
    %417 = vector.broadcast %cst_180 : f32 to vector<4x255xf32>
    %418 = arith.select %416, %413, %417 : vector<4x255xi1>, vector<4x255xf32>
    %c60_181 = arith.constant 60 : index
    %c0_182 = arith.constant 0 : index
    %419 = vector.load %arg9[%c60_181, %c0_182] : memref<200x256xf32, #tpu.memory_space<vmem>>, vector<4x255xf32>
    tpu.vector_store %arg9[%c60_181, %c0_182], %418 {strides = array<i32>} : memref<200x256xf32, #tpu.memory_space<vmem>>, vector<4x255xf32>,
    %420 = vector.extract_strided_slice %388 {offsets = [0, 15], sizes = [4, 241], strides = [1, 1]} : vector<4x256xf32> to vector<4x241xf32>
    %421 = vector.extract_strided_slice %18 {offsets = [0, 0], sizes = [1, 241], strides = [1, 1]} : vector<1x256xi1> to vector<1x241xi1>
    %cst_183 = arith.constant 0.000000e+00 : f32
    %422 = vector.shape_cast %421 : vector<1x241xi1> to vector<1x241xi1>
    %423 = vector.broadcast %422 : vector<1x241xi1> to vector<4x241xi1>
    %424 = vector.broadcast %cst_183 : f32 to vector<4x241xf32>
    %425 = arith.select %423, %420, %424 : vector<4x241xi1>, vector<4x241xf32>
    %c64_184 = arith.constant 64 : index
    %c0_185 = arith.constant 0 : index
    %426 = vector.load %arg9[%c64_184, %c0_185] : memref<200x256xf32, #tpu.memory_space<vmem>>, vector<4x241xf32>
    tpu.vector_store %arg9[%c64_184, %c0_185], %425 {strides = array<i32>} : memref<200x256xf32, #tpu.memory_space<vmem>>, vector<4x241xf32>,
    %427 = vector.extract_strided_slice %388 {offsets = [0, 16], sizes = [4, 240], strides = [1, 1]} : vector<4x256xf32> to vector<4x240xf32>
    %c68_186 = arith.constant 68 : index
    %c0_187 = arith.constant 0 : index
    %428 = vector.load %arg9[%c68_186, %c0_187] : memref<200x256xf32, #tpu.memory_space<vmem>>, vector<4x240xf32>
    tpu.vector_store %arg9[%c68_186, %c0_187], %427 {strides = array<i32>} : memref<200x256xf32, #tpu.memory_space<vmem>>, vector<4x240xf32>,
    %429 = vector.extract_strided_slice %388 {offsets = [0, 17], sizes = [4, 239], strides = [1, 1]} : vector<4x256xf32> to vector<4x239xf32>
    %430 = vector.extract_strided_slice %20 {offsets = [0, 0], sizes = [1, 239], strides = [1, 1]} : vector<1x256xi1> to vector<1x239xi1>
    %cst_188 = arith.constant 0.000000e+00 : f32
    %431 = vector.shape_cast %430 : vector<1x239xi1> to vector<1x239xi1>
    %432 = vector.broadcast %431 : vector<1x239xi1> to vector<4x239xi1>
    %433 = vector.broadcast %cst_188 : f32 to vector<4x239xf32>
    %434 = arith.select %432, %429, %433 : vector<4x239xi1>, vector<4x239xf32>
    %c72_189 = arith.constant 72 : index
    %c0_190 = arith.constant 0 : index
    %435 = vector.load %arg9[%c72_189, %c0_190] : memref<200x256xf32, #tpu.memory_space<vmem>>, vector<4x239xf32>
    tpu.vector_store %arg9[%c72_189, %c0_190], %434 {strides = array<i32>} : memref<200x256xf32, #tpu.memory_space<vmem>>, vector<4x239xf32>,
    %c1_191 = arith.constant 1 : index
    %c0_192 = arith.constant 0 : index
    %c0_193 = arith.constant 0 : index
    %436 = vector.load %arg3[%c1_191, %c0_192, %c0_193] : memref<3x4x80xbf16, #tpu.memory_space<vmem>>, vector<1x4x80xbf16>
    %437 = vector.shape_cast %436 : vector<1x4x80xbf16> to vector<4x80xbf16>
    %c0_194 = arith.constant 0 : index
    %c0_195 = arith.constant 0 : index
    %438 = vector.load %arg9[%c0_194, %c0_195] : memref<200x256xf32, #tpu.memory_space<vmem>>, vector<80x256xf32>
    %439 = arith.truncf %438 : vector<80x256xf32> to vector<80x256xbf16>
    %cst_196 = arith.constant dense<0.000000e+00> : vector<4x256xf32>
    %440 = tpu.matmul %437, %439, %cst_196 {dimension_numbers = #tpu.dot_dimension_numbers<[1], [0], [0], [1], [0, 0, 1, 1], [], []>} : vector<4x80xbf16>, vector<80x256xbf16>, vector<4x256xf32> -> vector<4x256xf32>
    %c6 = arith.constant 6 : index
    %c0_197 = arith.constant 0 : index
    %c0_198 = arith.constant 0 : index
    %441 = vector.load %arg7[%c6, %c0_197, %c0_198] : memref<15x4x1xf32, #tpu.memory_space<vmem>>, vector<1x4x1xf32>
    %442 = vector.shape_cast %441 : vector<1x4x1xf32> to vector<4x1xf32>
    %443 = vector.broadcast %442 : vector<4x1xf32> to vector<4x256xf32>
    %444 = arith.addf %440, %443 : vector<4x256xf32>
    %cst_199 = arith.constant 0.000000e+00 : f32
    %445 = vector.broadcast %cst_199 : f32 to vector<4x256xf32>
    %446 = arith.cmpf oge, %444, %445 : vector<4x256xf32>
    %cst_200 = arith.constant 0.00999999977 : f32
    %447 = vector.broadcast %cst_200 : f32 to vector<4x256xf32>
    %448 = arith.mulf %447, %444 : vector<4x256xf32>
    %449 = arith.select %446, %444, %448 : vector<4x256xi1>, vector<4x256xf32>
    %450 = vector.extract_strided_slice %449 {offsets = [0, 0], sizes = [4, 239], strides = [1, 1]} : vector<4x256xf32> to vector<4x239xf32>
    %451 = vector.extract_strided_slice %18 {offsets = [0, 17], sizes = [1, 239], strides = [1, 1]} : vector<1x256xi1> to vector<1x239xi1>
    %cst_201 = arith.constant 0.000000e+00 : f32
    %452 = vector.shape_cast %451 : vector<1x239xi1> to vector<1x239xi1>
    %453 = vector.broadcast %452 : vector<1x239xi1> to vector<4x239xi1>
    %454 = vector.broadcast %cst_201 : f32 to vector<4x239xf32>
    %455 = arith.select %453, %450, %454 : vector<4x239xi1>, vector<4x239xf32>
    %c80_202 = arith.constant 80 : index
    %c17_203 = arith.constant 17 : index
    %456 = vector.load %arg9[%c80_202, %c17_203] : memref<200x256xf32, #tpu.memory_space<vmem>>, vector<4x239xf32>
    tpu.vector_store %arg9[%c80_202, %c17_203], %455 {strides = array<i32>} : memref<200x256xf32, #tpu.memory_space<vmem>>, vector<4x239xf32>,
    %457 = vector.extract_strided_slice %449 {offsets = [0, 0], sizes = [4, 240], strides = [1, 1]} : vector<4x256xf32> to vector<4x240xf32>
    %c84_204 = arith.constant 84 : index
    %c16_205 = arith.constant 16 : index
    %458 = vector.load %arg9[%c84_204, %c16_205] : memref<200x256xf32, #tpu.memory_space<vmem>>, vector<4x240xf32>
    tpu.vector_store %arg9[%c84_204, %c16_205], %457 {strides = array<i32>} : memref<200x256xf32, #tpu.memory_space<vmem>>, vector<4x240xf32>,
    %459 = vector.extract_strided_slice %449 {offsets = [0, 0], sizes = [4, 241], strides = [1, 1]} : vector<4x256xf32> to vector<4x241xf32>
    %460 = vector.extract_strided_slice %20 {offsets = [0, 15], sizes = [1, 241], strides = [1, 1]} : vector<1x256xi1> to vector<1x241xi1>
    %cst_206 = arith.constant 0.000000e+00 : f32
    %461 = vector.shape_cast %460 : vector<1x241xi1> to vector<1x241xi1>
    %462 = vector.broadcast %461 : vector<1x241xi1> to vector<4x241xi1>
    %463 = vector.broadcast %cst_206 : f32 to vector<4x241xf32>
    %464 = arith.select %462, %459, %463 : vector<4x241xi1>, vector<4x241xf32>
    %c88_207 = arith.constant 88 : index
    %c15_208 = arith.constant 15 : index
    %465 = vector.load %arg9[%c88_207, %c15_208] : memref<200x256xf32, #tpu.memory_space<vmem>>, vector<4x241xf32>
    tpu.vector_store %arg9[%c88_207, %c15_208], %464 {strides = array<i32>} : memref<200x256xf32, #tpu.memory_space<vmem>>, vector<4x241xf32>,
    %466 = vector.extract_strided_slice %449 {offsets = [0, 0], sizes = [4, 255], strides = [1, 1]} : vector<4x256xf32> to vector<4x255xf32>
    %467 = vector.extract_strided_slice %18 {offsets = [0, 1], sizes = [1, 255], strides = [1, 1]} : vector<1x256xi1> to vector<1x255xi1>
    %cst_209 = arith.constant 0.000000e+00 : f32
    %468 = vector.shape_cast %467 : vector<1x255xi1> to vector<1x255xi1>
    %469 = vector.broadcast %468 : vector<1x255xi1> to vector<4x255xi1>
    %470 = vector.broadcast %cst_209 : f32 to vector<4x255xf32>
    %471 = arith.select %469, %466, %470 : vector<4x255xi1>, vector<4x255xf32>
    %c92_210 = arith.constant 92 : index
    %c1_211 = arith.constant 1 : index
    %472 = vector.load %arg9[%c92_210, %c1_211] : memref<200x256xf32, #tpu.memory_space<vmem>>, vector<4x255xf32>
    tpu.vector_store %arg9[%c92_210, %c1_211], %471 {strides = array<i32>} : memref<200x256xf32, #tpu.memory_space<vmem>>, vector<4x255xf32>,
    %c96_212 = arith.constant 96 : index
    %c0_213 = arith.constant 0 : index
    %473 = vector.load %arg9[%c96_212, %c0_213] : memref<200x256xf32, #tpu.memory_space<vmem>>, vector<4x256xf32>
    tpu.vector_store %arg9[%c96_212, %c0_213], %449 {strides = array<i32>} : memref<200x256xf32, #tpu.memory_space<vmem>>, vector<4x256xf32>,
    %474 = vector.extract_strided_slice %449 {offsets = [0, 1], sizes = [4, 255], strides = [1, 1]} : vector<4x256xf32> to vector<4x255xf32>
    %475 = vector.extract_strided_slice %20 {offsets = [0, 0], sizes = [1, 255], strides = [1, 1]} : vector<1x256xi1> to vector<1x255xi1>
    %cst_214 = arith.constant 0.000000e+00 : f32
    %476 = vector.shape_cast %475 : vector<1x255xi1> to vector<1x255xi1>
    %477 = vector.broadcast %476 : vector<1x255xi1> to vector<4x255xi1>
    %478 = vector.broadcast %cst_214 : f32 to vector<4x255xf32>
    %479 = arith.select %477, %474, %478 : vector<4x255xi1>, vector<4x255xf32>
    %c100_215 = arith.constant 100 : index
    %c0_216 = arith.constant 0 : index
    %480 = vector.load %arg9[%c100_215, %c0_216] : memref<200x256xf32, #tpu.memory_space<vmem>>, vector<4x255xf32>
    tpu.vector_store %arg9[%c100_215, %c0_216], %479 {strides = array<i32>} : memref<200x256xf32, #tpu.memory_space<vmem>>, vector<4x255xf32>,
    %481 = vector.extract_strided_slice %449 {offsets = [0, 15], sizes = [4, 241], strides = [1, 1]} : vector<4x256xf32> to vector<4x241xf32>
    %482 = vector.extract_strided_slice %18 {offsets = [0, 0], sizes = [1, 241], strides = [1, 1]} : vector<1x256xi1> to vector<1x241xi1>
    %cst_217 = arith.constant 0.000000e+00 : f32
    %483 = vector.shape_cast %482 : vector<1x241xi1> to vector<1x241xi1>
    %484 = vector.broadcast %483 : vector<1x241xi1> to vector<4x241xi1>
    %485 = vector.broadcast %cst_217 : f32 to vector<4x241xf32>
    %486 = arith.select %484, %481, %485 : vector<4x241xi1>, vector<4x241xf32>
    %c104_218 = arith.constant 104 : index
    %c0_219 = arith.constant 0 : index
    %487 = vector.load %arg9[%c104_218, %c0_219] : memref<200x256xf32, #tpu.memory_space<vmem>>, vector<4x241xf32>
    tpu.vector_store %arg9[%c104_218, %c0_219], %486 {strides = array<i32>} : memref<200x256xf32, #tpu.memory_space<vmem>>, vector<4x241xf32>,
    %488 = vector.extract_strided_slice %449 {offsets = [0, 16], sizes = [4, 240], strides = [1, 1]} : vector<4x256xf32> to vector<4x240xf32>
    %c108_220 = arith.constant 108 : index
    %c0_221 = arith.constant 0 : index
    %489 = vector.load %arg9[%c108_220, %c0_221] : memref<200x256xf32, #tpu.memory_space<vmem>>, vector<4x240xf32>
    tpu.vector_store %arg9[%c108_220, %c0_221], %488 {strides = array<i32>} : memref<200x256xf32, #tpu.memory_space<vmem>>, vector<4x240xf32>,
    %490 = vector.extract_strided_slice %449 {offsets = [0, 17], sizes = [4, 239], strides = [1, 1]} : vector<4x256xf32> to vector<4x239xf32>
    %491 = vector.extract_strided_slice %20 {offsets = [0, 0], sizes = [1, 239], strides = [1, 1]} : vector<1x256xi1> to vector<1x239xi1>
    %cst_222 = arith.constant 0.000000e+00 : f32
    %492 = vector.shape_cast %491 : vector<1x239xi1> to vector<1x239xi1>
    %493 = vector.broadcast %492 : vector<1x239xi1> to vector<4x239xi1>
    %494 = vector.broadcast %cst_222 : f32 to vector<4x239xf32>
    %495 = arith.select %493, %490, %494 : vector<4x239xi1>, vector<4x239xf32>
    %c112_223 = arith.constant 112 : index
    %c0_224 = arith.constant 0 : index
    %496 = vector.load %arg9[%c112_223, %c0_224] : memref<200x256xf32, #tpu.memory_space<vmem>>, vector<4x239xf32>
    tpu.vector_store %arg9[%c112_223, %c0_224], %495 {strides = array<i32>} : memref<200x256xf32, #tpu.memory_space<vmem>>, vector<4x239xf32>,
    %c1_225 = arith.constant 1 : index
    %c0_226 = arith.constant 0 : index
    %c0_227 = arith.constant 0 : index
    %497 = vector.load %arg4[%c1_225, %c0_226, %c0_227] : memref<3x4x120xbf16, #tpu.memory_space<vmem>>, vector<1x4x120xbf16>
    %498 = vector.shape_cast %497 : vector<1x4x120xbf16> to vector<4x120xbf16>
    %c0_228 = arith.constant 0 : index
    %c0_229 = arith.constant 0 : index
    %499 = vector.load %arg9[%c0_228, %c0_229] : memref<200x256xf32, #tpu.memory_space<vmem>>, vector<120x256xf32>
    %500 = arith.truncf %499 : vector<120x256xf32> to vector<120x256xbf16>
    %cst_230 = arith.constant dense<0.000000e+00> : vector<4x256xf32>
    %501 = tpu.matmul %498, %500, %cst_230 {dimension_numbers = #tpu.dot_dimension_numbers<[1], [0], [0], [1], [0, 0, 1, 1], [], []>} : vector<4x120xbf16>, vector<120x256xbf16>, vector<4x256xf32> -> vector<4x256xf32>
    %c7 = arith.constant 7 : index
    %c0_231 = arith.constant 0 : index
    %c0_232 = arith.constant 0 : index
    %502 = vector.load %arg7[%c7, %c0_231, %c0_232] : memref<15x4x1xf32, #tpu.memory_space<vmem>>, vector<1x4x1xf32>
    %503 = vector.shape_cast %502 : vector<1x4x1xf32> to vector<4x1xf32>
    %504 = vector.broadcast %503 : vector<4x1xf32> to vector<4x256xf32>
    %505 = arith.addf %501, %504 : vector<4x256xf32>
    %cst_233 = arith.constant 0.000000e+00 : f32
    %506 = vector.broadcast %cst_233 : f32 to vector<4x256xf32>
    %507 = arith.cmpf oge, %505, %506 : vector<4x256xf32>
    %cst_234 = arith.constant 0.00999999977 : f32
    %508 = vector.broadcast %cst_234 : f32 to vector<4x256xf32>
    %509 = arith.mulf %508, %505 : vector<4x256xf32>
    %510 = arith.select %507, %505, %509 : vector<4x256xi1>, vector<4x256xf32>
    %511 = vector.extract_strided_slice %510 {offsets = [0, 0], sizes = [4, 239], strides = [1, 1]} : vector<4x256xf32> to vector<4x239xf32>
    %512 = vector.extract_strided_slice %18 {offsets = [0, 17], sizes = [1, 239], strides = [1, 1]} : vector<1x256xi1> to vector<1x239xi1>
    %cst_235 = arith.constant 0.000000e+00 : f32
    %513 = vector.shape_cast %512 : vector<1x239xi1> to vector<1x239xi1>
    %514 = vector.broadcast %513 : vector<1x239xi1> to vector<4x239xi1>
    %515 = vector.broadcast %cst_235 : f32 to vector<4x239xf32>
    %516 = arith.select %514, %511, %515 : vector<4x239xi1>, vector<4x239xf32>
    %c120_236 = arith.constant 120 : index
    %c17_237 = arith.constant 17 : index
    %517 = vector.load %arg9[%c120_236, %c17_237] : memref<200x256xf32, #tpu.memory_space<vmem>>, vector<4x239xf32>
    tpu.vector_store %arg9[%c120_236, %c17_237], %516 {strides = array<i32>} : memref<200x256xf32, #tpu.memory_space<vmem>>, vector<4x239xf32>,
    %518 = vector.extract_strided_slice %510 {offsets = [0, 0], sizes = [4, 240], strides = [1, 1]} : vector<4x256xf32> to vector<4x240xf32>
    %c124_238 = arith.constant 124 : index
    %c16_239 = arith.constant 16 : index
    %519 = vector.load %arg9[%c124_238, %c16_239] : memref<200x256xf32, #tpu.memory_space<vmem>>, vector<4x240xf32>
    tpu.vector_store %arg9[%c124_238, %c16_239], %518 {strides = array<i32>} : memref<200x256xf32, #tpu.memory_space<vmem>>, vector<4x240xf32>,
    %520 = vector.extract_strided_slice %510 {offsets = [0, 0], sizes = [4, 241], strides = [1, 1]} : vector<4x256xf32> to vector<4x241xf32>
    %521 = vector.extract_strided_slice %20 {offsets = [0, 15], sizes = [1, 241], strides = [1, 1]} : vector<1x256xi1> to vector<1x241xi1>
    %cst_240 = arith.constant 0.000000e+00 : f32
    %522 = vector.shape_cast %521 : vector<1x241xi1> to vector<1x241xi1>
    %523 = vector.broadcast %522 : vector<1x241xi1> to vector<4x241xi1>
    %524 = vector.broadcast %cst_240 : f32 to vector<4x241xf32>
    %525 = arith.select %523, %520, %524 : vector<4x241xi1>, vector<4x241xf32>
    %c128_241 = arith.constant 128 : index
    %c15_242 = arith.constant 15 : index
    %526 = vector.load %arg9[%c128_241, %c15_242] : memref<200x256xf32, #tpu.memory_space<vmem>>, vector<4x241xf32>
    tpu.vector_store %arg9[%c128_241, %c15_242], %525 {strides = array<i32>} : memref<200x256xf32, #tpu.memory_space<vmem>>, vector<4x241xf32>,
    %527 = vector.extract_strided_slice %510 {offsets = [0, 0], sizes = [4, 255], strides = [1, 1]} : vector<4x256xf32> to vector<4x255xf32>
    %528 = vector.extract_strided_slice %18 {offsets = [0, 1], sizes = [1, 255], strides = [1, 1]} : vector<1x256xi1> to vector<1x255xi1>
    %cst_243 = arith.constant 0.000000e+00 : f32
    %529 = vector.shape_cast %528 : vector<1x255xi1> to vector<1x255xi1>
    %530 = vector.broadcast %529 : vector<1x255xi1> to vector<4x255xi1>
    %531 = vector.broadcast %cst_243 : f32 to vector<4x255xf32>
    %532 = arith.select %530, %527, %531 : vector<4x255xi1>, vector<4x255xf32>
    %c132_244 = arith.constant 132 : index
    %c1_245 = arith.constant 1 : index
    %533 = vector.load %arg9[%c132_244, %c1_245] : memref<200x256xf32, #tpu.memory_space<vmem>>, vector<4x255xf32>
    tpu.vector_store %arg9[%c132_244, %c1_245], %532 {strides = array<i32>} : memref<200x256xf32, #tpu.memory_space<vmem>>, vector<4x255xf32>,
    %c136_246 = arith.constant 136 : index
    %c0_247 = arith.constant 0 : index
    %534 = vector.load %arg9[%c136_246, %c0_247] : memref<200x256xf32, #tpu.memory_space<vmem>>, vector<4x256xf32>
    tpu.vector_store %arg9[%c136_246, %c0_247], %510 {strides = array<i32>} : memref<200x256xf32, #tpu.memory_space<vmem>>, vector<4x256xf32>,
    %535 = vector.extract_strided_slice %510 {offsets = [0, 1], sizes = [4, 255], strides = [1, 1]} : vector<4x256xf32> to vector<4x255xf32>
    %536 = vector.extract_strided_slice %20 {offsets = [0, 0], sizes = [1, 255], strides = [1, 1]} : vector<1x256xi1> to vector<1x255xi1>
    %cst_248 = arith.constant 0.000000e+00 : f32
    %537 = vector.shape_cast %536 : vector<1x255xi1> to vector<1x255xi1>
    %538 = vector.broadcast %537 : vector<1x255xi1> to vector<4x255xi1>
    %539 = vector.broadcast %cst_248 : f32 to vector<4x255xf32>
    %540 = arith.select %538, %535, %539 : vector<4x255xi1>, vector<4x255xf32>
    %c140_249 = arith.constant 140 : index
    %c0_250 = arith.constant 0 : index
    %541 = vector.load %arg9[%c140_249, %c0_250] : memref<200x256xf32, #tpu.memory_space<vmem>>, vector<4x255xf32>
    tpu.vector_store %arg9[%c140_249, %c0_250], %540 {strides = array<i32>} : memref<200x256xf32, #tpu.memory_space<vmem>>, vector<4x255xf32>,
    %542 = vector.extract_strided_slice %510 {offsets = [0, 15], sizes = [4, 241], strides = [1, 1]} : vector<4x256xf32> to vector<4x241xf32>
    %543 = vector.extract_strided_slice %18 {offsets = [0, 0], sizes = [1, 241], strides = [1, 1]} : vector<1x256xi1> to vector<1x241xi1>
    %cst_251 = arith.constant 0.000000e+00 : f32
    %544 = vector.shape_cast %543 : vector<1x241xi1> to vector<1x241xi1>
    %545 = vector.broadcast %544 : vector<1x241xi1> to vector<4x241xi1>
    %546 = vector.broadcast %cst_251 : f32 to vector<4x241xf32>
    %547 = arith.select %545, %542, %546 : vector<4x241xi1>, vector<4x241xf32>
    %c144_252 = arith.constant 144 : index
    %c0_253 = arith.constant 0 : index
    %548 = vector.load %arg9[%c144_252, %c0_253] : memref<200x256xf32, #tpu.memory_space<vmem>>, vector<4x241xf32>
    tpu.vector_store %arg9[%c144_252, %c0_253], %547 {strides = array<i32>} : memref<200x256xf32, #tpu.memory_space<vmem>>, vector<4x241xf32>,
    %549 = vector.extract_strided_slice %510 {offsets = [0, 16], sizes = [4, 240], strides = [1, 1]} : vector<4x256xf32> to vector<4x240xf32>
    %c148_254 = arith.constant 148 : index
    %c0_255 = arith.constant 0 : index
    %550 = vector.load %arg9[%c148_254, %c0_255] : memref<200x256xf32, #tpu.memory_space<vmem>>, vector<4x240xf32>
    tpu.vector_store %arg9[%c148_254, %c0_255], %549 {strides = array<i32>} : memref<200x256xf32, #tpu.memory_space<vmem>>, vector<4x240xf32>,
    %551 = vector.extract_strided_slice %510 {offsets = [0, 17], sizes = [4, 239], strides = [1, 1]} : vector<4x256xf32> to vector<4x239xf32>
    %552 = vector.extract_strided_slice %20 {offsets = [0, 0], sizes = [1, 239], strides = [1, 1]} : vector<1x256xi1> to vector<1x239xi1>
    %cst_256 = arith.constant 0.000000e+00 : f32
    %553 = vector.shape_cast %552 : vector<1x239xi1> to vector<1x239xi1>
    %554 = vector.broadcast %553 : vector<1x239xi1> to vector<4x239xi1>
    %555 = vector.broadcast %cst_256 : f32 to vector<4x239xf32>
    %556 = arith.select %554, %551, %555 : vector<4x239xi1>, vector<4x239xf32>
    %c152_257 = arith.constant 152 : index
    %c0_258 = arith.constant 0 : index
    %557 = vector.load %arg9[%c152_257, %c0_258] : memref<200x256xf32, #tpu.memory_space<vmem>>, vector<4x239xf32>
    tpu.vector_store %arg9[%c152_257, %c0_258], %556 {strides = array<i32>} : memref<200x256xf32, #tpu.memory_space<vmem>>, vector<4x239xf32>,
    %c1_259 = arith.constant 1 : index
    %c0_260 = arith.constant 0 : index
    %c0_261 = arith.constant 0 : index
    %558 = vector.load %arg5[%c1_259, %c0_260, %c0_261] : memref<3x4x160xbf16, #tpu.memory_space<vmem>>, vector<1x4x160xbf16>
    %559 = vector.shape_cast %558 : vector<1x4x160xbf16> to vector<4x160xbf16>
    %c0_262 = arith.constant 0 : index
    %c0_263 = arith.constant 0 : index
    %560 = vector.load %arg9[%c0_262, %c0_263] : memref<200x256xf32, #tpu.memory_space<vmem>>, vector<160x256xf32>
    %561 = arith.truncf %560 : vector<160x256xf32> to vector<160x256xbf16>
    %cst_264 = arith.constant dense<0.000000e+00> : vector<4x256xf32>
    %562 = tpu.matmul %559, %561, %cst_264 {dimension_numbers = #tpu.dot_dimension_numbers<[1], [0], [0], [1], [0, 0, 1, 1], [], []>} : vector<4x160xbf16>, vector<160x256xbf16>, vector<4x256xf32> -> vector<4x256xf32>
    %c8_265 = arith.constant 8 : index
    %c0_266 = arith.constant 0 : index
    %c0_267 = arith.constant 0 : index
    %563 = vector.load %arg7[%c8_265, %c0_266, %c0_267] : memref<15x4x1xf32, #tpu.memory_space<vmem>>, vector<1x4x1xf32>
    %564 = vector.shape_cast %563 : vector<1x4x1xf32> to vector<4x1xf32>
    %565 = vector.broadcast %564 : vector<4x1xf32> to vector<4x256xf32>
    %566 = arith.addf %562, %565 : vector<4x256xf32>
    %cst_268 = arith.constant 0.000000e+00 : f32
    %567 = vector.broadcast %cst_268 : f32 to vector<4x256xf32>
    %568 = arith.cmpf oge, %566, %567 : vector<4x256xf32>
    %cst_269 = arith.constant 0.00999999977 : f32
    %569 = vector.broadcast %cst_269 : f32 to vector<4x256xf32>
    %570 = arith.mulf %569, %566 : vector<4x256xf32>
    %571 = arith.select %568, %566, %570 : vector<4x256xi1>, vector<4x256xf32>
    %572 = vector.extract_strided_slice %571 {offsets = [0, 0], sizes = [4, 239], strides = [1, 1]} : vector<4x256xf32> to vector<4x239xf32>
    %573 = vector.extract_strided_slice %18 {offsets = [0, 17], sizes = [1, 239], strides = [1, 1]} : vector<1x256xi1> to vector<1x239xi1>
    %cst_270 = arith.constant 0.000000e+00 : f32
    %574 = vector.shape_cast %573 : vector<1x239xi1> to vector<1x239xi1>
    %575 = vector.broadcast %574 : vector<1x239xi1> to vector<4x239xi1>
    %576 = vector.broadcast %cst_270 : f32 to vector<4x239xf32>
    %577 = arith.select %575, %572, %576 : vector<4x239xi1>, vector<4x239xf32>
    %c160_271 = arith.constant 160 : index
    %c17_272 = arith.constant 17 : index
    %578 = vector.load %arg9[%c160_271, %c17_272] : memref<200x256xf32, #tpu.memory_space<vmem>>, vector<4x239xf32>
    tpu.vector_store %arg9[%c160_271, %c17_272], %577 {strides = array<i32>} : memref<200x256xf32, #tpu.memory_space<vmem>>, vector<4x239xf32>,
    %579 = vector.extract_strided_slice %571 {offsets = [0, 0], sizes = [4, 240], strides = [1, 1]} : vector<4x256xf32> to vector<4x240xf32>
    %c164_273 = arith.constant 164 : index
    %c16_274 = arith.constant 16 : index
    %580 = vector.load %arg9[%c164_273, %c16_274] : memref<200x256xf32, #tpu.memory_space<vmem>>, vector<4x240xf32>
    tpu.vector_store %arg9[%c164_273, %c16_274], %579 {strides = array<i32>} : memref<200x256xf32, #tpu.memory_space<vmem>>, vector<4x240xf32>,
    %581 = vector.extract_strided_slice %571 {offsets = [0, 0], sizes = [4, 241], strides = [1, 1]} : vector<4x256xf32> to vector<4x241xf32>
    %582 = vector.extract_strided_slice %20 {offsets = [0, 15], sizes = [1, 241], strides = [1, 1]} : vector<1x256xi1> to vector<1x241xi1>
    %cst_275 = arith.constant 0.000000e+00 : f32
    %583 = vector.shape_cast %582 : vector<1x241xi1> to vector<1x241xi1>
    %584 = vector.broadcast %583 : vector<1x241xi1> to vector<4x241xi1>
    %585 = vector.broadcast %cst_275 : f32 to vector<4x241xf32>
    %586 = arith.select %584, %581, %585 : vector<4x241xi1>, vector<4x241xf32>
    %c168_276 = arith.constant 168 : index
    %c15_277 = arith.constant 15 : index
    %587 = vector.load %arg9[%c168_276, %c15_277] : memref<200x256xf32, #tpu.memory_space<vmem>>, vector<4x241xf32>
    tpu.vector_store %arg9[%c168_276, %c15_277], %586 {strides = array<i32>} : memref<200x256xf32, #tpu.memory_space<vmem>>, vector<4x241xf32>,
    %588 = vector.extract_strided_slice %571 {offsets = [0, 0], sizes = [4, 255], strides = [1, 1]} : vector<4x256xf32> to vector<4x255xf32>
    %589 = vector.extract_strided_slice %18 {offsets = [0, 1], sizes = [1, 255], strides = [1, 1]} : vector<1x256xi1> to vector<1x255xi1>
    %cst_278 = arith.constant 0.000000e+00 : f32
    %590 = vector.shape_cast %589 : vector<1x255xi1> to vector<1x255xi1>
    %591 = vector.broadcast %590 : vector<1x255xi1> to vector<4x255xi1>
    %592 = vector.broadcast %cst_278 : f32 to vector<4x255xf32>
    %593 = arith.select %591, %588, %592 : vector<4x255xi1>, vector<4x255xf32>
    %c172_279 = arith.constant 172 : index
    %c1_280 = arith.constant 1 : index
    %594 = vector.load %arg9[%c172_279, %c1_280] : memref<200x256xf32, #tpu.memory_space<vmem>>, vector<4x255xf32>
    tpu.vector_store %arg9[%c172_279, %c1_280], %593 {strides = array<i32>} : memref<200x256xf32, #tpu.memory_space<vmem>>, vector<4x255xf32>,
    %c176_281 = arith.constant 176 : index
    %c0_282 = arith.constant 0 : index
    %595 = vector.load %arg9[%c176_281, %c0_282] : memref<200x256xf32, #tpu.memory_space<vmem>>, vector<4x256xf32>
    tpu.vector_store %arg9[%c176_281, %c0_282], %571 {strides = array<i32>} : memref<200x256xf32, #tpu.memory_space<vmem>>, vector<4x256xf32>,
    %596 = vector.extract_strided_slice %571 {offsets = [0, 1], sizes = [4, 255], strides = [1, 1]} : vector<4x256xf32> to vector<4x255xf32>
    %597 = vector.extract_strided_slice %20 {offsets = [0, 0], sizes = [1, 255], strides = [1, 1]} : vector<1x256xi1> to vector<1x255xi1>
    %cst_283 = arith.constant 0.000000e+00 : f32
    %598 = vector.shape_cast %597 : vector<1x255xi1> to vector<1x255xi1>
    %599 = vector.broadcast %598 : vector<1x255xi1> to vector<4x255xi1>
    %600 = vector.broadcast %cst_283 : f32 to vector<4x255xf32>
    %601 = arith.select %599, %596, %600 : vector<4x255xi1>, vector<4x255xf32>
    %c180_284 = arith.constant 180 : index
    %c0_285 = arith.constant 0 : index
    %602 = vector.load %arg9[%c180_284, %c0_285] : memref<200x256xf32, #tpu.memory_space<vmem>>, vector<4x255xf32>
    tpu.vector_store %arg9[%c180_284, %c0_285], %601 {strides = array<i32>} : memref<200x256xf32, #tpu.memory_space<vmem>>, vector<4x255xf32>,
    %603 = vector.extract_strided_slice %571 {offsets = [0, 15], sizes = [4, 241], strides = [1, 1]} : vector<4x256xf32> to vector<4x241xf32>
    %604 = vector.extract_strided_slice %18 {offsets = [0, 0], sizes = [1, 241], strides = [1, 1]} : vector<1x256xi1> to vector<1x241xi1>
    %cst_286 = arith.constant 0.000000e+00 : f32
    %605 = vector.shape_cast %604 : vector<1x241xi1> to vector<1x241xi1>
    %606 = vector.broadcast %605 : vector<1x241xi1> to vector<4x241xi1>
    %607 = vector.broadcast %cst_286 : f32 to vector<4x241xf32>
    %608 = arith.select %606, %603, %607 : vector<4x241xi1>, vector<4x241xf32>
    %c184_287 = arith.constant 184 : index
    %c0_288 = arith.constant 0 : index
    %609 = vector.load %arg9[%c184_287, %c0_288] : memref<200x256xf32, #tpu.memory_space<vmem>>, vector<4x241xf32>
    tpu.vector_store %arg9[%c184_287, %c0_288], %608 {strides = array<i32>} : memref<200x256xf32, #tpu.memory_space<vmem>>, vector<4x241xf32>,
    %610 = vector.extract_strided_slice %571 {offsets = [0, 16], sizes = [4, 240], strides = [1, 1]} : vector<4x256xf32> to vector<4x240xf32>
    %c188_289 = arith.constant 188 : index
    %c0_290 = arith.constant 0 : index
    %611 = vector.load %arg9[%c188_289, %c0_290] : memref<200x256xf32, #tpu.memory_space<vmem>>, vector<4x240xf32>
    tpu.vector_store %arg9[%c188_289, %c0_290], %610 {strides = array<i32>} : memref<200x256xf32, #tpu.memory_space<vmem>>, vector<4x240xf32>,
    %612 = vector.extract_strided_slice %571 {offsets = [0, 17], sizes = [4, 239], strides = [1, 1]} : vector<4x256xf32> to vector<4x239xf32>
    %613 = vector.extract_strided_slice %20 {offsets = [0, 0], sizes = [1, 239], strides = [1, 1]} : vector<1x256xi1> to vector<1x239xi1>
    %cst_291 = arith.constant 0.000000e+00 : f32
    %614 = vector.shape_cast %613 : vector<1x239xi1> to vector<1x239xi1>
    %615 = vector.broadcast %614 : vector<1x239xi1> to vector<4x239xi1>
    %616 = vector.broadcast %cst_291 : f32 to vector<4x239xf32>
    %617 = arith.select %615, %612, %616 : vector<4x239xi1>, vector<4x239xf32>
    %c192_292 = arith.constant 192 : index
    %c0_293 = arith.constant 0 : index
    %618 = vector.load %arg9[%c192_292, %c0_293] : memref<200x256xf32, #tpu.memory_space<vmem>>, vector<4x239xf32>
    tpu.vector_store %arg9[%c192_292, %c0_293], %617 {strides = array<i32>} : memref<200x256xf32, #tpu.memory_space<vmem>>, vector<4x239xf32>,
    %c1_294 = arith.constant 1 : index
    %c0_295 = arith.constant 0 : index
    %c0_296 = arith.constant 0 : index
    %619 = vector.load %arg6[%c1_294, %c0_295, %c0_296] : memref<3x4x200xbf16, #tpu.memory_space<vmem>>, vector<1x4x200xbf16>
    %620 = vector.shape_cast %619 : vector<1x4x200xbf16> to vector<4x200xbf16>
    %c0_297 = arith.constant 0 : index
    %c0_298 = arith.constant 0 : index
    %621 = vector.load %arg9[%c0_297, %c0_298] : memref<200x256xf32, #tpu.memory_space<vmem>>, vector<200x256xf32>
    %622 = arith.truncf %621 : vector<200x256xf32> to vector<200x256xbf16>
    %cst_299 = arith.constant dense<0.000000e+00> : vector<4x256xf32>
    %623 = tpu.matmul %620, %622, %cst_299 {dimension_numbers = #tpu.dot_dimension_numbers<[1], [0], [0], [1], [0, 0, 1, 1], [], []>} : vector<4x200xbf16>, vector<200x256xbf16>, vector<4x256xf32> -> vector<4x256xf32>
    %c9 = arith.constant 9 : index
    %c0_300 = arith.constant 0 : index
    %c0_301 = arith.constant 0 : index
    %624 = vector.load %arg7[%c9, %c0_300, %c0_301] : memref<15x4x1xf32, #tpu.memory_space<vmem>>, vector<1x4x1xf32>
    %625 = vector.shape_cast %624 : vector<1x4x1xf32> to vector<4x1xf32>
    %626 = vector.broadcast %625 : vector<4x1xf32> to vector<4x256xf32>
    %627 = arith.addf %623, %626 : vector<4x256xf32>
    %cst_302 = arith.constant 2.000000e-01 : f32
    %628 = vector.broadcast %cst_302 : f32 to vector<4x256xf32>
    %629 = arith.mulf %627, %628 : vector<4x256xf32>
    %630 = arith.addf %629, %327 : vector<4x256xf32>
    %631 = vector.extract_strided_slice %630 {offsets = [0, 0], sizes = [4, 239], strides = [1, 1]} : vector<4x256xf32> to vector<4x239xf32>
    %632 = vector.extract_strided_slice %18 {offsets = [0, 17], sizes = [1, 239], strides = [1, 1]} : vector<1x256xi1> to vector<1x239xi1>
    %cst_303 = arith.constant 0.000000e+00 : f32
    %633 = vector.shape_cast %632 : vector<1x239xi1> to vector<1x239xi1>
    %634 = vector.broadcast %633 : vector<1x239xi1> to vector<4x239xi1>
    %635 = vector.broadcast %cst_303 : f32 to vector<4x239xf32>
    %636 = arith.select %634, %631, %635 : vector<4x239xi1>, vector<4x239xf32>
    %c0_304 = arith.constant 0 : index
    %c17_305 = arith.constant 17 : index
    %637 = vector.load %arg9[%c0_304, %c17_305] : memref<200x256xf32, #tpu.memory_space<vmem>>, vector<4x239xf32>
    tpu.vector_store %arg9[%c0_304, %c17_305], %636 {strides = array<i32>} : memref<200x256xf32, #tpu.memory_space<vmem>>, vector<4x239xf32>,
    %638 = vector.extract_strided_slice %630 {offsets = [0, 0], sizes = [4, 240], strides = [1, 1]} : vector<4x256xf32> to vector<4x240xf32>
    %c4_306 = arith.constant 4 : index
    %c16_307 = arith.constant 16 : index
    %639 = vector.load %arg9[%c4_306, %c16_307] : memref<200x256xf32, #tpu.memory_space<vmem>>, vector<4x240xf32>
    tpu.vector_store %arg9[%c4_306, %c16_307], %638 {strides = array<i32>} : memref<200x256xf32, #tpu.memory_space<vmem>>, vector<4x240xf32>,
    %640 = vector.extract_strided_slice %630 {offsets = [0, 0], sizes = [4, 241], strides = [1, 1]} : vector<4x256xf32> to vector<4x241xf32>
    %641 = vector.extract_strided_slice %20 {offsets = [0, 15], sizes = [1, 241], strides = [1, 1]} : vector<1x256xi1> to vector<1x241xi1>
    %cst_308 = arith.constant 0.000000e+00 : f32
    %642 = vector.shape_cast %641 : vector<1x241xi1> to vector<1x241xi1>
    %643 = vector.broadcast %642 : vector<1x241xi1> to vector<4x241xi1>
    %644 = vector.broadcast %cst_308 : f32 to vector<4x241xf32>
    %645 = arith.select %643, %640, %644 : vector<4x241xi1>, vector<4x241xf32>
    %c8_309 = arith.constant 8 : index
    %c15_310 = arith.constant 15 : index
    %646 = vector.load %arg9[%c8_309, %c15_310] : memref<200x256xf32, #tpu.memory_space<vmem>>, vector<4x241xf32>
    tpu.vector_store %arg9[%c8_309, %c15_310], %645 {strides = array<i32>} : memref<200x256xf32, #tpu.memory_space<vmem>>, vector<4x241xf32>,
    %647 = vector.extract_strided_slice %630 {offsets = [0, 0], sizes = [4, 255], strides = [1, 1]} : vector<4x256xf32> to vector<4x255xf32>
    %648 = vector.extract_strided_slice %18 {offsets = [0, 1], sizes = [1, 255], strides = [1, 1]} : vector<1x256xi1> to vector<1x255xi1>
    %cst_311 = arith.constant 0.000000e+00 : f32
    %649 = vector.shape_cast %648 : vector<1x255xi1> to vector<1x255xi1>
    %650 = vector.broadcast %649 : vector<1x255xi1> to vector<4x255xi1>
    %651 = vector.broadcast %cst_311 : f32 to vector<4x255xf32>
    %652 = arith.select %650, %647, %651 : vector<4x255xi1>, vector<4x255xf32>
    %c12_312 = arith.constant 12 : index
    %c1_313 = arith.constant 1 : index
    %653 = vector.load %arg9[%c12_312, %c1_313] : memref<200x256xf32, #tpu.memory_space<vmem>>, vector<4x255xf32>
    tpu.vector_store %arg9[%c12_312, %c1_313], %652 {strides = array<i32>} : memref<200x256xf32, #tpu.memory_space<vmem>>, vector<4x255xf32>,
    %c16_314 = arith.constant 16 : index
    %c0_315 = arith.constant 0 : index
    %654 = vector.load %arg9[%c16_314, %c0_315] : memref<200x256xf32, #tpu.memory_space<vmem>>, vector<4x256xf32>
    tpu.vector_store %arg9[%c16_314, %c0_315], %630 {strides = array<i32>} : memref<200x256xf32, #tpu.memory_space<vmem>>, vector<4x256xf32>,
    %655 = vector.extract_strided_slice %630 {offsets = [0, 1], sizes = [4, 255], strides = [1, 1]} : vector<4x256xf32> to vector<4x255xf32>
    %656 = vector.extract_strided_slice %20 {offsets = [0, 0], sizes = [1, 255], strides = [1, 1]} : vector<1x256xi1> to vector<1x255xi1>
    %cst_316 = arith.constant 0.000000e+00 : f32
    %657 = vector.shape_cast %656 : vector<1x255xi1> to vector<1x255xi1>
    %658 = vector.broadcast %657 : vector<1x255xi1> to vector<4x255xi1>
    %659 = vector.broadcast %cst_316 : f32 to vector<4x255xf32>
    %660 = arith.select %658, %655, %659 : vector<4x255xi1>, vector<4x255xf32>
    %c20_317 = arith.constant 20 : index
    %c0_318 = arith.constant 0 : index
    %661 = vector.load %arg9[%c20_317, %c0_318] : memref<200x256xf32, #tpu.memory_space<vmem>>, vector<4x255xf32>
    tpu.vector_store %arg9[%c20_317, %c0_318], %660 {strides = array<i32>} : memref<200x256xf32, #tpu.memory_space<vmem>>, vector<4x255xf32>,
    %662 = vector.extract_strided_slice %630 {offsets = [0, 15], sizes = [4, 241], strides = [1, 1]} : vector<4x256xf32> to vector<4x241xf32>
    %663 = vector.extract_strided_slice %18 {offsets = [0, 0], sizes = [1, 241], strides = [1, 1]} : vector<1x256xi1> to vector<1x241xi1>
    %cst_319 = arith.constant 0.000000e+00 : f32
    %664 = vector.shape_cast %663 : vector<1x241xi1> to vector<1x241xi1>
    %665 = vector.broadcast %664 : vector<1x241xi1> to vector<4x241xi1>
    %666 = vector.broadcast %cst_319 : f32 to vector<4x241xf32>
    %667 = arith.select %665, %662, %666 : vector<4x241xi1>, vector<4x241xf32>
    %c24_320 = arith.constant 24 : index
    %c0_321 = arith.constant 0 : index
    %668 = vector.load %arg9[%c24_320, %c0_321] : memref<200x256xf32, #tpu.memory_space<vmem>>, vector<4x241xf32>
    tpu.vector_store %arg9[%c24_320, %c0_321], %667 {strides = array<i32>} : memref<200x256xf32, #tpu.memory_space<vmem>>, vector<4x241xf32>,
    %669 = vector.extract_strided_slice %630 {offsets = [0, 16], sizes = [4, 240], strides = [1, 1]} : vector<4x256xf32> to vector<4x240xf32>
    %c28_322 = arith.constant 28 : index
    %c0_323 = arith.constant 0 : index
    %670 = vector.load %arg9[%c28_322, %c0_323] : memref<200x256xf32, #tpu.memory_space<vmem>>, vector<4x240xf32>
    tpu.vector_store %arg9[%c28_322, %c0_323], %669 {strides = array<i32>} : memref<200x256xf32, #tpu.memory_space<vmem>>, vector<4x240xf32>,
    %671 = vector.extract_strided_slice %630 {offsets = [0, 17], sizes = [4, 239], strides = [1, 1]} : vector<4x256xf32> to vector<4x239xf32>
    %672 = vector.extract_strided_slice %20 {offsets = [0, 0], sizes = [1, 239], strides = [1, 1]} : vector<1x256xi1> to vector<1x239xi1>
    %cst_324 = arith.constant 0.000000e+00 : f32
    %673 = vector.shape_cast %672 : vector<1x239xi1> to vector<1x239xi1>
    %674 = vector.broadcast %673 : vector<1x239xi1> to vector<4x239xi1>
    %675 = vector.broadcast %cst_324 : f32 to vector<4x239xf32>
    %676 = arith.select %674, %671, %675 : vector<4x239xi1>, vector<4x239xf32>
    %c32_325 = arith.constant 32 : index
    %c0_326 = arith.constant 0 : index
    %677 = vector.load %arg9[%c32_325, %c0_326] : memref<200x256xf32, #tpu.memory_space<vmem>>, vector<4x239xf32>
    tpu.vector_store %arg9[%c32_325, %c0_326], %676 {strides = array<i32>} : memref<200x256xf32, #tpu.memory_space<vmem>>, vector<4x239xf32>,
    %c2_327 = arith.constant 2 : index
    %c0_328 = arith.constant 0 : index
    %c0_329 = arith.constant 0 : index
    %678 = vector.load %arg2[%c2_327, %c0_328, %c0_329] : memref<3x4x40xbf16, #tpu.memory_space<vmem>>, vector<1x4x40xbf16>
    %679 = vector.shape_cast %678 : vector<1x4x40xbf16> to vector<4x40xbf16>
    %c0_330 = arith.constant 0 : index
    %c0_331 = arith.constant 0 : index
    %680 = vector.load %arg9[%c0_330, %c0_331] : memref<200x256xf32, #tpu.memory_space<vmem>>, vector<40x256xf32>
    %681 = arith.truncf %680 : vector<40x256xf32> to vector<40x256xbf16>
    %cst_332 = arith.constant dense<0.000000e+00> : vector<4x256xf32>
    %682 = tpu.matmul %679, %681, %cst_332 {dimension_numbers = #tpu.dot_dimension_numbers<[1], [0], [0], [1], [0, 0, 1, 1], [], []>} : vector<4x40xbf16>, vector<40x256xbf16>, vector<4x256xf32> -> vector<4x256xf32>
    %c10 = arith.constant 10 : index
    %c0_333 = arith.constant 0 : index
    %c0_334 = arith.constant 0 : index
    %683 = vector.load %arg7[%c10, %c0_333, %c0_334] : memref<15x4x1xf32, #tpu.memory_space<vmem>>, vector<1x4x1xf32>
    %684 = vector.shape_cast %683 : vector<1x4x1xf32> to vector<4x1xf32>
    %685 = vector.broadcast %684 : vector<4x1xf32> to vector<4x256xf32>
    %686 = arith.addf %682, %685 : vector<4x256xf32>
    %cst_335 = arith.constant 0.000000e+00 : f32
    %687 = vector.broadcast %cst_335 : f32 to vector<4x256xf32>
    %688 = arith.cmpf oge, %686, %687 : vector<4x256xf32>
    %cst_336 = arith.constant 0.00999999977 : f32
    %689 = vector.broadcast %cst_336 : f32 to vector<4x256xf32>
    %690 = arith.mulf %689, %686 : vector<4x256xf32>
    %691 = arith.select %688, %686, %690 : vector<4x256xi1>, vector<4x256xf32>
    %692 = vector.extract_strided_slice %691 {offsets = [0, 0], sizes = [4, 239], strides = [1, 1]} : vector<4x256xf32> to vector<4x239xf32>
    %693 = vector.extract_strided_slice %18 {offsets = [0, 17], sizes = [1, 239], strides = [1, 1]} : vector<1x256xi1> to vector<1x239xi1>
    %cst_337 = arith.constant 0.000000e+00 : f32
    %694 = vector.shape_cast %693 : vector<1x239xi1> to vector<1x239xi1>
    %695 = vector.broadcast %694 : vector<1x239xi1> to vector<4x239xi1>
    %696 = vector.broadcast %cst_337 : f32 to vector<4x239xf32>
    %697 = arith.select %695, %692, %696 : vector<4x239xi1>, vector<4x239xf32>
    %c40_338 = arith.constant 40 : index
    %c17_339 = arith.constant 17 : index
    %698 = vector.load %arg9[%c40_338, %c17_339] : memref<200x256xf32, #tpu.memory_space<vmem>>, vector<4x239xf32>
    tpu.vector_store %arg9[%c40_338, %c17_339], %697 {strides = array<i32>} : memref<200x256xf32, #tpu.memory_space<vmem>>, vector<4x239xf32>,
    %699 = vector.extract_strided_slice %691 {offsets = [0, 0], sizes = [4, 240], strides = [1, 1]} : vector<4x256xf32> to vector<4x240xf32>
    %c44_340 = arith.constant 44 : index
    %c16_341 = arith.constant 16 : index
    %700 = vector.load %arg9[%c44_340, %c16_341] : memref<200x256xf32, #tpu.memory_space<vmem>>, vector<4x240xf32>
    tpu.vector_store %arg9[%c44_340, %c16_341], %699 {strides = array<i32>} : memref<200x256xf32, #tpu.memory_space<vmem>>, vector<4x240xf32>,
    %701 = vector.extract_strided_slice %691 {offsets = [0, 0], sizes = [4, 241], strides = [1, 1]} : vector<4x256xf32> to vector<4x241xf32>
    %702 = vector.extract_strided_slice %20 {offsets = [0, 15], sizes = [1, 241], strides = [1, 1]} : vector<1x256xi1> to vector<1x241xi1>
    %cst_342 = arith.constant 0.000000e+00 : f32
    %703 = vector.shape_cast %702 : vector<1x241xi1> to vector<1x241xi1>
    %704 = vector.broadcast %703 : vector<1x241xi1> to vector<4x241xi1>
    %705 = vector.broadcast %cst_342 : f32 to vector<4x241xf32>
    %706 = arith.select %704, %701, %705 : vector<4x241xi1>, vector<4x241xf32>
    %c48_343 = arith.constant 48 : index
    %c15_344 = arith.constant 15 : index
    %707 = vector.load %arg9[%c48_343, %c15_344] : memref<200x256xf32, #tpu.memory_space<vmem>>, vector<4x241xf32>
    tpu.vector_store %arg9[%c48_343, %c15_344], %706 {strides = array<i32>} : memref<200x256xf32, #tpu.memory_space<vmem>>, vector<4x241xf32>,
    %708 = vector.extract_strided_slice %691 {offsets = [0, 0], sizes = [4, 255], strides = [1, 1]} : vector<4x256xf32> to vector<4x255xf32>
    %709 = vector.extract_strided_slice %18 {offsets = [0, 1], sizes = [1, 255], strides = [1, 1]} : vector<1x256xi1> to vector<1x255xi1>
    %cst_345 = arith.constant 0.000000e+00 : f32
    %710 = vector.shape_cast %709 : vector<1x255xi1> to vector<1x255xi1>
    %711 = vector.broadcast %710 : vector<1x255xi1> to vector<4x255xi1>
    %712 = vector.broadcast %cst_345 : f32 to vector<4x255xf32>
    %713 = arith.select %711, %708, %712 : vector<4x255xi1>, vector<4x255xf32>
    %c52_346 = arith.constant 52 : index
    %c1_347 = arith.constant 1 : index
    %714 = vector.load %arg9[%c52_346, %c1_347] : memref<200x256xf32, #tpu.memory_space<vmem>>, vector<4x255xf32>
    tpu.vector_store %arg9[%c52_346, %c1_347], %713 {strides = array<i32>} : memref<200x256xf32, #tpu.memory_space<vmem>>, vector<4x255xf32>,
    %c56_348 = arith.constant 56 : index
    %c0_349 = arith.constant 0 : index
    %715 = vector.load %arg9[%c56_348, %c0_349] : memref<200x256xf32, #tpu.memory_space<vmem>>, vector<4x256xf32>
    tpu.vector_store %arg9[%c56_348, %c0_349], %691 {strides = array<i32>} : memref<200x256xf32, #tpu.memory_space<vmem>>, vector<4x256xf32>,
    %716 = vector.extract_strided_slice %691 {offsets = [0, 1], sizes = [4, 255], strides = [1, 1]} : vector<4x256xf32> to vector<4x255xf32>
    %717 = vector.extract_strided_slice %20 {offsets = [0, 0], sizes = [1, 255], strides = [1, 1]} : vector<1x256xi1> to vector<1x255xi1>
    %cst_350 = arith.constant 0.000000e+00 : f32
    %718 = vector.shape_cast %717 : vector<1x255xi1> to vector<1x255xi1>
    %719 = vector.broadcast %718 : vector<1x255xi1> to vector<4x255xi1>
    %720 = vector.broadcast %cst_350 : f32 to vector<4x255xf32>
    %721 = arith.select %719, %716, %720 : vector<4x255xi1>, vector<4x255xf32>
    %c60_351 = arith.constant 60 : index
    %c0_352 = arith.constant 0 : index
    %722 = vector.load %arg9[%c60_351, %c0_352] : memref<200x256xf32, #tpu.memory_space<vmem>>, vector<4x255xf32>
    tpu.vector_store %arg9[%c60_351, %c0_352], %721 {strides = array<i32>} : memref<200x256xf32, #tpu.memory_space<vmem>>, vector<4x255xf32>,
    %723 = vector.extract_strided_slice %691 {offsets = [0, 15], sizes = [4, 241], strides = [1, 1]} : vector<4x256xf32> to vector<4x241xf32>
    %724 = vector.extract_strided_slice %18 {offsets = [0, 0], sizes = [1, 241], strides = [1, 1]} : vector<1x256xi1> to vector<1x241xi1>
    %cst_353 = arith.constant 0.000000e+00 : f32
    %725 = vector.shape_cast %724 : vector<1x241xi1> to vector<1x241xi1>
    %726 = vector.broadcast %725 : vector<1x241xi1> to vector<4x241xi1>
    %727 = vector.broadcast %cst_353 : f32 to vector<4x241xf32>
    %728 = arith.select %726, %723, %727 : vector<4x241xi1>, vector<4x241xf32>
    %c64_354 = arith.constant 64 : index
    %c0_355 = arith.constant 0 : index
    %729 = vector.load %arg9[%c64_354, %c0_355] : memref<200x256xf32, #tpu.memory_space<vmem>>, vector<4x241xf32>
    tpu.vector_store %arg9[%c64_354, %c0_355], %728 {strides = array<i32>} : memref<200x256xf32, #tpu.memory_space<vmem>>, vector<4x241xf32>,
    %730 = vector.extract_strided_slice %691 {offsets = [0, 16], sizes = [4, 240], strides = [1, 1]} : vector<4x256xf32> to vector<4x240xf32>
    %c68_356 = arith.constant 68 : index
    %c0_357 = arith.constant 0 : index
    %731 = vector.load %arg9[%c68_356, %c0_357] : memref<200x256xf32, #tpu.memory_space<vmem>>, vector<4x240xf32>
    tpu.vector_store %arg9[%c68_356, %c0_357], %730 {strides = array<i32>} : memref<200x256xf32, #tpu.memory_space<vmem>>, vector<4x240xf32>,
    %732 = vector.extract_strided_slice %691 {offsets = [0, 17], sizes = [4, 239], strides = [1, 1]} : vector<4x256xf32> to vector<4x239xf32>
    %733 = vector.extract_strided_slice %20 {offsets = [0, 0], sizes = [1, 239], strides = [1, 1]} : vector<1x256xi1> to vector<1x239xi1>
    %cst_358 = arith.constant 0.000000e+00 : f32
    %734 = vector.shape_cast %733 : vector<1x239xi1> to vector<1x239xi1>
    %735 = vector.broadcast %734 : vector<1x239xi1> to vector<4x239xi1>
    %736 = vector.broadcast %cst_358 : f32 to vector<4x239xf32>
    %737 = arith.select %735, %732, %736 : vector<4x239xi1>, vector<4x239xf32>
    %c72_359 = arith.constant 72 : index
    %c0_360 = arith.constant 0 : index
    %738 = vector.load %arg9[%c72_359, %c0_360] : memref<200x256xf32, #tpu.memory_space<vmem>>, vector<4x239xf32>
    tpu.vector_store %arg9[%c72_359, %c0_360], %737 {strides = array<i32>} : memref<200x256xf32, #tpu.memory_space<vmem>>, vector<4x239xf32>,
    %c2_361 = arith.constant 2 : index
    %c0_362 = arith.constant 0 : index
    %c0_363 = arith.constant 0 : index
    %739 = vector.load %arg3[%c2_361, %c0_362, %c0_363] : memref<3x4x80xbf16, #tpu.memory_space<vmem>>, vector<1x4x80xbf16>
    %740 = vector.shape_cast %739 : vector<1x4x80xbf16> to vector<4x80xbf16>
    %c0_364 = arith.constant 0 : index
    %c0_365 = arith.constant 0 : index
    %741 = vector.load %arg9[%c0_364, %c0_365] : memref<200x256xf32, #tpu.memory_space<vmem>>, vector<80x256xf32>
    %742 = arith.truncf %741 : vector<80x256xf32> to vector<80x256xbf16>
    %cst_366 = arith.constant dense<0.000000e+00> : vector<4x256xf32>
    %743 = tpu.matmul %740, %742, %cst_366 {dimension_numbers = #tpu.dot_dimension_numbers<[1], [0], [0], [1], [0, 0, 1, 1], [], []>} : vector<4x80xbf16>, vector<80x256xbf16>, vector<4x256xf32> -> vector<4x256xf32>
    %c11 = arith.constant 11 : index
    %c0_367 = arith.constant 0 : index
    %c0_368 = arith.constant 0 : index
    %744 = vector.load %arg7[%c11, %c0_367, %c0_368] : memref<15x4x1xf32, #tpu.memory_space<vmem>>, vector<1x4x1xf32>
    %745 = vector.shape_cast %744 : vector<1x4x1xf32> to vector<4x1xf32>
    %746 = vector.broadcast %745 : vector<4x1xf32> to vector<4x256xf32>
    %747 = arith.addf %743, %746 : vector<4x256xf32>
    %cst_369 = arith.constant 0.000000e+00 : f32
    %748 = vector.broadcast %cst_369 : f32 to vector<4x256xf32>
    %749 = arith.cmpf oge, %747, %748 : vector<4x256xf32>
    %cst_370 = arith.constant 0.00999999977 : f32
    %750 = vector.broadcast %cst_370 : f32 to vector<4x256xf32>
    %751 = arith.mulf %750, %747 : vector<4x256xf32>
    %752 = arith.select %749, %747, %751 : vector<4x256xi1>, vector<4x256xf32>
    %753 = vector.extract_strided_slice %752 {offsets = [0, 0], sizes = [4, 239], strides = [1, 1]} : vector<4x256xf32> to vector<4x239xf32>
    %754 = vector.extract_strided_slice %18 {offsets = [0, 17], sizes = [1, 239], strides = [1, 1]} : vector<1x256xi1> to vector<1x239xi1>
    %cst_371 = arith.constant 0.000000e+00 : f32
    %755 = vector.shape_cast %754 : vector<1x239xi1> to vector<1x239xi1>
    %756 = vector.broadcast %755 : vector<1x239xi1> to vector<4x239xi1>
    %757 = vector.broadcast %cst_371 : f32 to vector<4x239xf32>
    %758 = arith.select %756, %753, %757 : vector<4x239xi1>, vector<4x239xf32>
    %c80_372 = arith.constant 80 : index
    %c17_373 = arith.constant 17 : index
    %759 = vector.load %arg9[%c80_372, %c17_373] : memref<200x256xf32, #tpu.memory_space<vmem>>, vector<4x239xf32>
    tpu.vector_store %arg9[%c80_372, %c17_373], %758 {strides = array<i32>} : memref<200x256xf32, #tpu.memory_space<vmem>>, vector<4x239xf32>,
    %760 = vector.extract_strided_slice %752 {offsets = [0, 0], sizes = [4, 240], strides = [1, 1]} : vector<4x256xf32> to vector<4x240xf32>
    %c84_374 = arith.constant 84 : index
    %c16_375 = arith.constant 16 : index
    %761 = vector.load %arg9[%c84_374, %c16_375] : memref<200x256xf32, #tpu.memory_space<vmem>>, vector<4x240xf32>
    tpu.vector_store %arg9[%c84_374, %c16_375], %760 {strides = array<i32>} : memref<200x256xf32, #tpu.memory_space<vmem>>, vector<4x240xf32>,
    %762 = vector.extract_strided_slice %752 {offsets = [0, 0], sizes = [4, 241], strides = [1, 1]} : vector<4x256xf32> to vector<4x241xf32>
    %763 = vector.extract_strided_slice %20 {offsets = [0, 15], sizes = [1, 241], strides = [1, 1]} : vector<1x256xi1> to vector<1x241xi1>
    %cst_376 = arith.constant 0.000000e+00 : f32
    %764 = vector.shape_cast %763 : vector<1x241xi1> to vector<1x241xi1>
    %765 = vector.broadcast %764 : vector<1x241xi1> to vector<4x241xi1>
    %766 = vector.broadcast %cst_376 : f32 to vector<4x241xf32>
    %767 = arith.select %765, %762, %766 : vector<4x241xi1>, vector<4x241xf32>
    %c88_377 = arith.constant 88 : index
    %c15_378 = arith.constant 15 : index
    %768 = vector.load %arg9[%c88_377, %c15_378] : memref<200x256xf32, #tpu.memory_space<vmem>>, vector<4x241xf32>
    tpu.vector_store %arg9[%c88_377, %c15_378], %767 {strides = array<i32>} : memref<200x256xf32, #tpu.memory_space<vmem>>, vector<4x241xf32>,
    %769 = vector.extract_strided_slice %752 {offsets = [0, 0], sizes = [4, 255], strides = [1, 1]} : vector<4x256xf32> to vector<4x255xf32>
    %770 = vector.extract_strided_slice %18 {offsets = [0, 1], sizes = [1, 255], strides = [1, 1]} : vector<1x256xi1> to vector<1x255xi1>
    %cst_379 = arith.constant 0.000000e+00 : f32
    %771 = vector.shape_cast %770 : vector<1x255xi1> to vector<1x255xi1>
    %772 = vector.broadcast %771 : vector<1x255xi1> to vector<4x255xi1>
    %773 = vector.broadcast %cst_379 : f32 to vector<4x255xf32>
    %774 = arith.select %772, %769, %773 : vector<4x255xi1>, vector<4x255xf32>
    %c92_380 = arith.constant 92 : index
    %c1_381 = arith.constant 1 : index
    %775 = vector.load %arg9[%c92_380, %c1_381] : memref<200x256xf32, #tpu.memory_space<vmem>>, vector<4x255xf32>
    tpu.vector_store %arg9[%c92_380, %c1_381], %774 {strides = array<i32>} : memref<200x256xf32, #tpu.memory_space<vmem>>, vector<4x255xf32>,
    %c96_382 = arith.constant 96 : index
    %c0_383 = arith.constant 0 : index
    %776 = vector.load %arg9[%c96_382, %c0_383] : memref<200x256xf32, #tpu.memory_space<vmem>>, vector<4x256xf32>
    tpu.vector_store %arg9[%c96_382, %c0_383], %752 {strides = array<i32>} : memref<200x256xf32, #tpu.memory_space<vmem>>, vector<4x256xf32>,
    %777 = vector.extract_strided_slice %752 {offsets = [0, 1], sizes = [4, 255], strides = [1, 1]} : vector<4x256xf32> to vector<4x255xf32>
    %778 = vector.extract_strided_slice %20 {offsets = [0, 0], sizes = [1, 255], strides = [1, 1]} : vector<1x256xi1> to vector<1x255xi1>
    %cst_384 = arith.constant 0.000000e+00 : f32
    %779 = vector.shape_cast %778 : vector<1x255xi1> to vector<1x255xi1>
    %780 = vector.broadcast %779 : vector<1x255xi1> to vector<4x255xi1>
    %781 = vector.broadcast %cst_384 : f32 to vector<4x255xf32>
    %782 = arith.select %780, %777, %781 : vector<4x255xi1>, vector<4x255xf32>
    %c100_385 = arith.constant 100 : index
    %c0_386 = arith.constant 0 : index
    %783 = vector.load %arg9[%c100_385, %c0_386] : memref<200x256xf32, #tpu.memory_space<vmem>>, vector<4x255xf32>
    tpu.vector_store %arg9[%c100_385, %c0_386], %782 {strides = array<i32>} : memref<200x256xf32, #tpu.memory_space<vmem>>, vector<4x255xf32>,
    %784 = vector.extract_strided_slice %752 {offsets = [0, 15], sizes = [4, 241], strides = [1, 1]} : vector<4x256xf32> to vector<4x241xf32>
    %785 = vector.extract_strided_slice %18 {offsets = [0, 0], sizes = [1, 241], strides = [1, 1]} : vector<1x256xi1> to vector<1x241xi1>
    %cst_387 = arith.constant 0.000000e+00 : f32
    %786 = vector.shape_cast %785 : vector<1x241xi1> to vector<1x241xi1>
    %787 = vector.broadcast %786 : vector<1x241xi1> to vector<4x241xi1>
    %788 = vector.broadcast %cst_387 : f32 to vector<4x241xf32>
    %789 = arith.select %787, %784, %788 : vector<4x241xi1>, vector<4x241xf32>
    %c104_388 = arith.constant 104 : index
    %c0_389 = arith.constant 0 : index
    %790 = vector.load %arg9[%c104_388, %c0_389] : memref<200x256xf32, #tpu.memory_space<vmem>>, vector<4x241xf32>
    tpu.vector_store %arg9[%c104_388, %c0_389], %789 {strides = array<i32>} : memref<200x256xf32, #tpu.memory_space<vmem>>, vector<4x241xf32>,
    %791 = vector.extract_strided_slice %752 {offsets = [0, 16], sizes = [4, 240], strides = [1, 1]} : vector<4x256xf32> to vector<4x240xf32>
    %c108_390 = arith.constant 108 : index
    %c0_391 = arith.constant 0 : index
    %792 = vector.load %arg9[%c108_390, %c0_391] : memref<200x256xf32, #tpu.memory_space<vmem>>, vector<4x240xf32>
    tpu.vector_store %arg9[%c108_390, %c0_391], %791 {strides = array<i32>} : memref<200x256xf32, #tpu.memory_space<vmem>>, vector<4x240xf32>,
    %793 = vector.extract_strided_slice %752 {offsets = [0, 17], sizes = [4, 239], strides = [1, 1]} : vector<4x256xf32> to vector<4x239xf32>
    %794 = vector.extract_strided_slice %20 {offsets = [0, 0], sizes = [1, 239], strides = [1, 1]} : vector<1x256xi1> to vector<1x239xi1>
    %cst_392 = arith.constant 0.000000e+00 : f32
    %795 = vector.shape_cast %794 : vector<1x239xi1> to vector<1x239xi1>
    %796 = vector.broadcast %795 : vector<1x239xi1> to vector<4x239xi1>
    %797 = vector.broadcast %cst_392 : f32 to vector<4x239xf32>
    %798 = arith.select %796, %793, %797 : vector<4x239xi1>, vector<4x239xf32>
    %c112_393 = arith.constant 112 : index
    %c0_394 = arith.constant 0 : index
    %799 = vector.load %arg9[%c112_393, %c0_394] : memref<200x256xf32, #tpu.memory_space<vmem>>, vector<4x239xf32>
    tpu.vector_store %arg9[%c112_393, %c0_394], %798 {strides = array<i32>} : memref<200x256xf32, #tpu.memory_space<vmem>>, vector<4x239xf32>,
    %c2_395 = arith.constant 2 : index
    %c0_396 = arith.constant 0 : index
    %c0_397 = arith.constant 0 : index
    %800 = vector.load %arg4[%c2_395, %c0_396, %c0_397] : memref<3x4x120xbf16, #tpu.memory_space<vmem>>, vector<1x4x120xbf16>
    %801 = vector.shape_cast %800 : vector<1x4x120xbf16> to vector<4x120xbf16>
    %c0_398 = arith.constant 0 : index
    %c0_399 = arith.constant 0 : index
    %802 = vector.load %arg9[%c0_398, %c0_399] : memref<200x256xf32, #tpu.memory_space<vmem>>, vector<120x256xf32>
    %803 = arith.truncf %802 : vector<120x256xf32> to vector<120x256xbf16>
    %cst_400 = arith.constant dense<0.000000e+00> : vector<4x256xf32>
    %804 = tpu.matmul %801, %803, %cst_400 {dimension_numbers = #tpu.dot_dimension_numbers<[1], [0], [0], [1], [0, 0, 1, 1], [], []>} : vector<4x120xbf16>, vector<120x256xbf16>, vector<4x256xf32> -> vector<4x256xf32>
    %c12_401 = arith.constant 12 : index
    %c0_402 = arith.constant 0 : index
    %c0_403 = arith.constant 0 : index
    %805 = vector.load %arg7[%c12_401, %c0_402, %c0_403] : memref<15x4x1xf32, #tpu.memory_space<vmem>>, vector<1x4x1xf32>
    %806 = vector.shape_cast %805 : vector<1x4x1xf32> to vector<4x1xf32>
    %807 = vector.broadcast %806 : vector<4x1xf32> to vector<4x256xf32>
    %808 = arith.addf %804, %807 : vector<4x256xf32>
    %cst_404 = arith.constant 0.000000e+00 : f32
    %809 = vector.broadcast %cst_404 : f32 to vector<4x256xf32>
    %810 = arith.cmpf oge, %808, %809 : vector<4x256xf32>
    %cst_405 = arith.constant 0.00999999977 : f32
    %811 = vector.broadcast %cst_405 : f32 to vector<4x256xf32>
    %812 = arith.mulf %811, %808 : vector<4x256xf32>
    %813 = arith.select %810, %808, %812 : vector<4x256xi1>, vector<4x256xf32>
    %814 = vector.extract_strided_slice %813 {offsets = [0, 0], sizes = [4, 239], strides = [1, 1]} : vector<4x256xf32> to vector<4x239xf32>
    %815 = vector.extract_strided_slice %18 {offsets = [0, 17], sizes = [1, 239], strides = [1, 1]} : vector<1x256xi1> to vector<1x239xi1>
    %cst_406 = arith.constant 0.000000e+00 : f32
    %816 = vector.shape_cast %815 : vector<1x239xi1> to vector<1x239xi1>
    %817 = vector.broadcast %816 : vector<1x239xi1> to vector<4x239xi1>
    %818 = vector.broadcast %cst_406 : f32 to vector<4x239xf32>
    %819 = arith.select %817, %814, %818 : vector<4x239xi1>, vector<4x239xf32>
    %c120_407 = arith.constant 120 : index
    %c17_408 = arith.constant 17 : index
    %820 = vector.load %arg9[%c120_407, %c17_408] : memref<200x256xf32, #tpu.memory_space<vmem>>, vector<4x239xf32>
    tpu.vector_store %arg9[%c120_407, %c17_408], %819 {strides = array<i32>} : memref<200x256xf32, #tpu.memory_space<vmem>>, vector<4x239xf32>,
    %821 = vector.extract_strided_slice %813 {offsets = [0, 0], sizes = [4, 240], strides = [1, 1]} : vector<4x256xf32> to vector<4x240xf32>
    %c124_409 = arith.constant 124 : index
    %c16_410 = arith.constant 16 : index
    %822 = vector.load %arg9[%c124_409, %c16_410] : memref<200x256xf32, #tpu.memory_space<vmem>>, vector<4x240xf32>
    tpu.vector_store %arg9[%c124_409, %c16_410], %821 {strides = array<i32>} : memref<200x256xf32, #tpu.memory_space<vmem>>, vector<4x240xf32>,
    %823 = vector.extract_strided_slice %813 {offsets = [0, 0], sizes = [4, 241], strides = [1, 1]} : vector<4x256xf32> to vector<4x241xf32>
    %824 = vector.extract_strided_slice %20 {offsets = [0, 15], sizes = [1, 241], strides = [1, 1]} : vector<1x256xi1> to vector<1x241xi1>
    %cst_411 = arith.constant 0.000000e+00 : f32
    %825 = vector.shape_cast %824 : vector<1x241xi1> to vector<1x241xi1>
    %826 = vector.broadcast %825 : vector<1x241xi1> to vector<4x241xi1>
    %827 = vector.broadcast %cst_411 : f32 to vector<4x241xf32>
    %828 = arith.select %826, %823, %827 : vector<4x241xi1>, vector<4x241xf32>
    %c128_412 = arith.constant 128 : index
    %c15_413 = arith.constant 15 : index
    %829 = vector.load %arg9[%c128_412, %c15_413] : memref<200x256xf32, #tpu.memory_space<vmem>>, vector<4x241xf32>
    tpu.vector_store %arg9[%c128_412, %c15_413], %828 {strides = array<i32>} : memref<200x256xf32, #tpu.memory_space<vmem>>, vector<4x241xf32>,
    %830 = vector.extract_strided_slice %813 {offsets = [0, 0], sizes = [4, 255], strides = [1, 1]} : vector<4x256xf32> to vector<4x255xf32>
    %831 = vector.extract_strided_slice %18 {offsets = [0, 1], sizes = [1, 255], strides = [1, 1]} : vector<1x256xi1> to vector<1x255xi1>
    %cst_414 = arith.constant 0.000000e+00 : f32
    %832 = vector.shape_cast %831 : vector<1x255xi1> to vector<1x255xi1>
    %833 = vector.broadcast %832 : vector<1x255xi1> to vector<4x255xi1>
    %834 = vector.broadcast %cst_414 : f32 to vector<4x255xf32>
    %835 = arith.select %833, %830, %834 : vector<4x255xi1>, vector<4x255xf32>
    %c132_415 = arith.constant 132 : index
    %c1_416 = arith.constant 1 : index
    %836 = vector.load %arg9[%c132_415, %c1_416] : memref<200x256xf32, #tpu.memory_space<vmem>>, vector<4x255xf32>
    tpu.vector_store %arg9[%c132_415, %c1_416], %835 {strides = array<i32>} : memref<200x256xf32, #tpu.memory_space<vmem>>, vector<4x255xf32>,
    %c136_417 = arith.constant 136 : index
    %c0_418 = arith.constant 0 : index
    %837 = vector.load %arg9[%c136_417, %c0_418] : memref<200x256xf32, #tpu.memory_space<vmem>>, vector<4x256xf32>
    tpu.vector_store %arg9[%c136_417, %c0_418], %813 {strides = array<i32>} : memref<200x256xf32, #tpu.memory_space<vmem>>, vector<4x256xf32>,
    %838 = vector.extract_strided_slice %813 {offsets = [0, 1], sizes = [4, 255], strides = [1, 1]} : vector<4x256xf32> to vector<4x255xf32>
    %839 = vector.extract_strided_slice %20 {offsets = [0, 0], sizes = [1, 255], strides = [1, 1]} : vector<1x256xi1> to vector<1x255xi1>
    %cst_419 = arith.constant 0.000000e+00 : f32
    %840 = vector.shape_cast %839 : vector<1x255xi1> to vector<1x255xi1>
    %841 = vector.broadcast %840 : vector<1x255xi1> to vector<4x255xi1>
    %842 = vector.broadcast %cst_419 : f32 to vector<4x255xf32>
    %843 = arith.select %841, %838, %842 : vector<4x255xi1>, vector<4x255xf32>
    %c140_420 = arith.constant 140 : index
    %c0_421 = arith.constant 0 : index
    %844 = vector.load %arg9[%c140_420, %c0_421] : memref<200x256xf32, #tpu.memory_space<vmem>>, vector<4x255xf32>
    tpu.vector_store %arg9[%c140_420, %c0_421], %843 {strides = array<i32>} : memref<200x256xf32, #tpu.memory_space<vmem>>, vector<4x255xf32>,
    %845 = vector.extract_strided_slice %813 {offsets = [0, 15], sizes = [4, 241], strides = [1, 1]} : vector<4x256xf32> to vector<4x241xf32>
    %846 = vector.extract_strided_slice %18 {offsets = [0, 0], sizes = [1, 241], strides = [1, 1]} : vector<1x256xi1> to vector<1x241xi1>
    %cst_422 = arith.constant 0.000000e+00 : f32
    %847 = vector.shape_cast %846 : vector<1x241xi1> to vector<1x241xi1>
    %848 = vector.broadcast %847 : vector<1x241xi1> to vector<4x241xi1>
    %849 = vector.broadcast %cst_422 : f32 to vector<4x241xf32>
    %850 = arith.select %848, %845, %849 : vector<4x241xi1>, vector<4x241xf32>
    %c144_423 = arith.constant 144 : index
    %c0_424 = arith.constant 0 : index
    %851 = vector.load %arg9[%c144_423, %c0_424] : memref<200x256xf32, #tpu.memory_space<vmem>>, vector<4x241xf32>
    tpu.vector_store %arg9[%c144_423, %c0_424], %850 {strides = array<i32>} : memref<200x256xf32, #tpu.memory_space<vmem>>, vector<4x241xf32>,
    %852 = vector.extract_strided_slice %813 {offsets = [0, 16], sizes = [4, 240], strides = [1, 1]} : vector<4x256xf32> to vector<4x240xf32>
    %c148_425 = arith.constant 148 : index
    %c0_426 = arith.constant 0 : index
    %853 = vector.load %arg9[%c148_425, %c0_426] : memref<200x256xf32, #tpu.memory_space<vmem>>, vector<4x240xf32>
    tpu.vector_store %arg9[%c148_425, %c0_426], %852 {strides = array<i32>} : memref<200x256xf32, #tpu.memory_space<vmem>>, vector<4x240xf32>,
    %854 = vector.extract_strided_slice %813 {offsets = [0, 17], sizes = [4, 239], strides = [1, 1]} : vector<4x256xf32> to vector<4x239xf32>
    %855 = vector.extract_strided_slice %20 {offsets = [0, 0], sizes = [1, 239], strides = [1, 1]} : vector<1x256xi1> to vector<1x239xi1>
    %cst_427 = arith.constant 0.000000e+00 : f32
    %856 = vector.shape_cast %855 : vector<1x239xi1> to vector<1x239xi1>
    %857 = vector.broadcast %856 : vector<1x239xi1> to vector<4x239xi1>
    %858 = vector.broadcast %cst_427 : f32 to vector<4x239xf32>
    %859 = arith.select %857, %854, %858 : vector<4x239xi1>, vector<4x239xf32>
    %c152_428 = arith.constant 152 : index
    %c0_429 = arith.constant 0 : index
    %860 = vector.load %arg9[%c152_428, %c0_429] : memref<200x256xf32, #tpu.memory_space<vmem>>, vector<4x239xf32>
    tpu.vector_store %arg9[%c152_428, %c0_429], %859 {strides = array<i32>} : memref<200x256xf32, #tpu.memory_space<vmem>>, vector<4x239xf32>,
    %c2_430 = arith.constant 2 : index
    %c0_431 = arith.constant 0 : index
    %c0_432 = arith.constant 0 : index
    %861 = vector.load %arg5[%c2_430, %c0_431, %c0_432] : memref<3x4x160xbf16, #tpu.memory_space<vmem>>, vector<1x4x160xbf16>
    %862 = vector.shape_cast %861 : vector<1x4x160xbf16> to vector<4x160xbf16>
    %c0_433 = arith.constant 0 : index
    %c0_434 = arith.constant 0 : index
    %863 = vector.load %arg9[%c0_433, %c0_434] : memref<200x256xf32, #tpu.memory_space<vmem>>, vector<160x256xf32>
    %864 = arith.truncf %863 : vector<160x256xf32> to vector<160x256xbf16>
    %cst_435 = arith.constant dense<0.000000e+00> : vector<4x256xf32>
    %865 = tpu.matmul %862, %864, %cst_435 {dimension_numbers = #tpu.dot_dimension_numbers<[1], [0], [0], [1], [0, 0, 1, 1], [], []>} : vector<4x160xbf16>, vector<160x256xbf16>, vector<4x256xf32> -> vector<4x256xf32>
    %c13 = arith.constant 13 : index
    %c0_436 = arith.constant 0 : index
    %c0_437 = arith.constant 0 : index
    %866 = vector.load %arg7[%c13, %c0_436, %c0_437] : memref<15x4x1xf32, #tpu.memory_space<vmem>>, vector<1x4x1xf32>
    %867 = vector.shape_cast %866 : vector<1x4x1xf32> to vector<4x1xf32>
    %868 = vector.broadcast %867 : vector<4x1xf32> to vector<4x256xf32>
    %869 = arith.addf %865, %868 : vector<4x256xf32>
    %cst_438 = arith.constant 0.000000e+00 : f32
    %870 = vector.broadcast %cst_438 : f32 to vector<4x256xf32>
    %871 = arith.cmpf oge, %869, %870 : vector<4x256xf32>
    %cst_439 = arith.constant 0.00999999977 : f32
    %872 = vector.broadcast %cst_439 : f32 to vector<4x256xf32>
    %873 = arith.mulf %872, %869 : vector<4x256xf32>
    %874 = arith.select %871, %869, %873 : vector<4x256xi1>, vector<4x256xf32>
    %875 = vector.extract_strided_slice %874 {offsets = [0, 0], sizes = [4, 239], strides = [1, 1]} : vector<4x256xf32> to vector<4x239xf32>
    %876 = vector.extract_strided_slice %18 {offsets = [0, 17], sizes = [1, 239], strides = [1, 1]} : vector<1x256xi1> to vector<1x239xi1>
    %cst_440 = arith.constant 0.000000e+00 : f32
    %877 = vector.shape_cast %876 : vector<1x239xi1> to vector<1x239xi1>
    %878 = vector.broadcast %877 : vector<1x239xi1> to vector<4x239xi1>
    %879 = vector.broadcast %cst_440 : f32 to vector<4x239xf32>
    %880 = arith.select %878, %875, %879 : vector<4x239xi1>, vector<4x239xf32>
    %c160_441 = arith.constant 160 : index
    %c17_442 = arith.constant 17 : index
    %881 = vector.load %arg9[%c160_441, %c17_442] : memref<200x256xf32, #tpu.memory_space<vmem>>, vector<4x239xf32>
    tpu.vector_store %arg9[%c160_441, %c17_442], %880 {strides = array<i32>} : memref<200x256xf32, #tpu.memory_space<vmem>>, vector<4x239xf32>,
    %882 = vector.extract_strided_slice %874 {offsets = [0, 0], sizes = [4, 240], strides = [1, 1]} : vector<4x256xf32> to vector<4x240xf32>
    %c164_443 = arith.constant 164 : index
    %c16_444 = arith.constant 16 : index
    %883 = vector.load %arg9[%c164_443, %c16_444] : memref<200x256xf32, #tpu.memory_space<vmem>>, vector<4x240xf32>
    tpu.vector_store %arg9[%c164_443, %c16_444], %882 {strides = array<i32>} : memref<200x256xf32, #tpu.memory_space<vmem>>, vector<4x240xf32>,
    %884 = vector.extract_strided_slice %874 {offsets = [0, 0], sizes = [4, 241], strides = [1, 1]} : vector<4x256xf32> to vector<4x241xf32>
    %885 = vector.extract_strided_slice %20 {offsets = [0, 15], sizes = [1, 241], strides = [1, 1]} : vector<1x256xi1> to vector<1x241xi1>
    %cst_445 = arith.constant 0.000000e+00 : f32
    %886 = vector.shape_cast %885 : vector<1x241xi1> to vector<1x241xi1>
    %887 = vector.broadcast %886 : vector<1x241xi1> to vector<4x241xi1>
    %888 = vector.broadcast %cst_445 : f32 to vector<4x241xf32>
    %889 = arith.select %887, %884, %888 : vector<4x241xi1>, vector<4x241xf32>
    %c168_446 = arith.constant 168 : index
    %c15_447 = arith.constant 15 : index
    %890 = vector.load %arg9[%c168_446, %c15_447] : memref<200x256xf32, #tpu.memory_space<vmem>>, vector<4x241xf32>
    tpu.vector_store %arg9[%c168_446, %c15_447], %889 {strides = array<i32>} : memref<200x256xf32, #tpu.memory_space<vmem>>, vector<4x241xf32>,
    %891 = vector.extract_strided_slice %874 {offsets = [0, 0], sizes = [4, 255], strides = [1, 1]} : vector<4x256xf32> to vector<4x255xf32>
    %892 = vector.extract_strided_slice %18 {offsets = [0, 1], sizes = [1, 255], strides = [1, 1]} : vector<1x256xi1> to vector<1x255xi1>
    %cst_448 = arith.constant 0.000000e+00 : f32
    %893 = vector.shape_cast %892 : vector<1x255xi1> to vector<1x255xi1>
    %894 = vector.broadcast %893 : vector<1x255xi1> to vector<4x255xi1>
    %895 = vector.broadcast %cst_448 : f32 to vector<4x255xf32>
    %896 = arith.select %894, %891, %895 : vector<4x255xi1>, vector<4x255xf32>
    %c172_449 = arith.constant 172 : index
    %c1_450 = arith.constant 1 : index
    %897 = vector.load %arg9[%c172_449, %c1_450] : memref<200x256xf32, #tpu.memory_space<vmem>>, vector<4x255xf32>
    tpu.vector_store %arg9[%c172_449, %c1_450], %896 {strides = array<i32>} : memref<200x256xf32, #tpu.memory_space<vmem>>, vector<4x255xf32>,
    %c176_451 = arith.constant 176 : index
    %c0_452 = arith.constant 0 : index
    %898 = vector.load %arg9[%c176_451, %c0_452] : memref<200x256xf32, #tpu.memory_space<vmem>>, vector<4x256xf32>
    tpu.vector_store %arg9[%c176_451, %c0_452], %874 {strides = array<i32>} : memref<200x256xf32, #tpu.memory_space<vmem>>, vector<4x256xf32>,
    %899 = vector.extract_strided_slice %874 {offsets = [0, 1], sizes = [4, 255], strides = [1, 1]} : vector<4x256xf32> to vector<4x255xf32>
    %900 = vector.extract_strided_slice %20 {offsets = [0, 0], sizes = [1, 255], strides = [1, 1]} : vector<1x256xi1> to vector<1x255xi1>
    %cst_453 = arith.constant 0.000000e+00 : f32
    %901 = vector.shape_cast %900 : vector<1x255xi1> to vector<1x255xi1>
    %902 = vector.broadcast %901 : vector<1x255xi1> to vector<4x255xi1>
    %903 = vector.broadcast %cst_453 : f32 to vector<4x255xf32>
    %904 = arith.select %902, %899, %903 : vector<4x255xi1>, vector<4x255xf32>
    %c180_454 = arith.constant 180 : index
    %c0_455 = arith.constant 0 : index
    %905 = vector.load %arg9[%c180_454, %c0_455] : memref<200x256xf32, #tpu.memory_space<vmem>>, vector<4x255xf32>
    tpu.vector_store %arg9[%c180_454, %c0_455], %904 {strides = array<i32>} : memref<200x256xf32, #tpu.memory_space<vmem>>, vector<4x255xf32>,
    %906 = vector.extract_strided_slice %874 {offsets = [0, 15], sizes = [4, 241], strides = [1, 1]} : vector<4x256xf32> to vector<4x241xf32>
    %907 = vector.extract_strided_slice %18 {offsets = [0, 0], sizes = [1, 241], strides = [1, 1]} : vector<1x256xi1> to vector<1x241xi1>
    %cst_456 = arith.constant 0.000000e+00 : f32
    %908 = vector.shape_cast %907 : vector<1x241xi1> to vector<1x241xi1>
    %909 = vector.broadcast %908 : vector<1x241xi1> to vector<4x241xi1>
    %910 = vector.broadcast %cst_456 : f32 to vector<4x241xf32>
    %911 = arith.select %909, %906, %910 : vector<4x241xi1>, vector<4x241xf32>
    %c184_457 = arith.constant 184 : index
    %c0_458 = arith.constant 0 : index
    %912 = vector.load %arg9[%c184_457, %c0_458] : memref<200x256xf32, #tpu.memory_space<vmem>>, vector<4x241xf32>
    tpu.vector_store %arg9[%c184_457, %c0_458], %911 {strides = array<i32>} : memref<200x256xf32, #tpu.memory_space<vmem>>, vector<4x241xf32>,
    %913 = vector.extract_strided_slice %874 {offsets = [0, 16], sizes = [4, 240], strides = [1, 1]} : vector<4x256xf32> to vector<4x240xf32>
    %c188_459 = arith.constant 188 : index
    %c0_460 = arith.constant 0 : index
    %914 = vector.load %arg9[%c188_459, %c0_460] : memref<200x256xf32, #tpu.memory_space<vmem>>, vector<4x240xf32>
    tpu.vector_store %arg9[%c188_459, %c0_460], %913 {strides = array<i32>} : memref<200x256xf32, #tpu.memory_space<vmem>>, vector<4x240xf32>,
    %915 = vector.extract_strided_slice %874 {offsets = [0, 17], sizes = [4, 239], strides = [1, 1]} : vector<4x256xf32> to vector<4x239xf32>
    %916 = vector.extract_strided_slice %20 {offsets = [0, 0], sizes = [1, 239], strides = [1, 1]} : vector<1x256xi1> to vector<1x239xi1>
    %cst_461 = arith.constant 0.000000e+00 : f32
    %917 = vector.shape_cast %916 : vector<1x239xi1> to vector<1x239xi1>
    %918 = vector.broadcast %917 : vector<1x239xi1> to vector<4x239xi1>
    %919 = vector.broadcast %cst_461 : f32 to vector<4x239xf32>
    %920 = arith.select %918, %915, %919 : vector<4x239xi1>, vector<4x239xf32>
    %c192_462 = arith.constant 192 : index
    %c0_463 = arith.constant 0 : index
    %921 = vector.load %arg9[%c192_462, %c0_463] : memref<200x256xf32, #tpu.memory_space<vmem>>, vector<4x239xf32>
    tpu.vector_store %arg9[%c192_462, %c0_463], %920 {strides = array<i32>} : memref<200x256xf32, #tpu.memory_space<vmem>>, vector<4x239xf32>,
    %c2_464 = arith.constant 2 : index
    %c0_465 = arith.constant 0 : index
    %c0_466 = arith.constant 0 : index
    %922 = vector.load %arg6[%c2_464, %c0_465, %c0_466] : memref<3x4x200xbf16, #tpu.memory_space<vmem>>, vector<1x4x200xbf16>
    %923 = vector.shape_cast %922 : vector<1x4x200xbf16> to vector<4x200xbf16>
    %c0_467 = arith.constant 0 : index
    %c0_468 = arith.constant 0 : index
    %924 = vector.load %arg9[%c0_467, %c0_468] : memref<200x256xf32, #tpu.memory_space<vmem>>, vector<200x256xf32>
    %925 = arith.truncf %924 : vector<200x256xf32> to vector<200x256xbf16>
    %cst_469 = arith.constant dense<0.000000e+00> : vector<4x256xf32>
    %926 = tpu.matmul %923, %925, %cst_469 {dimension_numbers = #tpu.dot_dimension_numbers<[1], [0], [0], [1], [0, 0, 1, 1], [], []>} : vector<4x200xbf16>, vector<200x256xbf16>, vector<4x256xf32> -> vector<4x256xf32>
    %c14 = arith.constant 14 : index
    %c0_470 = arith.constant 0 : index
    %c0_471 = arith.constant 0 : index
    %927 = vector.load %arg7[%c14, %c0_470, %c0_471] : memref<15x4x1xf32, #tpu.memory_space<vmem>>, vector<1x4x1xf32>
    %928 = vector.shape_cast %927 : vector<1x4x1xf32> to vector<4x1xf32>
    %929 = vector.broadcast %928 : vector<4x1xf32> to vector<4x256xf32>
    %930 = arith.addf %926, %929 : vector<4x256xf32>
    %cst_472 = arith.constant 2.000000e-01 : f32
    %931 = vector.broadcast %cst_472 : f32 to vector<4x256xf32>
    %932 = arith.mulf %930, %931 : vector<4x256xf32>
    %933 = arith.addf %932, %630 : vector<4x256xf32>
    %cst_473 = arith.constant 2.000000e-01 : f32
    %934 = vector.broadcast %cst_473 : f32 to vector<4x256xf32>
    %935 = arith.mulf %933, %934 : vector<4x256xf32>
    %936 = arith.addf %935, %24 : vector<4x256xf32>
    %c0_474 = arith.constant 0 : index
    %c0_475 = arith.constant 0 : index
    %c0_476 = arith.constant 0 : index
    %937 = vector.load %arg8[%c0_474, %c0_475, %c0_476] : memref<1x4x256xf32, #tpu.memory_space<vmem>>, vector<1x4x256xf32>
    %938 = vector.shape_cast %937 : vector<1x4x256xf32> to vector<4x256xf32>
    %939 = vector.shape_cast %936 : vector<4x256xf32> to vector<1x4x256xf32>
    tpu.vector_store %arg8[%c0_474, %c0_475, %c0_476], %939 {strides = array<i32>} : memref<1x4x256xf32, #tpu.memory_space<vmem>>, vector<1x4x256xf32>,
    return
  }
  func.func @transform_0(%arg0: i32) -> (i32, i32, i32) {
    %c0_i32 = arith.constant 0 : i32
    %c0_i32_0 = arith.constant 0 : i32
    %c0_i32_1 = arith.constant 0 : i32
    return %arg0, %c0_i32, %c0_i32_0 : i32, i32, i32
  }
  func.func @transform_1(%arg0: i32) -> (i32, i32, i32) {
    %c0_i32 = arith.constant 0 : i32
    %c0_i32_0 = arith.constant 0 : i32
    %c0_i32_1 = arith.constant 0 : i32
    %c0_i32_2 = arith.constant 0 : i32
    return %c0_i32, %c0_i32_0, %c0_i32_1 : i32, i32, i32
  }
  func.func @transform_2(%arg0: i32) -> (i32, i32, i32) {
    %c0_i32 = arith.constant 0 : i32
    %c0_i32_0 = arith.constant 0 : i32
    %c0_i32_1 = arith.constant 0 : i32
    %c0_i32_2 = arith.constant 0 : i32
    return %c0_i32, %c0_i32_0, %c0_i32_1 : i32, i32, i32
  }
  func.func @transform_3(%arg0: i32) -> (i32, i32, i32) {
    %c0_i32 = arith.constant 0 : i32
    %c0_i32_0 = arith.constant 0 : i32
    %c0_i32_1 = arith.constant 0 : i32
    %c0_i32_2 = arith.constant 0 : i32
    return %c0_i32, %c0_i32_0, %c0_i32_1 : i32, i32, i32
  }
  func.func @transform_4(%arg0: i32) -> (i32, i32, i32) {
    %c0_i32 = arith.constant 0 : i32
    %c0_i32_0 = arith.constant 0 : i32
    %c0_i32_1 = arith.constant 0 : i32
    %c0_i32_2 = arith.constant 0 : i32
    return %c0_i32, %c0_i32_0, %c0_i32_1 : i32, i32, i32
  }
  func.func @transform_5(%arg0: i32) -> (i32, i32, i32) {
    %c0_i32 = arith.constant 0 : i32
    %c0_i32_0 = arith.constant 0 : i32
    %c0_i32_1 = arith.constant 0 : i32
    %c0_i32_2 = arith.constant 0 : i32
    return %c0_i32, %c0_i32_0, %c0_i32_1 : i32, i32, i32
  }
  func.func @transform_6(%arg0: i32) -> (i32, i32, i32) {
    %c0_i32 = arith.constant 0 : i32
    %c0_i32_0 = arith.constant 0 : i32
    %c0_i32_1 = arith.constant 0 : i32
    %c0_i32_2 = arith.constant 0 : i32
    return %c0_i32, %c0_i32_0, %c0_i32_1 : i32, i32, i32
  }
  func.func @transform_7(%arg0: i32) -> (i32, i32, i32) {
    %c0_i32 = arith.constant 0 : i32
    %c0_i32_0 = arith.constant 0 : i32
    %c0_i32_1 = arith.constant 0 : i32
    return %arg0, %c0_i32, %c0_i32_0 : i32, i32, i32
  }
}

</mosaic_0001>

<llo_original>
// kernel: res_in_res_dense_block.1
$region0: #{res_in_res_dense_block.1}
  #allocation0 [shape = 'u32[]', space=smem, size = 0x4, offset = 0x4, fixed_abs, tag = 'smem constant byte address 0x4 - core index']
  #allocation1 [shape = 'u32[72,128]{1,0:T(1,128)}', space=vmem, size = 0x9000, scoped, tag = 'internal scratch']
  #allocation2 [shape = 'f32[200,256]{1,0:T(8,128)}', space=vmem, size = 0x32000, scoped, tag = 'scratch operand']
  %s0 = inlined_call_operand.vmem [shape: f32[2,4,256], index: 0, kind: input, shape index: {}]
  %s1 = inlined_call_operand.vmem [shape: bf16[3,4,40], index: 1, kind: input, shape index: {}]
  %s2 = inlined_call_operand.vmem [shape: bf16[3,4,80], index: 2, kind: input, shape index: {}]
  %s3 = inlined_call_operand.vmem [shape: bf16[3,4,120], index: 3, kind: input, shape index: {}]
  %s4 = inlined_call_operand.vmem [shape: bf16[3,4,160], index: 4, kind: input, shape index: {}]
  %s5 = inlined_call_operand.vmem [shape: bf16[3,4,200], index: 5, kind: input, shape index: {}]
  %s6 = inlined_call_operand.vmem [shape: f32[15,4,1], index: 6, kind: input, shape index: {}]
  %s7 = inlined_call_operand.vmem [shape: f32[2,4,256], index: 7, kind: output, shape index: {}]
  %s8 = sld [smem:[#allocation0]]
  $region61: #{res_in_res_dense_block.1} parent=0
    _
  %s10 = ssub.s32 1, %s8
  %s11 = scalar_select 0, %s10, %s8
  loop: start=0, step=1, limit=4
  $region2: #{res_in_res_dense_block.1} parent=0 // loop_pre_header
    _
  $region3: #{res_in_res_dense_block.1} parent=0 // loop_header
    %s13 = sphi 0, %s17
    %p14 = scmp.ge.s32.totalorder %s13, 4
    %s23 = sphi 0, %s25
    %s26 = sphi 0, %s23
    %s27 = sphi 0, %s26
    %s43 = sphi 0, %s27
    %s47 = sphi 0, %s47
    %s49 = sphi 0, %s47
    %s50 = sphi 0, %s49
    %s64 = sphi 0, %s50
    %s68 = sphi 0, %s68
    %s70 = sphi 0, %s68
    %s71 = sphi 0, %s70
    %s85 = sphi 0, %s71
    %s89 = sphi 0, %s89
    %s91 = sphi 0, %s89
    %s92 = sphi 0, %s91
    %s106 = sphi 0, %s92
    %s110 = sphi 0, %s110
    %s112 = sphi 0, %s110
    %s113 = sphi 0, %s112
    %s127 = sphi 0, %s113
    %s131 = sphi 0, %s131
    %s133 = sphi 0, %s131
    %s134 = sphi 0, %s133
    %s148 = sphi 0, %s134
    %s152 = sphi 0, %s152
    %s154 = sphi 0, %s152
    %s155 = sphi 0, %s154
    %s169 = sphi 0, %s155
    %s175 = sphi 0, %s177
    %s178 = sphi 0, %s175
    %s179 = sphi 0, %s178
    %s195 = sphi 0, %s179
  $region4: #{res_in_res_dense_block.1} parent=0 // loop_header_branch
    %16 = sbr.rel (%p14) target = $region8
  $region5: #{res_in_res_dense_block.1} parent=0 // loop_body
    %s18 = ssub.s32 %s13, 1
    %s19 = ssub.s32 %s13, 2
    %s20 = sadd.s32 %s13, 1
    %s21 = ssub.s32 %s13, %s20
    %p22 = scmp.eq.s32.totalorder %s21, 0
    %s24 = sadd.s32 %s23, 1
    %s25 = scalar_select %p22, %s23, %s24
    %p28 = pneg %p22
    %p29 = scmp.eq.s32.totalorder %s13, 1
    %p30 = por %p28, %p29
    %p31 = scmp.ne.s32.totalorder %s23, %s26
    %p32 = scmp.eq.s32.totalorder %s13, 0
    %p33 = por %p31, %p32
    %p34 = scmp.ne.s32.totalorder %s23, %s26
    %p35 = scmp.eq.s32.totalorder %s18, 1
    %p36 = por %p34, %p35
    %p37 = scmp.ne.s32.totalorder %s26, %s27
    %p38 = scmp.eq.s32.totalorder %s18, 0
    %p39 = por %p37, %p38
    %p40 = scmp.ne.s32.totalorder %s26, %s27
    %p41 = scmp.eq.s32.totalorder %s19, 1
    %p42 = por %p40, %p41
    %p44 = scmp.ne.s32.totalorder %s27, %s43
    %p45 = scmp.eq.s32.totalorder %s19, 0
    %p46 = por %p44, %p45
    %s48 = sadd.s32 %s47, 1
    %p51 = scmp.eq.s32.totalorder %s13, 1
    %p52 = scmp.ne.s32.totalorder %s47, %s49
    %p53 = scmp.eq.s32.totalorder %s13, 0
    %p54 = por %p52, %p53
    %p55 = scmp.ne.s32.totalorder %s47, %s49
    %p56 = scmp.eq.s32.totalorder %s18, 1
    %p57 = por %p55, %p56
    %p58 = scmp.ne.s32.totalorder %s49, %s50
    %p59 = scmp.eq.s32.totalorder %s18, 0
    %p60 = por %p58, %p59
    %p61 = scmp.ne.s32.totalorder %s49, %s50
    %p62 = scmp.eq.s32.totalorder %s19, 1
    %p63 = por %p61, %p62
    %p65 = scmp.ne.s32.totalorder %s50, %s64
    %p66 = scmp.eq.s32.totalorder %s19, 0
    %p67 = por %p65, %p66
    %s69 = sadd.s32 %s68, 1
    %p72 = scmp.eq.s32.totalorder %s13, 1
    %p73 = scmp.ne.s32.totalorder %s68, %s70
    %p74 = scmp.eq.s32.totalorder %s13, 0
    %p75 = por %p73, %p74
    %p76 = scmp.ne.s32.totalorder %s68, %s70
    %p77 = scmp.eq.s32.totalorder %s18, 1
    %p78 = por %p76, %p77
    %p79 = scmp.ne.s32.totalorder %s70, %s71
    %p80 = scmp.eq.s32.totalorder %s18, 0
    %p81 = por %p79, %p80
    %p82 = scmp.ne.s32.totalorder %s70, %s71
    %p83 = scmp.eq.s32.totalorder %s19, 1
    %p84 = por %p82, %p83
    %p86 = scmp.ne.s32.totalorder %s71, %s85
    %p87 = scmp.eq.s32.totalorder %s19, 0
    %p88 = por %p86, %p87
    %s90 = sadd.s32 %s89, 1
    %p93 = scmp.eq.s32.totalorder %s13, 1
    %p94 = scmp.ne.s32.totalorder %s89, %s91
    %p95 = scmp.eq.s32.totalorder %s13, 0
    %p96 = por %p94, %p95
    %p97 = scmp.ne.s32.totalorder %s89, %s91
    %p98 = scmp.eq.s32.totalorder %s18, 1
    %p99 = por %p97, %p98
    %p100 = scmp.ne.s32.totalorder %s91, %s92
    %p101 = scmp.eq.s32.totalorder %s18, 0
    %p102 = por %p100, %p101
    %p103 = scmp.ne.s32.totalorder %s91, %s92
    %p104 = scmp.eq.s32.totalorder %s19, 1
    %p105 = por %p103, %p104
    %p107 = scmp.ne.s32.totalorder %s92, %s106
    %p108 = scmp.eq.s32.totalorder %s19, 0
    %p109 = por %p107, %p108
    %s111 = sadd.s32 %s110, 1
    %p114 = scmp.eq.s32.totalorder %s13, 1
    %p115 = scmp.ne.s32.totalorder %s110, %s112
    %p116 = scmp.eq.s32.totalorder %s13, 0
    %p117 = por %p115, %p116
    %p118 = scmp.ne.s32.totalorder %s110, %s112
    %p119 = scmp.eq.s32.totalorder %s18, 1
    %p120 = por %p118, %p119
    %p121 = scmp.ne.s32.totalorder %s112, %s113
    %p122 = scmp.eq.s32.totalorder %s18, 0
    %p123 = por %p121, %p122
    %p124 = scmp.ne.s32.totalorder %s112, %s113
    %p125 = scmp.eq.s32.totalorder %s19, 1
    %p126 = por %p124, %p125
    %p128 = scmp.ne.s32.totalorder %s113, %s127
    %p129 = scmp.eq.s32.totalorder %s19, 0
    %p130 = por %p128, %p129
    %s132 = sadd.s32 %s131, 1
    %p135 = scmp.eq.s32.totalorder %s13, 1
    %p136 = scmp.ne.s32.totalorder %s131, %s133
    %p137 = scmp.eq.s32.totalorder %s13, 0
    %p138 = por %p136, %p137
    %p139 = scmp.ne.s32.totalorder %s131, %s133
    %p140 = scmp.eq.s32.totalorder %s18, 1
    %p141 = por %p139, %p140
    %p142 = scmp.ne.s32.totalorder %s133, %s134
    %p143 = scmp.eq.s32.totalorder %s18, 0
    %p144 = por %p142, %p143
    %p145 = scmp.ne.s32.totalorder %s133, %s134
    %p146 = scmp.eq.s32.totalorder %s19, 1
    %p147 = por %p145, %p146
    %p149 = scmp.ne.s32.totalorder %s134, %s148
    %p150 = scmp.eq.s32.totalorder %s19, 0
    %p151 = por %p149, %p150
    %s153 = sadd.s32 %s152, 1
    %p156 = scmp.eq.s32.totalorder %s13, 1
    %p157 = scmp.ne.s32.totalorder %s152, %s154
    %p158 = scmp.eq.s32.totalorder %s13, 0
    %p159 = por %p157, %p158
    %p160 = scmp.ne.s32.totalorder %s152, %s154
    %p161 = scmp.eq.s32.totalorder %s18, 1
    %p162 = por %p160, %p161
    %p163 = scmp.ne.s32.totalorder %s154, %s155
    %p164 = scmp.eq.s32.totalorder %s18, 0
    %p165 = por %p163, %p164
    %p166 = scmp.ne.s32.totalorder %s154, %s155
    %p167 = scmp.eq.s32.totalorder %s19, 1
    %p168 = por %p166, %p167
    %p170 = scmp.ne.s32.totalorder %s155, %s169
    %p171 = scmp.eq.s32.totalorder %s19, 0
    %p172 = por %p170, %p171
    %s173 = ssub.s32 %s13, %s20
    %p174 = scmp.eq.s32.totalorder %s173, 0
    %s176 = sadd.s32 %s175, 1
    %s177 = scalar_select %p174, %s175, %s176
    %p180 = pneg %p174
    %p181 = scmp.eq.s32.totalorder %s13, 1
    %p182 = por %p180, %p181
    %p183 = scmp.ne.s32.totalorder %s175, %s178
    %p184 = scmp.eq.s32.totalorder %s13, 0
    %p185 = por %p183, %p184
    %p186 = scmp.ne.s32.totalorder %s175, %s178
    %p187 = scmp.eq.s32.totalorder %s18, 1
    %p188 = por %p186, %p187
    %p189 = scmp.ne.s32.totalorder %s178, %s179
    %p190 = scmp.eq.s32.totalorder %s18, 0
    %p191 = por %p189, %p190
    %p192 = scmp.ne.s32.totalorder %s178, %s179
    %p193 = scmp.eq.s32.totalorder %s19, 1
    %p194 = por %p192, %p193
    %p196 = scmp.ne.s32.totalorder %s179, %s195
    %p197 = scmp.eq.s32.totalorder %s19, 0
    %p198 = por %p196, %p197
    %p199 = scmp.le.s32.totalorder 1, %s13
    %p200 = scmp.lt.s32.totalorder %s13, 3
    %p201 = pnand %p199, %p200
    %p202 = pneg %p201
    // Predicated region
    $region9: #{res_in_res_dense_block.1} parent=5 // pred_check
      _
    $region10: #{res_in_res_dense_block.1} parent=5 // pred_check_branch
      %204 = sbr.rel (%p201) target = $region12
    $region11: #{res_in_res_dense_block.1} parent=5 // pred_region
      %s205 = ssub.s32 %s13, 1
      // Predicated region
      $region13: #{res_in_res_dense_block.1} parent=11 // pred_check
        %p206 = pneg %p60
      $region14: #{res_in_res_dense_block.1} parent=11 // pred_check_branch
        %208 = sbr.rel (%p206) target = $region16
      $region15: #{res_in_res_dense_block.1} parent=11 // pred_region
        _
      $region16: #{res_in_res_dense_block.1} parent=11 // pred_fallthru
        _
      // Predicated region
      $region17: #{res_in_res_dense_block.1} parent=11 // pred_check
        %p209 = pneg %p81
      $region18: #{res_in_res_dense_block.1} parent=11 // pred_check_branch
        %211 = sbr.rel (%p209) target = $region20
      $region19: #{res_in_res_dense_block.1} parent=11 // pred_region
        _
      $region20: #{res_in_res_dense_block.1} parent=11 // pred_fallthru
        _
      // Predicated region
      $region21: #{res_in_res_dense_block.1} parent=11 // pred_check
        %p212 = pneg %p102
      $region22: #{res_in_res_dense_block.1} parent=11 // pred_check_branch
        %214 = sbr.rel (%p212) target = $region24
      $region23: #{res_in_res_dense_block.1} parent=11 // pred_region
        _
      $region24: #{res_in_res_dense_block.1} parent=11 // pred_fallthru
        _
      // Predicated region
      $region25: #{res_in_res_dense_block.1} parent=11 // pred_check
        %p215 = pneg %p123
      $region26: #{res_in_res_dense_block.1} parent=11 // pred_check_branch
        %217 = sbr.rel (%p215) target = $region28
      $region27: #{res_in_res_dense_block.1} parent=11 // pred_region
        _
      $region28: #{res_in_res_dense_block.1} parent=11 // pred_fallthru
        _
      // Predicated region
      $region29: #{res_in_res_dense_block.1} parent=11 // pred_check
        %p218 = pneg %p144
      $region30: #{res_in_res_dense_block.1} parent=11 // pred_check_branch
        %220 = sbr.rel (%p218) target = $region32
      $region31: #{res_in_res_dense_block.1} parent=11 // pred_region
        _
      $region32: #{res_in_res_dense_block.1} parent=11 // pred_fallthru
        _
      // Predicated region
      $region33: #{res_in_res_dense_block.1} parent=11 // pred_check
        %p221 = pneg %p165
      $region34: #{res_in_res_dense_block.1} parent=11 // pred_check_branch
        %223 = sbr.rel (%p221) target = $region36
      $region35: #{res_in_res_dense_block.1} parent=11 // pred_region
        _
      $region36: #{res_in_res_dense_block.1} parent=11 // pred_fallthru
        _
    $region12: #{res_in_res_dense_block.1} parent=5 // pred_fallthru
      _
    %p224 = scmp.lt.s32.totalorder %s13, 2
    // Predicated region
    $region37: #{res_in_res_dense_block.1} parent=5 // pred_check
      %p225 = pneg %p224
    $region38: #{res_in_res_dense_block.1} parent=5 // pred_check_branch
      %227 = sbr.rel (%p225) target = $region40
    $region39: #{res_in_res_dense_block.1} parent=5 // pred_region
      // Predicated region
      $region41: #{res_in_res_dense_block.1} parent=39 // pred_check
        %p228 = pneg %p33
      $region42: #{res_in_res_dense_block.1} parent=39 // pred_check_branch
        %230 = sbr.rel (%p228) target = $region44
      $region43: #{res_in_res_dense_block.1} parent=39 // pred_region
        %p231 = scmp.lt.s32.totalorder %s13, 1
        %s232 = scalar_select %p231, %s13, 1
        %s233 = smul.addr %s232, 2
        %s234 = smul.addr %s233, 4
        %s235 = scalar_lea.vmem %s0, %s234
      $region44: #{res_in_res_dense_block.1} parent=39 // pred_fallthru
        _
    $region40: #{res_in_res_dense_block.1} parent=5 // pred_fallthru
      _
    %p236 = scmp.le.s32.totalorder 1, %s13
    %p237 = scmp.lt.s32.totalorder %s13, 3
    %p238 = pnand %p236, %p237
    %p239 = pneg %p238
    // Predicated region
    $region45: #{res_in_res_dense_block.1} parent=5 // pred_check
      _
    $region46: #{res_in_res_dense_block.1} parent=5 // pred_check_branch
      %241 = sbr.rel (%p238) target = $region48
    $region47: #{res_in_res_dense_block.1} parent=5 // pred_region
      %s242 = ssub.s32 %s13, 1
      %p243 = scmp.lt.s32.totalorder %s18, 1
      %s244 = scalar_select %p243, %s18, 1
      %s245 = smul.addr %s244, 2
      %s246 = smul.addr %s245, 4
      %s247 = scalar_lea.vmem %s0, %s246
      %p248 = pneg %p39
      %p249 = pneg %p36
      %p250 = pneg %p60
      %p251 = pneg %p57
      %p252 = pneg %p81
      %p253 = pneg %p78
      %p254 = pneg %p102
      %p255 = pneg %p99
      %p256 = pneg %p123
      %p257 = pneg %p120
      %p258 = pneg %p144
      %p259 = pneg %p141
      %p260 = pneg %p165
      %p261 = pneg %p162
      %p262 = pneg %p191
      %p263 = pneg %p188
      %p264 = scmp.lt.s32.totalorder %s18, 1
      %s265 = scalar_select %p264, %s18, 1
      %s266 = smul.addr %s265, 2
      %s267 = smul.addr %s266, 4
      %s268 = scalar_lea.vmem %s7, %s267
      %p269 = scmp.lt.s32.totalorder %s18, 1
      %s270 = scalar_select %p269, %s18, 1
      %s271 = smul.addr %s270, 2
      %s272 = smul.addr %s271, 4
      %s273 = scalar_lea.vmem %s0, %s272
      %p274 = scmp.lt.s32.totalorder %s18, 1
      %s275 = scalar_select %p274, %s18, 1
      %s276 = smul.addr %s275, 2
      %s277 = smul.addr %s276, 4
      %s278 = scalar_lea.vmem %s7, %s277
      %v280 = vlaneseq
      %v281 = vand.u32 %v280, 127
      %v282 = vadd.s32 %v281, 128
      %vm283 = vcmp.lt.s32.totalorder %v281, 0
      %v284 = vsub.s32 0, %v281
      %v285 = vsel %vm283, %v284, %v281
      %v286 = vshrl.u32 %v285, 4
      %v287 = vand.u32 %v285, 15
      %v288 = vsub.s32 0, %v287
      %v289 = vsel %vm283, %v288, %v287
      %vm290 = vcmp.lt.s32.totalorder %v282, 0
      %v291 = vsub.s32 0, %v282
      %v292 = vsel %vm290, %v291, %v282
      %v293 = vshrl.u32 %v292, 4
      %v294 = vand.u32 %v292, 15
      %v295 = vsub.s32 0, %v294
      %v296 = vsel %vm290, %v295, %v294
      %vm297 = vcmp.ne.s32.totalorder %v289, 0
      %vm298 = vcmp.ne.s32.totalorder %v296, 0
      %vm299 = vcmp.lt.s32.totalorder %v289, 0
      %vm300 = vcmp.lt.s32.totalorder %v296, 0
      %vm301 = vmand %vm299, %vm297
      %vm302 = vmand %vm300, %vm298
      %v303 = vadd.s32 %v289, 16
      %v304 = vadd.s32 %v296, 16
      %v305 = vsel %vm301, %v303, %v289
      %v306 = vsel %vm302, %v304, %v296
      %vm307 = vcmp.ge.s32.totalorder %v305, 1
      %vm308 = vcmp.ge.s32.totalorder %v306, 1
      %vm309 = vcmp.le.s32.totalorder %v305, 14
      %vm310 = vcmp.le.s32.totalorder %v306, 14
      %311 = vst [vmem:[#allocation2] sm:$0xff] 0.0
      %312 = vst [vmem:[#allocation2 + $0x8] sm:$0xff] 0.0
      %313 = vst [vmem:[#allocation2 + $0x10] sm:$0xff] 0.0
      %314 = vst [vmem:[#allocation2 + $0x18] sm:$0xff] 0.0
      %315 = vst [vmem:[#allocation2 + $0x20] sm:$0xff] 0.0
      %316 = vst [vmem:[#allocation2 + $0x28] sm:$0xff] 0.0
      %317 = vst [vmem:[#allocation2 + $0x30] sm:$0xff] 0.0
      %318 = vst [vmem:[#allocation2 + $0x38] sm:$0xff] 0.0
      %319 = vst [vmem:[#allocation2 + $0x40] sm:$0xff] 0.0
      %320 = vst [vmem:[#allocation2 + $0x48] sm:$0xff] 0.0
      %321 = vst [vmem:[#allocation2 + $0x50] sm:$0xff] 0.0
      %322 = vst [vmem:[#allocation2 + $0x58] sm:$0xff] 0.0
      %323 = vst [vmem:[#allocation2 + $0x60] sm:$0xff] 0.0
      %324 = vst [vmem:[#allocation2 + $0x68] sm:$0xff] 0.0
      %325 = vst [vmem:[#allocation2 + $0x70] sm:$0xff] 0.0
      %326 = vst [vmem:[#allocation2 + $0x78] sm:$0xff] 0.0
      %327 = vst [vmem:[#allocation2 + $0x80] sm:$0xff] 0.0
      %328 = vst [vmem:[#allocation2 + $0x88] sm:$0xff] 0.0
      %329 = vst [vmem:[#allocation2 + $0x90] sm:$0xff] 0.0
      %330 = vst [vmem:[#allocation2 + $0x98] sm:$0xff] 0.0
      %331 = vst [vmem:[#allocation2 + $0xa0] sm:$0xff] 0.0
      %332 = vst [vmem:[#allocation2 + $0xa8] sm:$0xff] 0.0
      %333 = vst [vmem:[#allocation2 + $0xb0] sm:$0xff] 0.0
      %334 = vst [vmem:[#allocation2 + $0xb8] sm:$0xff] 0.0
      %335 = vst [vmem:[#allocation2 + $0xc0] sm:$0xff] 0.0
      %336 = vst [vmem:[#allocation2 + $0xc8] sm:$0xff] 0.0
      %337 = vst [vmem:[#allocation2 + $0xd0] sm:$0xff] 0.0
      %338 = vst [vmem:[#allocation2 + $0xd8] sm:$0xff] 0.0
      %339 = vst [vmem:[#allocation2 + $0xe0] sm:$0xff] 0.0
      %340 = vst [vmem:[#allocation2 + $0xe8] sm:$0xff] 0.0
      %341 = vst [vmem:[#allocation2 + $0xf0] sm:$0xff] 0.0
      %342 = vst [vmem:[#allocation2 + $0xf8] sm:$0xff] 0.0
      %343 = vst [vmem:[#allocation2 + $0x100] sm:$0xff] 0.0
      %344 = vst [vmem:[#allocation2 + $0x108] sm:$0xff] 0.0
      %345 = vst [vmem:[#allocation2 + $0x110] sm:$0xff] 0.0
      %346 = vst [vmem:[#allocation2 + $0x118] sm:$0xff] 0.0
      %347 = vst [vmem:[#allocation2 + $0x120] sm:$0xff] 0.0
      %348 = vst [vmem:[#allocation2 + $0x128] sm:$0xff] 0.0
      %349 = vst [vmem:[#allocation2 + $0x130] sm:$0xff] 0.0
      %350 = vst [vmem:[#allocation2 + $0x138] sm:$0xff] 0.0
      %351 = vst [vmem:[#allocation2 + $0x140] sm:$0xff] 0.0
      %352 = vst [vmem:[#allocation2 + $0x148] sm:$0xff] 0.0
      %353 = vst [vmem:[#allocation2 + $0x150] sm:$0xff] 0.0
      %354 = vst [vmem:[#allocation2 + $0x158] sm:$0xff] 0.0
      %355 = vst [vmem:[#allocation2 + $0x160] sm:$0xff] 0.0
      %356 = vst [vmem:[#allocation2 + $0x168] sm:$0xff] 0.0
      %357 = vst [vmem:[#allocation2 + $0x170] sm:$0xff] 0.0
      %358 = vst [vmem:[#allocation2 + $0x178] sm:$0xff] 0.0
      %359 = vst [vmem:[#allocation2 + $0x180] sm:$0xff] 0.0
      %360 = vst [vmem:[#allocation2 + $0x188] sm:$0xff] 0.0
      %v361 = vld [vmem:[%s273] sm:$0xff]
      %v362 = vsel %vm307, 1, 0
      %v363 = vsel %vm308, 1, 0
      %vm364 = vcmp.eq.s32.totalorder %v362, 1
      %vm365 = vcmp.eq.s32.totalorder %v363, 1
      %367 = vst [vmem:[#allocation1] ss:$2 sm:$0xff] %v361
      %v368 = vld.sshfl [vmem:[#allocation1] sm:$0xff pattern:$0x75316420]
      %v369 = vld.sshfl [vmem:[#allocation1 + $0x8] sm:$0xff pattern:$0x75316420]
      %370 = vrot.lane.b32.xlu0 %v368, 17
      %v371 = vpop.permute.xlu0 %370
      %372 = vrot.lane.b32.xlu0 %v369, 17
      %v373 = vpop.permute.xlu0 %372
      %vm374 = vcmask 138240
      %v375 = vsel %vm374, %v371, %v373
      %v378 = vsel %vm364, %v371, 0.0
      %v379 = vsel %vm365, %v375, 0.0
      %vm380 = vcmask 1043592
      %381 = vst.msk [vmem:[#allocation2] sm:$0xf] %vm380, %v378
      %382 = vst [vmem:[#allocation2 + $0x8] sm:$0xf] %v379
      %s383 = scalar_lea.vmem [#allocation1], 1
      %384 = vst [vmem:[%s383] ss:$2 sm:$0xff] %v361
      %v385 = vld.sshfl [vmem:[#allocation1] sm:$0xff pattern:$0x75316420]
      %v386 = vld.sshfl [vmem:[#allocation1 + $0x8] sm:$0xff pattern:$0x75316420]
      %387 = vrot.lane.b32.xlu0 %v385, 16
      %v388 = vpop.permute.xlu0 %387
      %389 = vrot.lane.b32.xlu0 %v386, 16
      %v390 = vpop.permute.xlu0 %389
      %vm391 = vcmask 130048
      %v392 = vsel %vm391, %v388, %v390
      %vm395 = vcmask 1047684
      %396 = vst.msk [vmem:[#allocation2] sm:$0xf0] %vm395, %v388
      %397 = vst [vmem:[#allocation2 + $0x8] sm:$0xf0] %v392
      %v398 = vsel %vm309, 1, 0
      %v399 = vsel %vm310, 1, 0
      %vm400 = vcmp.eq.s32.totalorder %v398, 1
      %vm401 = vcmp.eq.s32.totalorder %v399, 1
      %402 = vst [vmem:[#allocation1] ss:$2 sm:$0xff] %v361
      %v403 = vld.sshfl [vmem:[#allocation1] sm:$0xff pattern:$0x75316420]
      %v404 = vld.sshfl [vmem:[#allocation1 + $0x8] sm:$0xff pattern:$0x75316420]
      %405 = vrot.lane.b32.xlu0 %v403, 15
      %v406 = vpop.permute.xlu0 %405
      %407 = vrot.lane.b32.xlu0 %v404, 15
      %v408 = vpop.permute.xlu0 %407
      %vm409 = vcmask 121856
      %v410 = vsel %vm409, %v406, %v408
      %v413 = vsel %vm400, %v406, 0.0
      %v414 = vsel %vm401, %v410, 0.0
      %vm415 = vcmask 1043576
      %416 = vst.msk [vmem:[#allocation2 + $0x10] sm:$0xf] %vm415, %v413
      %417 = vst [vmem:[#allocation2 + $0x18] sm:$0xf] %v414
      %418 = vst [vmem:[#allocation1] ss:$2 sm:$0xff] %v361
      %v419 = vld.sshfl [vmem:[#allocation1] sm:$0xff pattern:$0x75316420]
      %v420 = vld.sshfl [vmem:[#allocation1 + $0x8] sm:$0xff pattern:$0x75316420]
      %421 = vrot.lane.b32.xlu0 %v419, 1
      %v422 = vpop.permute.xlu0 %421
      %423 = vrot.lane.b32.xlu0 %v420, 1
      %v424 = vpop.permute.xlu0 %423
      %vm425 = vcmask 7168
      %v426 = vsel %vm425, %v422, %v424
      %v429 = vsel %vm364, %v422, 0.0
      %v430 = vsel %vm365, %v426, 0.0
      %v433 = vrot.slane %v429, 4
      %v434 = vrot.slane %v430, 4
      %vm437 = vcmask 1047564
      %438 = vst.msk [vmem:[#allocation2 + $0x10] sm:$0xf0] %vm437, %v433
      %439 = vst [vmem:[#allocation2 + $0x18] sm:$0xf0] %v434
      %440 = vst [vmem:[#allocation1] ss:$2 sm:$0xff] %v361
      %v441 = vld.sshfl [vmem:[#allocation1] sm:$0xff pattern:$0x75316420]
      %v442 = vld.sshfl [vmem:[#allocation1 + $0x8] sm:$0xff pattern:$0x75316420]
      %445 = vst [vmem:[#allocation2 + $0x20] sm:$0xf] %v441
      %446 = vst [vmem:[#allocation2 + $0x28] sm:$0xf] %v442
      %447 = vst [vmem:[#allocation1] ss:$2 sm:$0xff] %v361
      %v448 = vld.sshfl [vmem:[#allocation1] sm:$0xff pattern:$0x75316420]
      %v449 = vld.sshfl [vmem:[#allocation1 + $0x8] sm:$0xff pattern:$0x75316420]
      %450 = vrot.lane.b32.xlu0 %v448, 127
      %v451 = vpop.permute.xlu0 %450
      %452 = vrot.lane.b32.xlu0 %v449, 127
      %v453 = vpop.permute.xlu0 %452
      %vm454 = vcmask 1039360
      %v455 = vsel %vm454, %v451, %v453
      %v458 = vsel %vm400, %v455, 0.0
      %v459 = vsel %vm401, %v453, 0.0
      %v462 = vrot.slane %v458, 4
      %v463 = vrot.slane %v459, 4
      %466 = vst [vmem:[#allocation2 + $0x20] sm:$0xf0] %v462
      %vm467 = vcmask 1039364
      %468 = vst.msk [vmem:[#allocation2 + $0x28] sm:$0xf0] %vm467, %v463
      %469 = vst [vmem:[#allocation1] ss:$2 sm:$0xff] %v361
      %v470 = vld.sshfl [vmem:[#allocation1] sm:$0xff pattern:$0x75316420]
      %v471 = vld.sshfl [vmem:[#allocation1 + $0x8] sm:$0xff pattern:$0x75316420]
      %472 = vrot.lane.b32.xlu0 %v470, 113
      %v473 = vpop.permute.xlu0 %472
      %474 = vrot.lane.b32.xlu0 %v471, 113
      %v475 = vpop.permute.xlu0 %474
      %vm476 = vcmask 924672
      %v477 = vsel %vm476, %v473, %v475
      %v480 = vsel %vm364, %v477, 0.0
      %v481 = vsel %vm365, %v475, 0.0
      %482 = vst [vmem:[#allocation2 + $0x30] sm:$0xf] %v480
      %vm483 = vcmask 920576
      %484 = vst.msk [vmem:[#allocation2 + $0x38] sm:$0xf] %vm483, %v481
      %s485 = scalar_lea.vmem [#allocation1], 1
      %486 = vst [vmem:[%s485] ss:$2 sm:$0xff] %v361
      %v487 = vld.sshfl [vmem:[#allocation1] sm:$0xff pattern:$0x75316420]
      %v488 = vld.sshfl [vmem:[#allocation1 + $0x8] sm:$0xff pattern:$0x75316420]
      %489 = vrot.lane.b32.xlu0 %v487, 112
      %v490 = vpop.permute.xlu0 %489
      %491 = vrot.lane.b32.xlu0 %v488, 112
      %v492 = vpop.permute.xlu0 %491
      %vm493 = vcmask 916480
      %v494 = vsel %vm493, %v490, %v492
      %497 = vst [vmem:[#allocation2 + $0x30] sm:$0xf0] %v494
      %vm498 = vcmask 916484
      %499 = vst.msk [vmem:[#allocation2 + $0x38] sm:$0xf0] %vm498, %v492
      %500 = vst [vmem:[#allocation1] ss:$2 sm:$0xff] %v361
      %v501 = vld.sshfl [vmem:[#allocation1] sm:$0xff pattern:$0x75316420]
      %v502 = vld.sshfl [vmem:[#allocation1 + $0x8] sm:$0xff pattern:$0x75316420]
      %503 = vrot.lane.b32.xlu0 %v501, 111
      %v504 = vpop.permute.xlu0 %503
      %505 = vrot.lane.b32.xlu0 %v502, 111
      %v506 = vpop.permute.xlu0 %505
      %vm507 = vcmask 908288
      %v508 = vsel %vm507, %v504, %v506
      %v511 = vsel %vm400, %v508, 0.0
      %v512 = vsel %vm401, %v506, 0.0
      %513 = vst [vmem:[#allocation2 + $0x40] sm:$0xf] %v511
      %vm514 = vcmask 904192
      %515 = vst.msk [vmem:[#allocation2 + $0x48] sm:$0xf] %vm514, %v512
      %v516 = vld [vmem:[%s1] sm:$0x3]
      %v517 = vld [vmem:[#allocation2] sm:$0xff]
      %v518 = vld [vmem:[#allocation2 + $0x8] sm:$0xff]
      %v519 = vld [vmem:[#allocation2 + $0x10] sm:$0xff]
      %v520 = vld [vmem:[#allocation2 + $0x18] sm:$0xff]
      %v521 = vld [vmem:[#allocation2 + $0x20] sm:$0xff]
      %v522 = vld [vmem:[#allocation2 + $0x28] sm:$0xff]
      %v523 = vld [vmem:[#allocation2 + $0x30] sm:$0xff]
      %v524 = vld [vmem:[#allocation2 + $0x38] sm:$0xff]
      %v525 = vld [vmem:[#allocation2 + $0x40] sm:$0xff]
      %v526 = vld [vmem:[#allocation2 + $0x48] sm:$0xff]
      %v527 = vpack.c.bf16 %v519, %v517
      %v528 = vpack.c.bf16 %v520, %v518
      %v529 = vpack.c.bf16 %v523, %v521
      %v530 = vpack.c.bf16 %v524, %v522
      %v531 = vpack.c.bf16 %v525, %v525
      %v532 = vpack.c.bf16 %v526, %v526
      %v533 = vld [vmem:[%s6] sm:$0xf]
      %535 = vset.pattern.permute.xlu0 0
      %536 = vperm.xlu0 %535, %v533
      %v537 = vpop.permute.xlu0 %536
      %vm539 = vcmask 326656
      %v541 = vsel %vm539, %v516, 0
      %vm543 = vcmask 1043456
      %v545 = vsel %vm543, %v531, 0
      %v548 = vsel %vm543, %v532, 0
      %550 = vmatpush.bf16.msra.mxu0 0
      %551 = vmatpush.bf16.msra.mxu0 0
      %552 = vmatpush.bf16.msra.mxu0 0
      %553 = vmatpush.bf16.msra.mxu0 0
      %554 = vmatpush.bf16.msra.mxu0 0
      %555 = vmatpush.bf16.msra.mxu0 %v545
      %556 = vmatpush.bf16.msra.mxu0 %v529
      %557 = vmatpush.bf16.msra.mxu0 %v527
      %558 = vmatmul.bf16.gmra.mxu0 %v541
      %v559 = vpop.f32.mrf.mxu0
      %v560 = vadd.f32 %v537, %v559
      %v561 = vpop.f32.mrf.mxu0
      %562 = vdwg.mxu0
      %563 = vmatpush.bf16.msra.mxu0 0
      %564 = vmatpush.bf16.msra.mxu0 0
      %565 = vmatpush.bf16.msra.mxu0 0
      %566 = vmatpush.bf16.msra.mxu0 0
      %567 = vmatpush.bf16.msra.mxu0 0
      %568 = vmatpush.bf16.msra.mxu0 %v548
      %569 = vmatpush.bf16.msra.mxu0 %v530
      %570 = vmatpush.bf16.msra.mxu0 %v528
      %571 = vmatmul.bf16.gmra.mxu0 %v541
      %v572 = vpop.f32.mrf.mxu0
      %v573 = vadd.f32 %v537, %v572
      %v574 = vpop.f32.mrf.mxu0
      %575 = vdwg.mxu0
      %vm576 = vcmp.ge.f32.partialorder %v560, 0.0
      %vm577 = vcmp.ge.f32.partialorder %v573, 0.0
      %v578 = vmul.f32 %v560, 0.01
      %v579 = vmul.f32 %v573, 0.01
      %v580 = vsel %vm576, %v560, %v578
      %v581 = vsel %vm577, %v573, %v579
      %584 = vrot.lane.b32.xlu0 %v580, 17
      %v585 = vpop.permute.xlu0 %584
      %586 = vrot.lane.b32.xlu0 %v581, 17
      %v587 = vpop.permute.xlu0 %586
      %v588 = vsel %vm374, %v585, %v587
      %v591 = vsel %vm364, %v585, 0.0
      %v592 = vsel %vm365, %v588, 0.0
      %593 = vst.msk [vmem:[#allocation2 + $0x50] sm:$0xf] %vm380, %v591
      %594 = vst [vmem:[#allocation2 + $0x58] sm:$0xf] %v592
      %v595 = vrot.slane %v580, 4
      %v596 = vrot.slane %v581, 4
      %597 = vrot.lane.b32.xlu0 %v595, 16
      %v598 = vpop.permute.xlu0 %597
      %599 = vrot.lane.b32.xlu0 %v596, 16
      %v600 = vpop.permute.xlu0 %599
      %v601 = vsel %vm391, %v598, %v600
      %604 = vst.msk [vmem:[#allocation2 + $0x50] sm:$0xf0] %vm395, %v598
      %605 = vst [vmem:[#allocation2 + $0x58] sm:$0xf0] %v601
      %606 = vrot.lane.b32.xlu0 %v580, 15
      %v607 = vpop.permute.xlu0 %606
      %608 = vrot.lane.b32.xlu0 %v581, 15
      %v609 = vpop.permute.xlu0 %608
      %v610 = vsel %vm409, %v607, %v609
      %v613 = vsel %vm400, %v607, 0.0
      %v614 = vsel %vm401, %v610, 0.0
      %615 = vst.msk [vmem:[#allocation2 + $0x60] sm:$0xf] %vm415, %v613
      %616 = vst [vmem:[#allocation2 + $0x68] sm:$0xf] %v614
      %617 = vrot.lane.b32.xlu0 %v580, 1
      %v618 = vpop.permute.xlu0 %617
      %619 = vrot.lane.b32.xlu0 %v581, 1
      %v620 = vpop.permute.xlu0 %619
      %v621 = vsel %vm425, %v618, %v620
      %v624 = vsel %vm364, %v618, 0.0
      %v625 = vsel %vm365, %v621, 0.0
      %v628 = vrot.slane %v624, 4
      %v629 = vrot.slane %v625, 4
      %632 = vst.msk [vmem:[#allocation2 + $0x60] sm:$0xf0] %vm437, %v628
      %633 = vst [vmem:[#allocation2 + $0x68] sm:$0xf0] %v629
      %634 = vst [vmem:[#allocation2 + $0x70] sm:$0xf] %v580
      %635 = vst [vmem:[#allocation2 + $0x78] sm:$0xf] %v581
      %636 = vrot.lane.b32.xlu0 %v580, 127
      %v637 = vpop.permute.xlu0 %636
      %638 = vrot.lane.b32.xlu0 %v581, 127
      %v639 = vpop.permute.xlu0 %638
      %v640 = vsel %vm454, %v637, %v639
      %v643 = vsel %vm400, %v640, 0.0
      %v644 = vsel %vm401, %v639, 0.0
      %v647 = vrot.slane %v643, 4
      %v648 = vrot.slane %v644, 4
      %651 = vst [vmem:[#allocation2 + $0x70] sm:$0xf0] %v647
      %652 = vst.msk [vmem:[#allocation2 + $0x78] sm:$0xf0] %vm467, %v648
      %653 = vrot.lane.b32.xlu0 %v580, 113
      %v654 = vpop.permute.xlu0 %653
      %655 = vrot.lane.b32.xlu0 %v581, 113
      %v656 = vpop.permute.xlu0 %655
      %v657 = vsel %vm476, %v654, %v656
      %v660 = vsel %vm364, %v657, 0.0
      %v661 = vsel %vm365, %v656, 0.0
      %662 = vst [vmem:[#allocation2 + $0x80] sm:$0xf] %v660
      %663 = vst.msk [vmem:[#allocation2 + $0x88] sm:$0xf] %vm483, %v661
      %664 = vrot.lane.b32.xlu0 %v595, 112
      %v665 = vpop.permute.xlu0 %664
      %666 = vrot.lane.b32.xlu0 %v596, 112
      %v667 = vpop.permute.xlu0 %666
      %v668 = vsel %vm493, %v665, %v667
      %671 = vst [vmem:[#allocation2 + $0x80] sm:$0xf0] %v668
      %672 = vst.msk [vmem:[#allocation2 + $0x88] sm:$0xf0] %vm498, %v667
      %673 = vrot.lane.b32.xlu0 %v580, 111
      %v674 = vpop.permute.xlu0 %673
      %675 = vrot.lane.b32.xlu0 %v581, 111
      %v676 = vpop.permute.xlu0 %675
      %v677 = vsel %vm507, %v674, %v676
      %v680 = vsel %vm400, %v677, 0.0
      %v681 = vsel %vm401, %v676, 0.0
      %682 = vst [vmem:[#allocation2 + $0x90] sm:$0xf] %v680
      %683 = vst.msk [vmem:[#allocation2 + $0x98] sm:$0xf] %vm514, %v681
      %v684 = vld [vmem:[%s2] sm:$0x3]
      %v685 = vld [vmem:[#allocation2] sm:$0xff]
      %v686 = vld [vmem:[#allocation2 + $0x8] sm:$0xff]
      %v687 = vld [vmem:[#allocation2 + $0x10] sm:$0xff]
      %v688 = vld [vmem:[#allocation2 + $0x18] sm:$0xff]
      %v689 = vld [vmem:[#allocation2 + $0x20] sm:$0xff]
      %v690 = vld [vmem:[#allocation2 + $0x28] sm:$0xff]
      %v691 = vld [vmem:[#allocation2 + $0x30] sm:$0xff]
      %v692 = vld [vmem:[#allocation2 + $0x38] sm:$0xff]
      %v693 = vld [vmem:[#allocation2 + $0x40] sm:$0xff]
      %v694 = vld [vmem:[#allocation2 + $0x48] sm:$0xff]
      %v695 = vld [vmem:[#allocation2 + $0x50] sm:$0xff]
      %v696 = vld [vmem:[#allocation2 + $0x58] sm:$0xff]
      %v697 = vld [vmem:[#allocation2 + $0x60] sm:$0xff]
      %v698 = vld [vmem:[#allocation2 + $0x68] sm:$0xff]
      %v699 = vld [vmem:[#allocation2 + $0x70] sm:$0xff]
      %v700 = vld [vmem:[#allocation2 + $0x78] sm:$0xff]
      %v701 = vld [vmem:[#allocation2 + $0x80] sm:$0xff]
      %v702 = vld [vmem:[#allocation2 + $0x88] sm:$0xff]
      %v703 = vld [vmem:[#allocation2 + $0x90] sm:$0xff]
      %v704 = vld [vmem:[#allocation2 + $0x98] sm:$0xff]
      %v705 = vpack.c.bf16 %v687, %v685
      %v706 = vpack.c.bf16 %v688, %v686
      %v707 = vpack.c.bf16 %v691, %v689
      %v708 = vpack.c.bf16 %v692, %v690
      %v709 = vpack.c.bf16 %v695, %v693
      %v710 = vpack.c.bf16 %v696, %v694
      %v711 = vpack.c.bf16 %v699, %v697
      %v712 = vpack.c.bf16 %v700, %v698
      %v713 = vpack.c.bf16 %v703, %v701
      %v714 = vpack.c.bf16 %v704, %v702
      %s715 = scalar_lea.vmem %s6, 4
      %v716 = vld [vmem:[%s715] sm:$0xf]
      %718 = vset.pattern.permute.xlu0 0
      %719 = vperm.xlu0 %718, %v716
      %v720 = vpop.permute.xlu0 %719
      %vm722 = vcmask 654336
      %v724 = vsel %vm722, %v684, 0
      %726 = vmatpush.bf16.msra.mxu0 0
      %727 = vmatpush.bf16.msra.mxu0 0
      %728 = vmatpush.bf16.msra.mxu0 0
      %729 = vmatpush.bf16.msra.mxu0 %v713
      %730 = vmatpush.bf16.msra.mxu0 %v711
      %731 = vmatpush.bf16.msra.mxu0 %v709
      %732 = vmatpush.bf16.msra.mxu0 %v707
      %733 = vmatpush.bf16.msra.mxu0 %v705
      %734 = vmatmul.bf16.gmra.mxu0 %v724
      %v735 = vpop.f32.mrf.mxu0
      %v736 = vadd.f32 %v720, %v735
      %v737 = vpop.f32.mrf.mxu0
      %738 = vdwg.mxu0
      %739 = vmatpush.bf16.msra.mxu0 0
      %740 = vmatpush.bf16.msra.mxu0 0
      %741 = vmatpush.bf16.msra.mxu0 0
      %742 = vmatpush.bf16.msra.mxu0 %v714
      %743 = vmatpush.bf16.msra.mxu0 %v712
      %744 = vmatpush.bf16.msra.mxu0 %v710
      %745 = vmatpush.bf16.msra.mxu0 %v708
      %746 = vmatpush.bf16.msra.mxu0 %v706
      %747 = vmatmul.bf16.gmra.mxu0 %v724
      %v748 = vpop.f32.mrf.mxu0
      %v749 = vadd.f32 %v720, %v748
      %v750 = vpop.f32.mrf.mxu0
      %751 = vdwg.mxu0
      %vm752 = vcmp.ge.f32.partialorder %v736, 0.0
      %vm753 = vcmp.ge.f32.partialorder %v749, 0.0
      %v754 = vmul.f32 %v736, 0.01
      %v755 = vmul.f32 %v749, 0.01
      %v756 = vsel %vm752, %v736, %v754
      %v757 = vsel %vm753, %v749, %v755
      %760 = vrot.lane.b32.xlu0 %v756, 17
      %v761 = vpop.permute.xlu0 %760
      %762 = vrot.lane.b32.xlu0 %v757, 17
      %v763 = vpop.permute.xlu0 %762
      %v764 = vsel %vm374, %v761, %v763
      %v767 = vsel %vm364, %v761, 0.0
      %v768 = vsel %vm365, %v764, 0.0
      %769 = vst.msk [vmem:[#allocation2 + $0xa0] sm:$0xf] %vm380, %v767
      %770 = vst [vmem:[#allocation2 + $0xa8] sm:$0xf] %v768
      %v771 = vrot.slane %v756, 4
      %v772 = vrot.slane %v757, 4
      %773 = vrot.lane.b32.xlu0 %v771, 16
      %v774 = vpop.permute.xlu0 %773
      %775 = vrot.lane.b32.xlu0 %v772, 16
      %v776 = vpop.permute.xlu0 %775
      %v777 = vsel %vm391, %v774, %v776
      %780 = vst.msk [vmem:[#allocation2 + $0xa0] sm:$0xf0] %vm395, %v774
      %781 = vst [vmem:[#allocation2 + $0xa8] sm:$0xf0] %v777
      %782 = vrot.lane.b32.xlu0 %v756, 15
      %v783 = vpop.permute.xlu0 %782
      %784 = vrot.lane.b32.xlu0 %v757, 15
      %v785 = vpop.permute.xlu0 %784
      %v786 = vsel %vm409, %v783, %v785
      %v789 = vsel %vm400, %v783, 0.0
      %v790 = vsel %vm401, %v786, 0.0
      %791 = vst.msk [vmem:[#allocation2 + $0xb0] sm:$0xf] %vm415, %v789
      %792 = vst [vmem:[#allocation2 + $0xb8] sm:$0xf] %v790
      %793 = vrot.lane.b32.xlu0 %v756, 1
      %v794 = vpop.permute.xlu0 %793
      %795 = vrot.lane.b32.xlu0 %v757, 1
      %v796 = vpop.permute.xlu0 %795
      %v797 = vsel %vm425, %v794, %v796
      %v800 = vsel %vm364, %v794, 0.0
      %v801 = vsel %vm365, %v797, 0.0
      %v804 = vrot.slane %v800, 4
      %v805 = vrot.slane %v801, 4
      %808 = vst.msk [vmem:[#allocation2 + $0xb0] sm:$0xf0] %vm437, %v804
      %809 = vst [vmem:[#allocation2 + $0xb8] sm:$0xf0] %v805
      %810 = vst [vmem:[#allocation2 + $0xc0] sm:$0xf] %v756
      %811 = vst [vmem:[#allocation2 + $0xc8] sm:$0xf] %v757
      %812 = vrot.lane.b32.xlu0 %v756, 127
      %v813 = vpop.permute.xlu0 %812
      %814 = vrot.lane.b32.xlu0 %v757, 127
      %v815 = vpop.permute.xlu0 %814
      %v816 = vsel %vm454, %v813, %v815
      %v819 = vsel %vm400, %v816, 0.0
      %v820 = vsel %vm401, %v815, 0.0
      %v823 = vrot.slane %v819, 4
      %v824 = vrot.slane %v820, 4
      %827 = vst [vmem:[#allocation2 + $0xc0] sm:$0xf0] %v823
      %828 = vst.msk [vmem:[#allocation2 + $0xc8] sm:$0xf0] %vm467, %v824
      %829 = vrot.lane.b32.xlu0 %v756, 113
      %v830 = vpop.permute.xlu0 %829
      %831 = vrot.lane.b32.xlu0 %v757, 113
      %v832 = vpop.permute.xlu0 %831
      %v833 = vsel %vm476, %v830, %v832
      %v836 = vsel %vm364, %v833, 0.0
      %v837 = vsel %vm365, %v832, 0.0
      %838 = vst [vmem:[#allocation2 + $0xd0] sm:$0xf] %v836
      %839 = vst.msk [vmem:[#allocation2 + $0xd8] sm:$0xf] %vm483, %v837
      %840 = vrot.lane.b32.xlu0 %v771, 112
      %v841 = vpop.permute.xlu0 %840
      %842 = vrot.lane.b32.xlu0 %v772, 112
      %v843 = vpop.permute.xlu0 %842
      %v844 = vsel %vm493, %v841, %v843
      %847 = vst [vmem:[#allocation2 + $0xd0] sm:$0xf0] %v844
      %848 = vst.msk [vmem:[#allocation2 + $0xd8] sm:$0xf0] %vm498, %v843
      %849 = vrot.lane.b32.xlu0 %v756, 111
      %v850 = vpop.permute.xlu0 %849
      %851 = vrot.lane.b32.xlu0 %v757, 111
      %v852 = vpop.permute.xlu0 %851
      %v853 = vsel %vm507, %v850, %v852
      %v856 = vsel %vm400, %v853, 0.0
      %v857 = vsel %vm401, %v852, 0.0
      %858 = vst [vmem:[#allocation2 + $0xe0] sm:$0xf] %v856
      %859 = vst.msk [vmem:[#allocation2 + $0xe8] sm:$0xf] %vm514, %v857
      %v860 = vld [vmem:[%s3] sm:$0x3]
      %v861 = vld [vmem:[#allocation2] sm:$0xff]
      %v862 = vld [vmem:[#allocation2 + $0x8] sm:$0xff]
      %v863 = vld [vmem:[#allocation2 + $0x10] sm:$0xff]
      %v864 = vld [vmem:[#allocation2 + $0x18] sm:$0xff]
      %v865 = vld [vmem:[#allocation2 + $0x20] sm:$0xff]
      %v866 = vld [vmem:[#allocation2 + $0x28] sm:$0xff]
      %v867 = vld [vmem:[#allocation2 + $0x30] sm:$0xff]
      %v868 = vld [vmem:[#allocation2 + $0x38] sm:$0xff]
      %v869 = vld [vmem:[#allocation2 + $0x40] sm:$0xff]
      %v870 = vld [vmem:[#allocation2 + $0x48] sm:$0xff]
      %v871 = vld [vmem:[#allocation2 + $0x50] sm:$0xff]
      %v872 = vld [vmem:[#allocation2 + $0x58] sm:$0xff]
      %v873 = vld [vmem:[#allocation2 + $0x60] sm:$0xff]
      %v874 = vld [vmem:[#allocation2 + $0x68] sm:$0xff]
      %v875 = vld [vmem:[#allocation2 + $0x70] sm:$0xff]
      %v876 = vld [vmem:[#allocation2 + $0x78] sm:$0xff]
      %v877 = vld [vmem:[#allocation2 + $0x80] sm:$0xff]
      %v878 = vld [vmem:[#allocation2 + $0x88] sm:$0xff]
      %v879 = vld [vmem:[#allocation2 + $0x90] sm:$0xff]
      %v880 = vld [vmem:[#allocation2 + $0x98] sm:$0xff]
      %v881 = vld [vmem:[#allocation2 + $0xa0] sm:$0xff]
      %v882 = vld [vmem:[#allocation2 + $0xa8] sm:$0xff]
      %v883 = vld [vmem:[#allocation2 + $0xb0] sm:$0xff]
      %v884 = vld [vmem:[#allocation2 + $0xb8] sm:$0xff]
      %v885 = vld [vmem:[#allocation2 + $0xc0] sm:$0xff]
      %v886 = vld [vmem:[#allocation2 + $0xc8] sm:$0xff]
      %v887 = vld [vmem:[#allocation2 + $0xd0] sm:$0xff]
      %v888 = vld [vmem:[#allocation2 + $0xd8] sm:$0xff]
      %v889 = vld [vmem:[#allocation2 + $0xe0] sm:$0xff]
      %v890 = vld [vmem:[#allocation2 + $0xe8] sm:$0xff]
      %v891 = vpack.c.bf16 %v863, %v861
      %v892 = vpack.c.bf16 %v864, %v862
      %v893 = vpack.c.bf16 %v867, %v865
      %v894 = vpack.c.bf16 %v868, %v866
      %v895 = vpack.c.bf16 %v871, %v869
      %v896 = vpack.c.bf16 %v872, %v870
      %v897 = vpack.c.bf16 %v875, %v873
      %v898 = vpack.c.bf16 %v876, %v874
      %v899 = vpack.c.bf16 %v879, %v877
      %v900 = vpack.c.bf16 %v880, %v878
      %v901 = vpack.c.bf16 %v883, %v881
      %v902 = vpack.c.bf16 %v884, %v882
      %v903 = vpack.c.bf16 %v887, %v885
      %v904 = vpack.c.bf16 %v888, %v886
      %v905 = vpack.c.bf16 %v889, %v889
      %v906 = vpack.c.bf16 %v890, %v890
      %s907 = scalar_lea.vmem %s6, 8
      %v908 = vld [vmem:[%s907] sm:$0xf]
      %910 = vset.pattern.permute.xlu0 0
      %911 = vperm.xlu0 %910, %v908
      %v912 = vpop.permute.xlu0 %911
      %vm914 = vcmask 982016
      %v916 = vsel %vm914, %v860, 0
      %v919 = vsel %vm543, %v905, 0
      %v922 = vsel %vm543, %v906, 0
      %924 = vmatpush.bf16.msra.mxu0 %v919
      %925 = vmatpush.bf16.msra.mxu0 %v903
      %926 = vmatpush.bf16.msra.mxu0 %v901
      %927 = vmatpush.bf16.msra.mxu0 %v899
      %928 = vmatpush.bf16.msra.mxu0 %v897
      %929 = vmatpush.bf16.msra.mxu0 %v895
      %930 = vmatpush.bf16.msra.mxu0 %v893
      %931 = vmatpush.bf16.msra.mxu0 %v891
      %932 = vmatmul.bf16.gmra.mxu0 %v916
      %v933 = vpop.f32.mrf.mxu0
      %v934 = vadd.f32 %v912, %v933
      %v935 = vpop.f32.mrf.mxu0
      %936 = vdwg.mxu0
      %937 = vmatpush.bf16.msra.mxu0 %v922
      %938 = vmatpush.bf16.msra.mxu0 %v904
      %939 = vmatpush.bf16.msra.mxu0 %v902
      %940 = vmatpush.bf16.msra.mxu0 %v900
      %941 = vmatpush.bf16.msra.mxu0 %v898
      %942 = vmatpush.bf16.msra.mxu0 %v896
      %943 = vmatpush.bf16.msra.mxu0 %v894
      %944 = vmatpush.bf16.msra.mxu0 %v892
      %945 = vmatmul.bf16.gmra.mxu0 %v916
      %v946 = vpop.f32.mrf.mxu0
      %v947 = vadd.f32 %v912, %v946
      %v948 = vpop.f32.mrf.mxu0
      %949 = vdwg.mxu0
      %vm950 = vcmp.ge.f32.partialorder %v934, 0.0
      %vm951 = vcmp.ge.f32.partialorder %v947, 0.0
      %v952 = vmul.f32 %v934, 0.01
      %v953 = vmul.f32 %v947, 0.01
      %v954 = vsel %vm950, %v934, %v952
      %v955 = vsel %vm951, %v947, %v953
      %958 = vrot.lane.b32.xlu0 %v954, 17
      %v959 = vpop.permute.xlu0 %958
      %960 = vrot.lane.b32.xlu0 %v955, 17
      %v961 = vpop.permute.xlu0 %960
      %v962 = vsel %vm374, %v959, %v961
      %v965 = vsel %vm364, %v959, 0.0
      %v966 = vsel %vm365, %v962, 0.0
      %967 = vst.msk [vmem:[#allocation2 + $0xf0] sm:$0xf] %vm380, %v965
      %968 = vst [vmem:[#allocation2 + $0xf8] sm:$0xf] %v966
      %v969 = vrot.slane %v954, 4
      %v970 = vrot.slane %v955, 4
      %971 = vrot.lane.b32.xlu0 %v969, 16
      %v972 = vpop.permute.xlu0 %971
      %973 = vrot.lane.b32.xlu0 %v970, 16
      %v974 = vpop.permute.xlu0 %973
      %v975 = vsel %vm391, %v972, %v974
      %978 = vst.msk [vmem:[#allocation2 + $0xf0] sm:$0xf0] %vm395, %v972
      %979 = vst [vmem:[#allocation2 + $0xf8] sm:$0xf0] %v975
      %980 = vrot.lane.b32.xlu0 %v954, 15
      %v981 = vpop.permute.xlu0 %980
      %982 = vrot.lane.b32.xlu0 %v955, 15
      %v983 = vpop.permute.xlu0 %982
      %v984 = vsel %vm409, %v981, %v983
      %v987 = vsel %vm400, %v981, 0.0
      %v988 = vsel %vm401, %v984, 0.0
      %989 = vst.msk [vmem:[#allocation2 + $0x100] sm:$0xf] %vm415, %v987
      %990 = vst [vmem:[#allocation2 + $0x108] sm:$0xf] %v988
      %991 = vrot.lane.b32.xlu0 %v954, 1
      %v992 = vpop.permute.xlu0 %991
      %993 = vrot.lane.b32.xlu0 %v955, 1
      %v994 = vpop.permute.xlu0 %993
      %v995 = vsel %vm425, %v992, %v994
      %v998 = vsel %vm364, %v992, 0.0
      %v999 = vsel %vm365, %v995, 0.0
      %v1002 = vrot.slane %v998, 4
      %v1003 = vrot.slane %v999, 4
      %1006 = vst.msk [vmem:[#allocation2 + $0x100] sm:$0xf0] %vm437, %v1002
      %1007 = vst [vmem:[#allocation2 + $0x108] sm:$0xf0] %v1003
      %1008 = vst [vmem:[#allocation2 + $0x110] sm:$0xf] %v954
      %1009 = vst [vmem:[#allocation2 + $0x118] sm:$0xf] %v955
      %1010 = vrot.lane.b32.xlu0 %v954, 127
      %v1011 = vpop.permute.xlu0 %1010
      %1012 = vrot.lane.b32.xlu0 %v955, 127
      %v1013 = vpop.permute.xlu0 %1012
      %v1014 = vsel %vm454, %v1011, %v1013
      %v1017 = vsel %vm400, %v1014, 0.0
      %v1018 = vsel %vm401, %v1013, 0.0
      %v1021 = vrot.slane %v1017, 4
      %v1022 = vrot.slane %v1018, 4
      %1025 = vst [vmem:[#allocation2 + $0x110] sm:$0xf0] %v1021
      %1026 = vst.msk [vmem:[#allocation2 + $0x118] sm:$0xf0] %vm467, %v1022
      %1027 = vrot.lane.b32.xlu0 %v954, 113
      %v1028 = vpop.permute.xlu0 %1027
      %1029 = vrot.lane.b32.xlu0 %v955, 113
      %v1030 = vpop.permute.xlu0 %1029
      %v1031 = vsel %vm476, %v1028, %v1030
      %v1034 = vsel %vm364, %v1031, 0.0
      %v1035 = vsel %vm365, %v1030, 0.0
      %1036 = vst [vmem:[#allocation2 + $0x120] sm:$0xf] %v1034
      %1037 = vst.msk [vmem:[#allocation2 + $0x128] sm:$0xf] %vm483, %v1035
      %1038 = vrot.lane.b32.xlu0 %v969, 112
      %v1039 = vpop.permute.xlu0 %1038
      %1040 = vrot.lane.b32.xlu0 %v970, 112
      %v1041 = vpop.permute.xlu0 %1040
      %v1042 = vsel %vm493, %v1039, %v1041
      %1045 = vst [vmem:[#allocation2 + $0x120] sm:$0xf0] %v1042
      %1046 = vst.msk [vmem:[#allocation2 + $0x128] sm:$0xf0] %vm498, %v1041
      %1047 = vrot.lane.b32.xlu0 %v954, 111
      %v1048 = vpop.permute.xlu0 %1047
      %1049 = vrot.lane.b32.xlu0 %v955, 111
      %v1050 = vpop.permute.xlu0 %1049
      %v1051 = vsel %vm507, %v1048, %v1050
      %v1054 = vsel %vm400, %v1051, 0.0
      %v1055 = vsel %vm401, %v1050, 0.0
      %1056 = vst [vmem:[#allocation2 + $0x130] sm:$0xf] %v1054
      %1057 = vst.msk [vmem:[#allocation2 + $0x138] sm:$0xf] %vm514, %v1055
      %v1058 = vld [vmem:[%s4] sm:$0xf]
      %v1059 = vld [vmem:[#allocation2] sm:$0xff]
      %v1060 = vld [vmem:[#allocation2 + $0x8] sm:$0xff]
      %v1061 = vld [vmem:[#allocation2 + $0x10] sm:$0xff]
      %v1062 = vld [vmem:[#allocation2 + $0x18] sm:$0xff]
      %v1063 = vld [vmem:[#allocation2 + $0x20] sm:$0xff]
      %v1064 = vld [vmem:[#allocation2 + $0x28] sm:$0xff]
      %v1065 = vld [vmem:[#allocation2 + $0x30] sm:$0xff]
      %v1066 = vld [vmem:[#allocation2 + $0x38] sm:$0xff]
      %v1067 = vld [vmem:[#allocation2 + $0x40] sm:$0xff]
      %v1068 = vld [vmem:[#allocation2 + $0x48] sm:$0xff]
      %v1069 = vld [vmem:[#allocation2 + $0x50] sm:$0xff]
      %v1070 = vld [vmem:[#allocation2 + $0x58] sm:$0xff]
      %v1071 = vld [vmem:[#allocation2 + $0x60] sm:$0xff]
      %v1072 = vld [vmem:[#allocation2 + $0x68] sm:$0xff]
      %v1073 = vld [vmem:[#allocation2 + $0x70] sm:$0xff]
      %v1074 = vld [vmem:[#allocation2 + $0x78] sm:$0xff]
      %v1075 = vld [vmem:[#allocation2 + $0x80] sm:$0xff]
      %v1076 = vld [vmem:[#allocation2 + $0x88] sm:$0xff]
      %v1077 = vld [vmem:[#allocation2 + $0x90] sm:$0xff]
      %v1078 = vld [vmem:[#allocation2 + $0x98] sm:$0xff]
      %v1079 = vld [vmem:[#allocation2 + $0xa0] sm:$0xff]
      %v1080 = vld [vmem:[#allocation2 + $0xa8] sm:$0xff]
      %v1081 = vld [vmem:[#allocation2 + $0xb0] sm:$0xff]
      %v1082 = vld [vmem:[#allocation2 + $0xb8] sm:$0xff]
      %v1083 = vld [vmem:[#allocation2 + $0xc0] sm:$0xff]
      %v1084 = vld [vmem:[#allocation2 + $0xc8] sm:$0xff]
      %v1085 = vld [vmem:[#allocation2 + $0xd0] sm:$0xff]
      %v1086 = vld [vmem:[#allocation2 + $0xd8] sm:$0xff]
      %v1087 = vld [vmem:[#allocation2 + $0xe0] sm:$0xff]
      %v1088 = vld [vmem:[#allocation2 + $0xe8] sm:$0xff]
      %v1089 = vld [vmem:[#allocation2 + $0xf0] sm:$0xff]
      %v1090 = vld [vmem:[#allocation2 + $0xf8] sm:$0xff]
      %v1091 = vld [vmem:[#allocation2 + $0x100] sm:$0xff]
      %v1092 = vld [vmem:[#allocation2 + $0x108] sm:$0xff]
      %v1093 = vld [vmem:[#allocation2 + $0x110] sm:$0xff]
      %v1094 = vld [vmem:[#allocation2 + $0x118] sm:$0xff]
      %v1095 = vld [vmem:[#allocation2 + $0x120] sm:$0xff]
      %v1096 = vld [vmem:[#allocation2 + $0x128] sm:$0xff]
      %v1097 = vld [vmem:[#allocation2 + $0x130] sm:$0xff]
      %v1098 = vld [vmem:[#allocation2 + $0x138] sm:$0xff]
      %v1099 = vpack.c.bf16 %v1061, %v1059
      %v1100 = vpack.c.bf16 %v1062, %v1060
      %v1101 = vpack.c.bf16 %v1065, %v1063
      %v1102 = vpack.c.bf16 %v1066, %v1064
      %v1103 = vpack.c.bf16 %v1069, %v1067
      %v1104 = vpack.c.bf16 %v1070, %v1068
      %v1105 = vpack.c.bf16 %v1073, %v1071
      %v1106 = vpack.c.bf16 %v1074, %v1072
      %v1107 = vpack.c.bf16 %v1077, %v1075
      %v1108 = vpack.c.bf16 %v1078, %v1076
      %v1109 = vpack.c.bf16 %v1081, %v1079
      %v1110 = vpack.c.bf16 %v1082, %v1080
      %v1111 = vpack.c.bf16 %v1085, %v1083
      %v1112 = vpack.c.bf16 %v1086, %v1084
      %v1113 = vpack.c.bf16 %v1089, %v1087
      %v1114 = vpack.c.bf16 %v1090, %v1088
      %v1115 = vpack.c.bf16 %v1093, %v1091
      %v1116 = vpack.c.bf16 %v1094, %v1092
      %v1117 = vpack.c.bf16 %v1097, %v1095
      %v1118 = vpack.c.bf16 %v1098, %v1096
      %s1119 = scalar_lea.vmem %s6, 12
      %v1120 = vld [vmem:[%s1119] sm:$0xf]
      %1122 = vset.pattern.permute.xlu0 0
      %1123 = vperm.xlu0 %1122, %v1120
      %v1124 = vpop.permute.xlu0 %1123
      %1127 = vst [vmem:[#allocation1] ss:$4 sm:$0xff] %v1058
      %v1128 = vld.sshfl [vmem:[#allocation1] sm:$0xff pattern:$0x73625140]
      %v1129 = vld.sshfl [vmem:[#allocation1 + $0x8] sm:$0xff pattern:$0x73625140]
      %vm1131 = vcmask 261120
      %v1132 = vsel %vm1131, %v1129, 0
      %1134 = vmatpush.bf16.msra.mxu0 %v1113
      %1135 = vmatpush.bf16.msra.mxu0 %v1111
      %1136 = vmatpush.bf16.msra.mxu0 %v1109
      %1137 = vmatpush.bf16.msra.mxu0 %v1107
      %1138 = vmatpush.bf16.msra.mxu0 %v1105
      %1139 = vmatpush.bf16.msra.mxu0 %v1103
      %1140 = vmatpush.bf16.msra.mxu0 %v1101
      %1141 = vmatpush.bf16.msra.mxu0 %v1099
      %1142 = vmatmul.bf16.gmra.mxu0 %v1128
      %v1143 = vpop.f32.mrf.mxu0
      %v1144 = vadd.f32 %v1124, %v1143
      %v1145 = vpop.f32.mrf.mxu0
      %1146 = vdwg.mxu0
      %1147 = vmatpush.bf16.msra.mxu0 0
      %1148 = vmatpush.bf16.msra.mxu0 0
      %1149 = vmatpush.bf16.msra.mxu0 0
      %1150 = vmatpush.bf16.msra.mxu0 0
      %1151 = vmatpush.bf16.msra.mxu0 0
      %1152 = vmatpush.bf16.msra.mxu0 0
      %1153 = vmatpush.bf16.msra.mxu0 %v1117
      %1154 = vmatpush.bf16.msra.mxu0 %v1115
      %1155 = vmatmul.bf16.gmra.mxu0 %v1132
      %v1156 = vpop.f32.mrf.mxu0
      %v1157 = vadd.f32 %v1144, %v1156
      %v1158 = vpop.f32.mrf.mxu0
      %1159 = vdwg.mxu0
      %1160 = vmatpush.bf16.msra.mxu0 %v1114
      %1161 = vmatpush.bf16.msra.mxu0 %v1112
      %1162 = vmatpush.bf16.msra.mxu0 %v1110
      %1163 = vmatpush.bf16.msra.mxu0 %v1108
      %1164 = vmatpush.bf16.msra.mxu0 %v1106
      %1165 = vmatpush.bf16.msra.mxu0 %v1104
      %1166 = vmatpush.bf16.msra.mxu0 %v1102
      %1167 = vmatpush.bf16.msra.mxu0 %v1100
      %1168 = vmatmul.bf16.gmra.mxu0 %v1128
      %v1169 = vpop.f32.mrf.mxu0
      %v1170 = vadd.f32 %v1124, %v1169
      %v1171 = vpop.f32.mrf.mxu0
      %1172 = vdwg.mxu0
      %1173 = vmatpush.bf16.msra.mxu0 0
      %1174 = vmatpush.bf16.msra.mxu0 0
      %1175 = vmatpush.bf16.msra.mxu0 0
      %1176 = vmatpush.bf16.msra.mxu0 0
      %1177 = vmatpush.bf16.msra.mxu0 0
      %1178 = vmatpush.bf16.msra.mxu0 0
      %1179 = vmatpush.bf16.msra.mxu0 %v1118
      %1180 = vmatpush.bf16.msra.mxu0 %v1116
      %1181 = vmatmul.bf16.gmra.mxu0 %v1132
      %v1182 = vpop.f32.mrf.mxu0
      %v1183 = vadd.f32 %v1170, %v1182
      %v1184 = vpop.f32.mrf.mxu0
      %1185 = vdwg.mxu0
      %vm1186 = vcmp.ge.f32.partialorder %v1157, 0.0
      %vm1187 = vcmp.ge.f32.partialorder %v1183, 0.0
      %v1188 = vmul.f32 %v1157, 0.01
      %v1189 = vmul.f32 %v1183, 0.01
      %v1190 = vsel %vm1186, %v1157, %v1188
      %v1191 = vsel %vm1187, %v1183, %v1189
      %1194 = vrot.lane.b32.xlu0 %v1190, 17
      %v1195 = vpop.permute.xlu0 %1194
      %1196 = vrot.lane.b32.xlu0 %v1191, 17
      %v1197 = vpop.permute.xlu0 %1196
      %v1198 = vsel %vm374, %v1195, %v1197
      %v1201 = vsel %vm364, %v1195, 0.0
      %v1202 = vsel %vm365, %v1198, 0.0
      %1203 = vst.msk [vmem:[#allocation2 + $0x140] sm:$0xf] %vm380, %v1201
      %1204 = vst [vmem:[#allocation2 + $0x148] sm:$0xf] %v1202
      %v1205 = vrot.slane %v1190, 4
      %v1206 = vrot.slane %v1191, 4
      %1207 = vrot.lane.b32.xlu0 %v1205, 16
      %v1208 = vpop.permute.xlu0 %1207
      %1209 = vrot.lane.b32.xlu0 %v1206, 16
      %v1210 = vpop.permute.xlu0 %1209
      %v1211 = vsel %vm391, %v1208, %v1210
      %1214 = vst.msk [vmem:[#allocation2 + $0x140] sm:$0xf0] %vm395, %v1208
      %1215 = vst [vmem:[#allocation2 + $0x148] sm:$0xf0] %v1211
      %1216 = vrot.lane.b32.xlu0 %v1190, 15
      %v1217 = vpop.permute.xlu0 %1216
      %1218 = vrot.lane.b32.xlu0 %v1191, 15
      %v1219 = vpop.permute.xlu0 %1218
      %v1220 = vsel %vm409, %v1217, %v1219
      %v1223 = vsel %vm400, %v1217, 0.0
      %v1224 = vsel %vm401, %v1220, 0.0
      %1225 = vst.msk [vmem:[#allocation2 + $0x150] sm:$0xf] %vm415, %v1223
      %1226 = vst [vmem:[#allocation2 + $0x158] sm:$0xf] %v1224
      %1227 = vrot.lane.b32.xlu0 %v1190, 1
      %v1228 = vpop.permute.xlu0 %1227
      %1229 = vrot.lane.b32.xlu0 %v1191, 1
      %v1230 = vpop.permute.xlu0 %1229
      %v1231 = vsel %vm425, %v1228, %v1230
      %v1234 = vsel %vm364, %v1228, 0.0
      %v1235 = vsel %vm365, %v1231, 0.0
      %v1238 = vrot.slane %v1234, 4
      %v1239 = vrot.slane %v1235, 4
      %1242 = vst.msk [vmem:[#allocation2 + $0x150] sm:$0xf0] %vm437, %v1238
      %1243 = vst [vmem:[#allocation2 + $0x158] sm:$0xf0] %v1239
      %1244 = vst [vmem:[#allocation2 + $0x160] sm:$0xf] %v1190
      %1245 = vst [vmem:[#allocation2 + $0x168] sm:$0xf] %v1191
      %1246 = vrot.lane.b32.xlu0 %v1190, 127
      %v1247 = vpop.permute.xlu0 %1246
      %1248 = vrot.lane.b32.xlu0 %v1191, 127
      %v1249 = vpop.permute.xlu0 %1248
      %v1250 = vsel %vm454, %v1247, %v1249
      %v1253 = vsel %vm400, %v1250, 0.0
      %v1254 = vsel %vm401, %v1249, 0.0
      %v1257 = vrot.slane %v1253, 4
      %v1258 = vrot.slane %v1254, 4
      %1261 = vst [vmem:[#allocation2 + $0x160] sm:$0xf0] %v1257
      %1262 = vst.msk [vmem:[#allocation2 + $0x168] sm:$0xf0] %vm467, %v1258
      %1263 = vrot.lane.b32.xlu0 %v1190, 113
      %v1264 = vpop.permute.xlu0 %1263
      %1265 = vrot.lane.b32.xlu0 %v1191, 113
      %v1266 = vpop.permute.xlu0 %1265
      %v1267 = vsel %vm476, %v1264, %v1266
      %v1270 = vsel %vm364, %v1267, 0.0
      %v1271 = vsel %vm365, %v1266, 0.0
      %1272 = vst [vmem:[#allocation2 + $0x170] sm:$0xf] %v1270
      %1273 = vst.msk [vmem:[#allocation2 + $0x178] sm:$0xf] %vm483, %v1271
      %1274 = vrot.lane.b32.xlu0 %v1205, 112
      %v1275 = vpop.permute.xlu0 %1274
      %1276 = vrot.lane.b32.xlu0 %v1206, 112
      %v1277 = vpop.permute.xlu0 %1276
      %v1278 = vsel %vm493, %v1275, %v1277
      %1281 = vst [vmem:[#allocation2 + $0x170] sm:$0xf0] %v1278
      %1282 = vst.msk [vmem:[#allocation2 + $0x178] sm:$0xf0] %vm498, %v1277
      %1283 = vrot.lane.b32.xlu0 %v1190, 111
      %v1284 = vpop.permute.xlu0 %1283
      %1285 = vrot.lane.b32.xlu0 %v1191, 111
      %v1286 = vpop.permute.xlu0 %1285
      %v1287 = vsel %vm507, %v1284, %v1286
      %v1290 = vsel %vm400, %v1287, 0.0
      %v1291 = vsel %vm401, %v1286, 0.0
      %1292 = vst [vmem:[#allocation2 + $0x180] sm:$0xf] %v1290
      %1293 = vst.msk [vmem:[#allocation2 + $0x188] sm:$0xf] %vm514, %v1291
      %v1294 = vld [vmem:[%s5] sm:$0xf]
      %v1295 = vld [vmem:[#allocation2] sm:$0xff]
      %v1296 = vld [vmem:[#allocation2 + $0x8] sm:$0xff]
      %v1297 = vld [vmem:[#allocation2 + $0x10] sm:$0xff]
      %v1298 = vld [vmem:[#allocation2 + $0x18] sm:$0xff]
      %v1299 = vld [vmem:[#allocation2 + $0x20] sm:$0xff]
      %v1300 = vld [vmem:[#allocation2 + $0x28] sm:$0xff]
      %v1301 = vld [vmem:[#allocation2 + $0x30] sm:$0xff]
      %v1302 = vld [vmem:[#allocation2 + $0x38] sm:$0xff]
      %v1303 = vld [vmem:[#allocation2 + $0x40] sm:$0xff]
      %v1304 = vld [vmem:[#allocation2 + $0x48] sm:$0xff]
      %v1305 = vld [vmem:[#allocation2 + $0x50] sm:$0xff]
      %v1306 = vld [vmem:[#allocation2 + $0x58] sm:$0xff]
      %v1307 = vld [vmem:[#allocation2 + $0x60] sm:$0xff]
      %v1308 = vld [vmem:[#allocation2 + $0x68] sm:$0xff]
      %v1309 = vld [vmem:[#allocation2 + $0x70] sm:$0xff]
      %v1310 = vld [vmem:[#allocation2 + $0x78] sm:$0xff]
      %v1311 = vld [vmem:[#allocation2 + $0x80] sm:$0xff]
      %v1312 = vld [vmem:[#allocation2 + $0x88] sm:$0xff]
      %v1313 = vld [vmem:[#allocation2 + $0x90] sm:$0xff]
      %v1314 = vld [vmem:[#allocation2 + $0x98] sm:$0xff]
      %v1315 = vld [vmem:[#allocation2 + $0xa0] sm:$0xff]
      %v1316 = vld [vmem:[#allocation2 + $0xa8] sm:$0xff]
      %v1317 = vld [vmem:[#allocation2 + $0xb0] sm:$0xff]
      %v1318 = vld [vmem:[#allocation2 + $0xb8] sm:$0xff]
      %v1319 = vld [vmem:[#allocation2 + $0xc0] sm:$0xff]
      %v1320 = vld [vmem:[#allocation2 + $0xc8] sm:$0xff]
      %v1321 = vld [vmem:[#allocation2 + $0xd0] sm:$0xff]
      %v1322 = vld [vmem:[#allocation2 + $0xd8] sm:$0xff]
      %v1323 = vld [vmem:[#allocation2 + $0xe0] sm:$0xff]
      %v1324 = vld [vmem:[#allocation2 + $0xe8] sm:$0xff]
      %v1325 = vld [vmem:[#allocation2 + $0xf0] sm:$0xff]
      %v1326 = vld [vmem:[#allocation2 + $0xf8] sm:$0xff]
      %v1327 = vld [vmem:[#allocation2 + $0x100] sm:$0xff]
      %v1328 = vld [vmem:[#allocation2 + $0x108] sm:$0xff]
      %v1329 = vld [vmem:[#allocation2 + $0x110] sm:$0xff]
      %v1330 = vld [vmem:[#allocation2 + $0x118] sm:$0xff]
      %v1331 = vld [vmem:[#allocation2 + $0x120] sm:$0xff]
      %v1332 = vld [vmem:[#allocation2 + $0x128] sm:$0xff]
      %v1333 = vld [vmem:[#allocation2 + $0x130] sm:$0xff]
      %v1334 = vld [vmem:[#allocation2 + $0x138] sm:$0xff]
      %v1335 = vld [vmem:[#allocation2 + $0x140] sm:$0xff]
      %v1336 = vld [vmem:[#allocation2 + $0x148] sm:$0xff]
      %v1337 = vld [vmem:[#allocation2 + $0x150] sm:$0xff]
      %v1338 = vld [vmem:[#allocation2 + $0x158] sm:$0xff]
      %v1339 = vld [vmem:[#allocation2 + $0x160] sm:$0xff]
      %v1340 = vld [vmem:[#allocation2 + $0x168] sm:$0xff]
      %v1341 = vld [vmem:[#allocation2 + $0x170] sm:$0xff]
      %v1342 = vld [vmem:[#allocation2 + $0x178] sm:$0xff]
      %v1343 = vld [vmem:[#allocation2 + $0x180] sm:$0xff]
      %v1344 = vld [vmem:[#allocation2 + $0x188] sm:$0xff]
      %v1345 = vpack.c.bf16 %v1297, %v1295
      %v1346 = vpack.c.bf16 %v1298, %v1296
      %v1347 = vpack.c.bf16 %v1301, %v1299
      %v1348 = vpack.c.bf16 %v1302, %v1300
      %v1349 = vpack.c.bf16 %v1305, %v1303
      %v1350 = vpack.c.bf16 %v1306, %v1304
      %v1351 = vpack.c.bf16 %v1309, %v1307
      %v1352 = vpack.c.bf16 %v1310, %v1308
      %v1353 = vpack.c.bf16 %v1313, %v1311
      %v1354 = vpack.c.bf16 %v1314, %v1312
      %v1355 = vpack.c.bf16 %v1317, %v1315
      %v1356 = vpack.c.bf16 %v1318, %v1316
      %v1357 = vpack.c.bf16 %v1321, %v1319
      %v1358 = vpack.c.bf16 %v1322, %v1320
      %v1359 = vpack.c.bf16 %v1325, %v1323
      %v1360 = vpack.c.bf16 %v1326, %v1324
      %v1361 = vpack.c.bf16 %v1329, %v1327
      %v1362 = vpack.c.bf16 %v1330, %v1328
      %v1363 = vpack.c.bf16 %v1333, %v1331
      %v1364 = vpack.c.bf16 %v1334, %v1332
      %v1365 = vpack.c.bf16 %v1337, %v1335
      %v1366 = vpack.c.bf16 %v1338, %v1336
      %v1367 = vpack.c.bf16 %v1341, %v1339
      %v1368 = vpack.c.bf16 %v1342, %v1340
      %v1369 = vpack.c.bf16 %v1343, %v1343
      %v1370 = vpack.c.bf16 %v1344, %v1344
      %s1371 = scalar_lea.vmem %s6, 16
      %v1372 = vld [vmem:[%s1371] sm:$0xf]
      %1374 = vset.pattern.permute.xlu0 0
      %1375 = vperm.xlu0 %1374, %v1372
      %v1376 = vpop.permute.xlu0 %1375
      %1379 = vst [vmem:[#allocation1] ss:$4 sm:$0xff] %v1294
      %v1380 = vld.sshfl [vmem:[#allocation1] sm:$0xff pattern:$0x73625140]
      %v1381 = vld.sshfl [vmem:[#allocation1 + $0x8] sm:$0xff pattern:$0x73625140]
      %vm1383 = vcmask 588800
      %v1384 = vsel %vm1383, %v1381, 0
      %v1387 = vsel %vm543, %v1369, 0
      %v1390 = vsel %vm543, %v1370, 0
      %1392 = vmatpush.bf16.msra.mxu0 %v1359
      %1393 = vmatpush.bf16.msra.mxu0 %v1357
      %1394 = vmatpush.bf16.msra.mxu0 %v1355
      %1395 = vmatpush.bf16.msra.mxu0 %v1353
      %1396 = vmatpush.bf16.msra.mxu0 %v1351
      %1397 = vmatpush.bf16.msra.mxu0 %v1349
      %1398 = vmatpush.bf16.msra.mxu0 %v1347
      %1399 = vmatpush.bf16.msra.mxu0 %v1345
      %1400 = vmatmul.bf16.gmra.mxu0 %v1380
      %v1401 = vpop.f32.mrf.mxu0
      %v1402 = vadd.f32 %v1376, %v1401
      %v1403 = vpop.f32.mrf.mxu0
      %1404 = vdwg.mxu0
      %1405 = vmatpush.bf16.msra.mxu0 0
      %1406 = vmatpush.bf16.msra.mxu0 0
      %1407 = vmatpush.bf16.msra.mxu0 0
      %1408 = vmatpush.bf16.msra.mxu0 %v1387
      %1409 = vmatpush.bf16.msra.mxu0 %v1367
      %1410 = vmatpush.bf16.msra.mxu0 %v1365
      %1411 = vmatpush.bf16.msra.mxu0 %v1363
      %1412 = vmatpush.bf16.msra.mxu0 %v1361
      %1413 = vmatmul.bf16.gmra.mxu0 %v1384
      %v1414 = vpop.f32.mrf.mxu0
      %v1415 = vadd.f32 %v1402, %v1414
      %v1416 = vpop.f32.mrf.mxu0
      %1417 = vdwg.mxu0
      %1418 = vmatpush.bf16.msra.mxu0 %v1360
      %1419 = vmatpush.bf16.msra.mxu0 %v1358
      %1420 = vmatpush.bf16.msra.mxu0 %v1356
      %1421 = vmatpush.bf16.msra.mxu0 %v1354
      %1422 = vmatpush.bf16.msra.mxu0 %v1352
      %1423 = vmatpush.bf16.msra.mxu0 %v1350
      %1424 = vmatpush.bf16.msra.mxu0 %v1348
      %1425 = vmatpush.bf16.msra.mxu0 %v1346
      %1426 = vmatmul.bf16.gmra.mxu0 %v1380
      %v1427 = vpop.f32.mrf.mxu0
      %v1428 = vadd.f32 %v1376, %v1427
      %v1429 = vpop.f32.mrf.mxu0
      %1430 = vdwg.mxu0
      %1431 = vmatpush.bf16.msra.mxu0 0
      %1432 = vmatpush.bf16.msra.mxu0 0
      %1433 = vmatpush.bf16.msra.mxu0 0
      %1434 = vmatpush.bf16.msra.mxu0 %v1390
      %1435 = vmatpush.bf16.msra.mxu0 %v1368
      %1436 = vmatpush.bf16.msra.mxu0 %v1366
      %1437 = vmatpush.bf16.msra.mxu0 %v1364
      %1438 = vmatpush.bf16.msra.mxu0 %v1362
      %1439 = vmatmul.bf16.gmra.mxu0 %v1384
      %v1440 = vpop.f32.mrf.mxu0
      %v1441 = vadd.f32 %v1428, %v1440
      %v1442 = vpop.f32.mrf.mxu0
      %1443 = vdwg.mxu0
      %v1444 = vmul.f32 %v1415, 0.2
      %v1445 = vmul.f32 %v1441, 0.2
      %1446 = vst [vmem:[#allocation1] ss:$2 sm:$0xff] %v361
      %v1447 = vld.sshfl [vmem:[#allocation1] sm:$0xff pattern:$0x75316420]
      %v1448 = vld.sshfl [vmem:[#allocation1 + $0x8] sm:$0xff pattern:$0x75316420]
      %v1451 = vadd.f32 %v1444, %v1447
      %v1452 = vadd.f32 %v1445, %v1448
      %1455 = vrot.lane.b32.xlu0 %v1451, 17
      %v1456 = vpop.permute.xlu0 %1455
      %1457 = vrot.lane.b32.xlu0 %v1452, 17
      %v1458 = vpop.permute.xlu0 %1457
      %v1459 = vsel %vm374, %v1456, %v1458
      %v1462 = vsel %vm364, %v1456, 0.0
      %v1463 = vsel %vm365, %v1459, 0.0
      %1464 = vst.msk [vmem:[#allocation2] sm:$0xf] %vm380, %v1462
      %1465 = vst [vmem:[#allocation2 + $0x8] sm:$0xf] %v1463
      %v1466 = vrot.slane %v1451, 4
      %v1467 = vrot.slane %v1452, 4
      %1468 = vrot.lane.b32.xlu0 %v1466, 16
      %v1469 = vpop.permute.xlu0 %1468
      %1470 = vrot.lane.b32.xlu0 %v1467, 16
      %v1471 = vpop.permute.xlu0 %1470
      %v1472 = vsel %vm391, %v1469, %v1471
      %1475 = vst.msk [vmem:[#allocation2] sm:$0xf0] %vm395, %v1469
      %1476 = vst [vmem:[#allocation2 + $0x8] sm:$0xf0] %v1472
      %1477 = vrot.lane.b32.xlu0 %v1451, 15
      %v1478 = vpop.permute.xlu0 %1477
      %1479 = vrot.lane.b32.xlu0 %v1452, 15
      %v1480 = vpop.permute.xlu0 %1479
      %v1481 = vsel %vm409, %v1478, %v1480
      %v1484 = vsel %vm400, %v1478, 0.0
      %v1485 = vsel %vm401, %v1481, 0.0
      %1486 = vst.msk [vmem:[#allocation2 + $0x10] sm:$0xf] %vm415, %v1484
      %1487 = vst [vmem:[#allocation2 + $0x18] sm:$0xf] %v1485
      %1488 = vrot.lane.b32.xlu0 %v1451, 1
      %v1489 = vpop.permute.xlu0 %1488
      %1490 = vrot.lane.b32.xlu0 %v1452, 1
      %v1491 = vpop.permute.xlu0 %1490
      %v1492 = vsel %vm425, %v1489, %v1491
      %v1495 = vsel %vm364, %v1489, 0.0
      %v1496 = vsel %vm365, %v1492, 0.0
      %v1499 = vrot.slane %v1495, 4
      %v1500 = vrot.slane %v1496, 4
      %1503 = vst.msk [vmem:[#allocation2 + $0x10] sm:$0xf0] %vm437, %v1499
      %1504 = vst [vmem:[#allocation2 + $0x18] sm:$0xf0] %v1500
      %1505 = vst [vmem:[#allocation2 + $0x20] sm:$0xf] %v1451
      %1506 = vst [vmem:[#allocation2 + $0x28] sm:$0xf] %v1452
      %1507 = vrot.lane.b32.xlu0 %v1451, 127
      %v1508 = vpop.permute.xlu0 %1507
      %1509 = vrot.lane.b32.xlu0 %v1452, 127
      %v1510 = vpop.permute.xlu0 %1509
      %v1511 = vsel %vm454, %v1508, %v1510
      %v1514 = vsel %vm400, %v1511, 0.0
      %v1515 = vsel %vm401, %v1510, 0.0
      %v1518 = vrot.slane %v1514, 4
      %v1519 = vrot.slane %v1515, 4
      %1522 = vst [vmem:[#allocation2 + $0x20] sm:$0xf0] %v1518
      %1523 = vst.msk [vmem:[#allocation2 + $0x28] sm:$0xf0] %vm467, %v1519
      %1524 = vrot.lane.b32.xlu0 %v1451, 113
      %v1525 = vpop.permute.xlu0 %1524
      %1526 = vrot.lane.b32.xlu0 %v1452, 113
      %v1527 = vpop.permute.xlu0 %1526
      %v1528 = vsel %vm476, %v1525, %v1527
      %v1531 = vsel %vm364, %v1528, 0.0
      %v1532 = vsel %vm365, %v1527, 0.0
      %1533 = vst [vmem:[#allocation2 + $0x30] sm:$0xf] %v1531
      %1534 = vst.msk [vmem:[#allocation2 + $0x38] sm:$0xf] %vm483, %v1532
      %1535 = vrot.lane.b32.xlu0 %v1466, 112
      %v1536 = vpop.permute.xlu0 %1535
      %1537 = vrot.lane.b32.xlu0 %v1467, 112
      %v1538 = vpop.permute.xlu0 %1537
      %v1539 = vsel %vm493, %v1536, %v1538
      %1542 = vst [vmem:[#allocation2 + $0x30] sm:$0xf0] %v1539
      %1543 = vst.msk [vmem:[#allocation2 + $0x38] sm:$0xf0] %vm498, %v1538
      %1544 = vrot.lane.b32.xlu0 %v1451, 111
      %v1545 = vpop.permute.xlu0 %1544
      %1546 = vrot.lane.b32.xlu0 %v1452, 111
      %v1547 = vpop.permute.xlu0 %1546
      %v1548 = vsel %vm507, %v1545, %v1547
      %v1551 = vsel %vm400, %v1548, 0.0
      %v1552 = vsel %vm401, %v1547, 0.0
      %1553 = vst [vmem:[#allocation2 + $0x40] sm:$0xf] %v1551
      %1554 = vst.msk [vmem:[#allocation2 + $0x48] sm:$0xf] %vm514, %v1552
      %s1555 = scalar_lea.vmem %s1, 2
      %v1556 = vld [vmem:[%s1555] sm:$0x3]
      %v1557 = vld [vmem:[#allocation2] sm:$0xff]
      %v1558 = vld [vmem:[#allocation2 + $0x8] sm:$0xff]
      %v1559 = vld [vmem:[#allocation2 + $0x10] sm:$0xff]
      %v1560 = vld [vmem:[#allocation2 + $0x18] sm:$0xff]
      %v1561 = vld [vmem:[#allocation2 + $0x20] sm:$0xff]
      %v1562 = vld [vmem:[#allocation2 + $0x28] sm:$0xff]
      %v1563 = vld [vmem:[#allocation2 + $0x30] sm:$0xff]
      %v1564 = vld [vmem:[#allocation2 + $0x38] sm:$0xff]
      %v1565 = vld [vmem:[#allocation2 + $0x40] sm:$0xff]
      %v1566 = vld [vmem:[#allocation2 + $0x48] sm:$0xff]
      %v1567 = vpack.c.bf16 %v1559, %v1557
      %v1568 = vpack.c.bf16 %v1560, %v1558
      %v1569 = vpack.c.bf16 %v1563, %v1561
      %v1570 = vpack.c.bf16 %v1564, %v1562
      %v1571 = vpack.c.bf16 %v1565, %v1565
      %v1572 = vpack.c.bf16 %v1566, %v1566
      %s1573 = scalar_lea.vmem %s6, 20
      %v1574 = vld [vmem:[%s1573] sm:$0xf]
      %1576 = vset.pattern.permute.xlu0 0
      %1577 = vperm.xlu0 %1576, %v1574
      %v1578 = vpop.permute.xlu0 %1577
      %v1581 = vsel %vm539, %v1556, 0
      %v1584 = vsel %vm543, %v1571, 0
      %v1587 = vsel %vm543, %v1572, 0
      %1589 = vmatpush.bf16.msra.mxu0 0
      %1590 = vmatpush.bf16.msra.mxu0 0
      %1591 = vmatpush.bf16.msra.mxu0 0
      %1592 = vmatpush.bf16.msra.mxu0 0
      %1593 = vmatpush.bf16.msra.mxu0 0
      %1594 = vmatpush.bf16.msra.mxu0 %v1584
      %1595 = vmatpush.bf16.msra.mxu0 %v1569
      %1596 = vmatpush.bf16.msra.mxu0 %v1567
      %1597 = vmatmul.bf16.gmra.mxu0 %v1581
      %v1598 = vpop.f32.mrf.mxu0
      %v1599 = vadd.f32 %v1578, %v1598
      %v1600 = vpop.f32.mrf.mxu0
      %1601 = vdwg.mxu0
      %1602 = vmatpush.bf16.msra.mxu0 0
      %1603 = vmatpush.bf16.msra.mxu0 0
      %1604 = vmatpush.bf16.msra.mxu0 0
      %1605 = vmatpush.bf16.msra.mxu0 0
      %1606 = vmatpush.bf16.msra.mxu0 0
      %1607 = vmatpush.bf16.msra.mxu0 %v1587
      %1608 = vmatpush.bf16.msra.mxu0 %v1570
      %1609 = vmatpush.bf16.msra.mxu0 %v1568
      %1610 = vmatmul.bf16.gmra.mxu0 %v1581
      %v1611 = vpop.f32.mrf.mxu0
      %v1612 = vadd.f32 %v1578, %v1611
      %v1613 = vpop.f32.mrf.mxu0
      %1614 = vdwg.mxu0
      %vm1615 = vcmp.ge.f32.partialorder %v1599, 0.0
      %vm1616 = vcmp.ge.f32.partialorder %v1612, 0.0
      %v1617 = vmul.f32 %v1599, 0.01
      %v1618 = vmul.f32 %v1612, 0.01
      %v1619 = vsel %vm1615, %v1599, %v1617
      %v1620 = vsel %vm1616, %v1612, %v1618
      %1623 = vrot.lane.b32.xlu0 %v1619, 17
      %v1624 = vpop.permute.xlu0 %1623
      %1625 = vrot.lane.b32.xlu0 %v1620, 17
      %v1626 = vpop.permute.xlu0 %1625
      %v1627 = vsel %vm374, %v1624, %v1626
      %v1630 = vsel %vm364, %v1624, 0.0
      %v1631 = vsel %vm365, %v1627, 0.0
      %1632 = vst.msk [vmem:[#allocation2 + $0x50] sm:$0xf] %vm380, %v1630
      %1633 = vst [vmem:[#allocation2 + $0x58] sm:$0xf] %v1631
      %v1634 = vrot.slane %v1619, 4
      %v1635 = vrot.slane %v1620, 4
      %1636 = vrot.lane.b32.xlu0 %v1634, 16
      %v1637 = vpop.permute.xlu0 %1636
      %1638 = vrot.lane.b32.xlu0 %v1635, 16
      %v1639 = vpop.permute.xlu0 %1638
      %v1640 = vsel %vm391, %v1637, %v1639
      %1643 = vst.msk [vmem:[#allocation2 + $0x50] sm:$0xf0] %vm395, %v1637
      %1644 = vst [vmem:[#allocation2 + $0x58] sm:$0xf0] %v1640
      %1645 = vrot.lane.b32.xlu0 %v1619, 15
      %v1646 = vpop.permute.xlu0 %1645
      %1647 = vrot.lane.b32.xlu0 %v1620, 15
      %v1648 = vpop.permute.xlu0 %1647
      %v1649 = vsel %vm409, %v1646, %v1648
      %v1652 = vsel %vm400, %v1646, 0.0
      %v1653 = vsel %vm401, %v1649, 0.0
      %1654 = vst.msk [vmem:[#allocation2 + $0x60] sm:$0xf] %vm415, %v1652
      %1655 = vst [vmem:[#allocation2 + $0x68] sm:$0xf] %v1653
      %1656 = vrot.lane.b32.xlu0 %v1619, 1
      %v1657 = vpop.permute.xlu0 %1656
      %1658 = vrot.lane.b32.xlu0 %v1620, 1
      %v1659 = vpop.permute.xlu0 %1658
      %v1660 = vsel %vm425, %v1657, %v1659
      %v1663 = vsel %vm364, %v1657, 0.0
      %v1664 = vsel %vm365, %v1660, 0.0
      %v1667 = vrot.slane %v1663, 4
      %v1668 = vrot.slane %v1664, 4
      %1671 = vst.msk [vmem:[#allocation2 + $0x60] sm:$0xf0] %vm437, %v1667
      %1672 = vst [vmem:[#allocation2 + $0x68] sm:$0xf0] %v1668
      %1673 = vst [vmem:[#allocation2 + $0x70] sm:$0xf] %v1619
      %1674 = vst [vmem:[#allocation2 + $0x78] sm:$0xf] %v1620
      %1675 = vrot.lane.b32.xlu0 %v1619, 127
      %v1676 = vpop.permute.xlu0 %1675
      %1677 = vrot.lane.b32.xlu0 %v1620, 127
      %v1678 = vpop.permute.xlu0 %1677
      %v1679 = vsel %vm454, %v1676, %v1678
      %v1682 = vsel %vm400, %v1679, 0.0
      %v1683 = vsel %vm401, %v1678, 0.0
      %v1686 = vrot.slane %v1682, 4
      %v1687 = vrot.slane %v1683, 4
      %1690 = vst [vmem:[#allocation2 + $0x70] sm:$0xf0] %v1686
      %1691 = vst.msk [vmem:[#allocation2 + $0x78] sm:$0xf0] %vm467, %v1687
      %1692 = vrot.lane.b32.xlu0 %v1619, 113
      %v1693 = vpop.permute.xlu0 %1692
      %1694 = vrot.lane.b32.xlu0 %v1620, 113
      %v1695 = vpop.permute.xlu0 %1694
      %v1696 = vsel %vm476, %v1693, %v1695
      %v1699 = vsel %vm364, %v1696, 0.0
      %v1700 = vsel %vm365, %v1695, 0.0
      %1701 = vst [vmem:[#allocation2 + $0x80] sm:$0xf] %v1699
      %1702 = vst.msk [vmem:[#allocation2 + $0x88] sm:$0xf] %vm483, %v1700
      %1703 = vrot.lane.b32.xlu0 %v1634, 112
      %v1704 = vpop.permute.xlu0 %1703
      %1705 = vrot.lane.b32.xlu0 %v1635, 112
      %v1706 = vpop.permute.xlu0 %1705
      %v1707 = vsel %vm493, %v1704, %v1706
      %1710 = vst [vmem:[#allocation2 + $0x80] sm:$0xf0] %v1707
      %1711 = vst.msk [vmem:[#allocation2 + $0x88] sm:$0xf0] %vm498, %v1706
      %1712 = vrot.lane.b32.xlu0 %v1619, 111
      %v1713 = vpop.permute.xlu0 %1712
      %1714 = vrot.lane.b32.xlu0 %v1620, 111
      %v1715 = vpop.permute.xlu0 %1714
      %v1716 = vsel %vm507, %v1713, %v1715
      %v1719 = vsel %vm400, %v1716, 0.0
      %v1720 = vsel %vm401, %v1715, 0.0
      %1721 = vst [vmem:[#allocation2 + $0x90] sm:$0xf] %v1719
      %1722 = vst.msk [vmem:[#allocation2 + $0x98] sm:$0xf] %vm514, %v1720
      %s1723 = scalar_lea.vmem %s2, 2
      %v1724 = vld [vmem:[%s1723] sm:$0x3]
      %v1725 = vld [vmem:[#allocation2] sm:$0xff]
      %v1726 = vld [vmem:[#allocation2 + $0x8] sm:$0xff]
      %v1727 = vld [vmem:[#allocation2 + $0x10] sm:$0xff]
      %v1728 = vld [vmem:[#allocation2 + $0x18] sm:$0xff]
      %v1729 = vld [vmem:[#allocation2 + $0x20] sm:$0xff]
      %v1730 = vld [vmem:[#allocation2 + $0x28] sm:$0xff]
      %v1731 = vld [vmem:[#allocation2 + $0x30] sm:$0xff]
      %v1732 = vld [vmem:[#allocation2 + $0x38] sm:$0xff]
      %v1733 = vld [vmem:[#allocation2 + $0x40] sm:$0xff]
      %v1734 = vld [vmem:[#allocation2 + $0x48] sm:$0xff]
      %v1735 = vld [vmem:[#allocation2 + $0x50] sm:$0xff]
      %v1736 = vld [vmem:[#allocation2 + $0x58] sm:$0xff]
      %v1737 = vld [vmem:[#allocation2 + $0x60] sm:$0xff]
      %v1738 = vld [vmem:[#allocation2 + $0x68] sm:$0xff]
      %v1739 = vld [vmem:[#allocation2 + $0x70] sm:$0xff]
      %v1740 = vld [vmem:[#allocation2 + $0x78] sm:$0xff]
      %v1741 = vld [vmem:[#allocation2 + $0x80] sm:$0xff]
      %v1742 = vld [vmem:[#allocation2 + $0x88] sm:$0xff]
      %v1743 = vld [vmem:[#allocation2 + $0x90] sm:$0xff]
      %v1744 = vld [vmem:[#allocation2 + $0x98] sm:$0xff]
      %v1745 = vpack.c.bf16 %v1727, %v1725
      %v1746 = vpack.c.bf16 %v1728, %v1726
      %v1747 = vpack.c.bf16 %v1731, %v1729
      %v1748 = vpack.c.bf16 %v1732, %v1730
      %v1749 = vpack.c.bf16 %v1735, %v1733
      %v1750 = vpack.c.bf16 %v1736, %v1734
      %v1751 = vpack.c.bf16 %v1739, %v1737
      %v1752 = vpack.c.bf16 %v1740, %v1738
      %v1753 = vpack.c.bf16 %v1743, %v1741
      %v1754 = vpack.c.bf16 %v1744, %v1742
      %s1755 = scalar_lea.vmem %s6, 24
      %v1756 = vld [vmem:[%s1755] sm:$0xf]
      %1758 = vset.pattern.permute.xlu0 0
      %1759 = vperm.xlu0 %1758, %v1756
      %v1760 = vpop.permute.xlu0 %1759
      %v1763 = vsel %vm722, %v1724, 0
      %1765 = vmatpush.bf16.msra.mxu0 0
      %1766 = vmatpush.bf16.msra.mxu0 0
      %1767 = vmatpush.bf16.msra.mxu0 0
      %1768 = vmatpush.bf16.msra.mxu0 %v1753
      %1769 = vmatpush.bf16.msra.mxu0 %v1751
      %1770 = vmatpush.bf16.msra.mxu0 %v1749
      %1771 = vmatpush.bf16.msra.mxu0 %v1747
      %1772 = vmatpush.bf16.msra.mxu0 %v1745
      %1773 = vmatmul.bf16.gmra.mxu0 %v1763
      %v1774 = vpop.f32.mrf.mxu0
      %v1775 = vadd.f32 %v1760, %v1774
      %v1776 = vpop.f32.mrf.mxu0
      %1777 = vdwg.mxu0
      %1778 = vmatpush.bf16.msra.mxu0 0
      %1779 = vmatpush.bf16.msra.mxu0 0
      %1780 = vmatpush.bf16.msra.mxu0 0
      %1781 = vmatpush.bf16.msra.mxu0 %v1754
      %1782 = vmatpush.bf16.msra.mxu0 %v1752
      %1783 = vmatpush.bf16.msra.mxu0 %v1750
      %1784 = vmatpush.bf16.msra.mxu0 %v1748
      %1785 = vmatpush.bf16.msra.mxu0 %v1746
      %1786 = vmatmul.bf16.gmra.mxu0 %v1763
      %v1787 = vpop.f32.mrf.mxu0
      %v1788 = vadd.f32 %v1760, %v1787
      %v1789 = vpop.f32.mrf.mxu0
      %1790 = vdwg.mxu0
      %vm1791 = vcmp.ge.f32.partialorder %v1775, 0.0
      %vm1792 = vcmp.ge.f32.partialorder %v1788, 0.0
      %v1793 = vmul.f32 %v1775, 0.01
      %v1794 = vmul.f32 %v1788, 0.01
      %v1795 = vsel %vm1791, %v1775, %v1793
      %v1796 = vsel %vm1792, %v1788, %v1794
      %1799 = vrot.lane.b32.xlu0 %v1795, 17
      %v1800 = vpop.permute.xlu0 %1799
      %1801 = vrot.lane.b32.xlu0 %v1796, 17
      %v1802 = vpop.permute.xlu0 %1801
      %v1803 = vsel %vm374, %v1800, %v1802
      %v1806 = vsel %vm364, %v1800, 0.0
      %v1807 = vsel %vm365, %v1803, 0.0
      %1808 = vst.msk [vmem:[#allocation2 + $0xa0] sm:$0xf] %vm380, %v1806
      %1809 = vst [vmem:[#allocation2 + $0xa8] sm:$0xf] %v1807
      %v1810 = vrot.slane %v1795, 4
      %v1811 = vrot.slane %v1796, 4
      %1812 = vrot.lane.b32.xlu0 %v1810, 16
      %v1813 = vpop.permute.xlu0 %1812
      %1814 = vrot.lane.b32.xlu0 %v1811, 16
      %v1815 = vpop.permute.xlu0 %1814
      %v1816 = vsel %vm391, %v1813, %v1815
      %1819 = vst.msk [vmem:[#allocation2 + $0xa0] sm:$0xf0] %vm395, %v1813
      %1820 = vst [vmem:[#allocation2 + $0xa8] sm:$0xf0] %v1816
      %1821 = vrot.lane.b32.xlu0 %v1795, 15
      %v1822 = vpop.permute.xlu0 %1821
      %1823 = vrot.lane.b32.xlu0 %v1796, 15
      %v1824 = vpop.permute.xlu0 %1823
      %v1825 = vsel %vm409, %v1822, %v1824
      %v1828 = vsel %vm400, %v1822, 0.0
      %v1829 = vsel %vm401, %v1825, 0.0
      %1830 = vst.msk [vmem:[#allocation2 + $0xb0] sm:$0xf] %vm415, %v1828
      %1831 = vst [vmem:[#allocation2 + $0xb8] sm:$0xf] %v1829
      %1832 = vrot.lane.b32.xlu0 %v1795, 1
      %v1833 = vpop.permute.xlu0 %1832
      %1834 = vrot.lane.b32.xlu0 %v1796, 1
      %v1835 = vpop.permute.xlu0 %1834
      %v1836 = vsel %vm425, %v1833, %v1835
      %v1839 = vsel %vm364, %v1833, 0.0
      %v1840 = vsel %vm365, %v1836, 0.0
      %v1843 = vrot.slane %v1839, 4
      %v1844 = vrot.slane %v1840, 4
      %1847 = vst.msk [vmem:[#allocation2 + $0xb0] sm:$0xf0] %vm437, %v1843
      %1848 = vst [vmem:[#allocation2 + $0xb8] sm:$0xf0] %v1844
      %1849 = vst [vmem:[#allocation2 + $0xc0] sm:$0xf] %v1795
      %1850 = vst [vmem:[#allocation2 + $0xc8] sm:$0xf] %v1796
      %1851 = vrot.lane.b32.xlu0 %v1795, 127
      %v1852 = vpop.permute.xlu0 %1851
      %1853 = vrot.lane.b32.xlu0 %v1796, 127
      %v1854 = vpop.permute.xlu0 %1853
      %v1855 = vsel %vm454, %v1852, %v1854
      %v1858 = vsel %vm400, %v1855, 0.0
      %v1859 = vsel %vm401, %v1854, 0.0
      %v1862 = vrot.slane %v1858, 4
      %v1863 = vrot.slane %v1859, 4
      %1866 = vst [vmem:[#allocation2 + $0xc0] sm:$0xf0] %v1862
      %1867 = vst.msk [vmem:[#allocation2 + $0xc8] sm:$0xf0] %vm467, %v1863
      %1868 = vrot.lane.b32.xlu0 %v1795, 113
      %v1869 = vpop.permute.xlu0 %1868
      %1870 = vrot.lane.b32.xlu0 %v1796, 113
      %v1871 = vpop.permute.xlu0 %1870
      %v1872 = vsel %vm476, %v1869, %v1871
      %v1875 = vsel %vm364, %v1872, 0.0
      %v1876 = vsel %vm365, %v1871, 0.0
      %1877 = vst [vmem:[#allocation2 + $0xd0] sm:$0xf] %v1875
      %1878 = vst.msk [vmem:[#allocation2 + $0xd8] sm:$0xf] %vm483, %v1876
      %1879 = vrot.lane.b32.xlu0 %v1810, 112
      %v1880 = vpop.permute.xlu0 %1879
      %1881 = vrot.lane.b32.xlu0 %v1811, 112
      %v1882 = vpop.permute.xlu0 %1881
      %v1883 = vsel %vm493, %v1880, %v1882
      %1886 = vst [vmem:[#allocation2 + $0xd0] sm:$0xf0] %v1883
      %1887 = vst.msk [vmem:[#allocation2 + $0xd8] sm:$0xf0] %vm498, %v1882
      %1888 = vrot.lane.b32.xlu0 %v1795, 111
      %v1889 = vpop.permute.xlu0 %1888
      %1890 = vrot.lane.b32.xlu0 %v1796, 111
      %v1891 = vpop.permute.xlu0 %1890
      %v1892 = vsel %vm507, %v1889, %v1891
      %v1895 = vsel %vm400, %v1892, 0.0
      %v1896 = vsel %vm401, %v1891, 0.0
      %1897 = vst [vmem:[#allocation2 + $0xe0] sm:$0xf] %v1895
      %1898 = vst.msk [vmem:[#allocation2 + $0xe8] sm:$0xf] %vm514, %v1896
      %s1899 = scalar_lea.vmem %s3, 2
      %v1900 = vld [vmem:[%s1899] sm:$0x3]
      %v1901 = vld [vmem:[#allocation2] sm:$0xff]
      %v1902 = vld [vmem:[#allocation2 + $0x8] sm:$0xff]
      %v1903 = vld [vmem:[#allocation2 + $0x10] sm:$0xff]
      %v1904 = vld [vmem:[#allocation2 + $0x18] sm:$0xff]
      %v1905 = vld [vmem:[#allocation2 + $0x20] sm:$0xff]
      %v1906 = vld [vmem:[#allocation2 + $0x28] sm:$0xff]
      %v1907 = vld [vmem:[#allocation2 + $0x30] sm:$0xff]
      %v1908 = vld [vmem:[#allocation2 + $0x38] sm:$0xff]
      %v1909 = vld [vmem:[#allocation2 + $0x40] sm:$0xff]
      %v1910 = vld [vmem:[#allocation2 + $0x48] sm:$0xff]
      %v1911 = vld [vmem:[#allocation2 + $0x50] sm:$0xff]
      %v1912 = vld [vmem:[#allocation2 + $0x58] sm:$0xff]
      %v1913 = vld [vmem:[#allocation2 + $0x60] sm:$0xff]
      %v1914 = vld [vmem:[#allocation2 + $0x68] sm:$0xff]
      %v1915 = vld [vmem:[#allocation2 + $0x70] sm:$0xff]
      %v1916 = vld [vmem:[#allocation2 + $0x78] sm:$0xff]
      %v1917 = vld [vmem:[#allocation2 + $0x80] sm:$0xff]
      %v1918 = vld [vmem:[#allocation2 + $0x88] sm:$0xff]
      %v1919 = vld [vmem:[#allocation2 + $0x90] sm:$0xff]
      %v1920 = vld [vmem:[#allocation2 + $0x98] sm:$0xff]
      %v1921 = vld [vmem:[#allocation2 + $0xa0] sm:$0xff]
      %v1922 = vld [vmem:[#allocation2 + $0xa8] sm:$0xff]
      %v1923 = vld [vmem:[#allocation2 + $0xb0] sm:$0xff]
      %v1924 = vld [vmem:[#allocation2 + $0xb8] sm:$0xff]
      %v1925 = vld [vmem:[#allocation2 + $0xc0] sm:$0xff]
      %v1926 = vld [vmem:[#allocation2 + $0xc8] sm:$0xff]
      %v1927 = vld [vmem:[#allocation2 + $0xd0] sm:$0xff]
      %v1928 = vld [vmem:[#allocation2 + $0xd8] sm:$0xff]
      %v1929 = vld [vmem:[#allocation2 + $0xe0] sm:$0xff]
      %v1930 = vld [vmem:[#allocation2 + $0xe8] sm:$0xff]
      %v1931 = vpack.c.bf16 %v1903, %v1901
      %v1932 = vpack.c.bf16 %v1904, %v1902
      %v1933 = vpack.c.bf16 %v1907, %v1905
      %v1934 = vpack.c.bf16 %v1908, %v1906
      %v1935 = vpack.c.bf16 %v1911, %v1909
      %v1936 = vpack.c.bf16 %v1912, %v1910
      %v1937 = vpack.c.bf16 %v1915, %v1913
      %v1938 = vpack.c.bf16 %v1916, %v1914
      %v1939 = vpack.c.bf16 %v1919, %v1917
      %v1940 = vpack.c.bf16 %v1920, %v1918
      %v1941 = vpack.c.bf16 %v1923, %v1921
      %v1942 = vpack.c.bf16 %v1924, %v1922
      %v1943 = vpack.c.bf16 %v1927, %v1925
      %v1944 = vpack.c.bf16 %v1928, %v1926
      %v1945 = vpack.c.bf16 %v1929, %v1929
      %v1946 = vpack.c.bf16 %v1930, %v1930
      %s1947 = scalar_lea.vmem %s6, 28
      %v1948 = vld [vmem:[%s1947] sm:$0xf]
      %1950 = vset.pattern.permute.xlu0 0
      %1951 = vperm.xlu0 %1950, %v1948
      %v1952 = vpop.permute.xlu0 %1951
      %v1955 = vsel %vm914, %v1900, 0
      %v1958 = vsel %vm543, %v1945, 0
      %v1961 = vsel %vm543, %v1946, 0
      %1963 = vmatpush.bf16.msra.mxu0 %v1958
      %1964 = vmatpush.bf16.msra.mxu0 %v1943
      %1965 = vmatpush.bf16.msra.mxu0 %v1941
      %1966 = vmatpush.bf16.msra.mxu0 %v1939
      %1967 = vmatpush.bf16.msra.mxu0 %v1937
      %1968 = vmatpush.bf16.msra.mxu0 %v1935
      %1969 = vmatpush.bf16.msra.mxu0 %v1933
      %1970 = vmatpush.bf16.msra.mxu0 %v1931
      %1971 = vmatmul.bf16.gmra.mxu0 %v1955
      %v1972 = vpop.f32.mrf.mxu0
      %v1973 = vadd.f32 %v1952, %v1972
      %v1974 = vpop.f32.mrf.mxu0
      %1975 = vdwg.mxu0
      %1976 = vmatpush.bf16.msra.mxu0 %v1961
      %1977 = vmatpush.bf16.msra.mxu0 %v1944
      %1978 = vmatpush.bf16.msra.mxu0 %v1942
      %1979 = vmatpush.bf16.msra.mxu0 %v1940
      %1980 = vmatpush.bf16.msra.mxu0 %v1938
      %1981 = vmatpush.bf16.msra.mxu0 %v1936
      %1982 = vmatpush.bf16.msra.mxu0 %v1934
      %1983 = vmatpush.bf16.msra.mxu0 %v1932
      %1984 = vmatmul.bf16.gmra.mxu0 %v1955
      %v1985 = vpop.f32.mrf.mxu0
      %v1986 = vadd.f32 %v1952, %v1985
      %v1987 = vpop.f32.mrf.mxu0
      %1988 = vdwg.mxu0
      %vm1989 = vcmp.ge.f32.partialorder %v1973, 0.0
      %vm1990 = vcmp.ge.f32.partialorder %v1986, 0.0
      %v1991 = vmul.f32 %v1973, 0.01
      %v1992 = vmul.f32 %v1986, 0.01
      %v1993 = vsel %vm1989, %v1973, %v1991
      %v1994 = vsel %vm1990, %v1986, %v1992
      %1997 = vrot.lane.b32.xlu0 %v1993, 17
      %v1998 = vpop.permute.xlu0 %1997
      %1999 = vrot.lane.b32.xlu0 %v1994, 17
      %v2000 = vpop.permute.xlu0 %1999
      %v2001 = vsel %vm374, %v1998, %v2000
      %v2004 = vsel %vm364, %v1998, 0.0
      %v2005 = vsel %vm365, %v2001, 0.0
      %2006 = vst.msk [vmem:[#allocation2 + $0xf0] sm:$0xf] %vm380, %v2004
      %2007 = vst [vmem:[#allocation2 + $0xf8] sm:$0xf] %v2005
      %v2008 = vrot.slane %v1993, 4
      %v2009 = vrot.slane %v1994, 4
      %2010 = vrot.lane.b32.xlu0 %v2008, 16
      %v2011 = vpop.permute.xlu0 %2010
      %2012 = vrot.lane.b32.xlu0 %v2009, 16
      %v2013 = vpop.permute.xlu0 %2012
      %v2014 = vsel %vm391, %v2011, %v2013
      %2017 = vst.msk [vmem:[#allocation2 + $0xf0] sm:$0xf0] %vm395, %v2011
      %2018 = vst [vmem:[#allocation2 + $0xf8] sm:$0xf0] %v2014
      %2019 = vrot.lane.b32.xlu0 %v1993, 15
      %v2020 = vpop.permute.xlu0 %2019
      %2021 = vrot.lane.b32.xlu0 %v1994, 15
      %v2022 = vpop.permute.xlu0 %2021
      %v2023 = vsel %vm409, %v2020, %v2022
      %v2026 = vsel %vm400, %v2020, 0.0
      %v2027 = vsel %vm401, %v2023, 0.0
      %2028 = vst.msk [vmem:[#allocation2 + $0x100] sm:$0xf] %vm415, %v2026
      %2029 = vst [vmem:[#allocation2 + $0x108] sm:$0xf] %v2027
      %2030 = vrot.lane.b32.xlu0 %v1993, 1
      %v2031 = vpop.permute.xlu0 %2030
      %2032 = vrot.lane.b32.xlu0 %v1994, 1
      %v2033 = vpop.permute.xlu0 %2032
      %v2034 = vsel %vm425, %v2031, %v2033
      %v2037 = vsel %vm364, %v2031, 0.0
      %v2038 = vsel %vm365, %v2034, 0.0
      %v2041 = vrot.slane %v2037, 4
      %v2042 = vrot.slane %v2038, 4
      %2045 = vst.msk [vmem:[#allocation2 + $0x100] sm:$0xf0] %vm437, %v2041
      %2046 = vst [vmem:[#allocation2 + $0x108] sm:$0xf0] %v2042
      %2047 = vst [vmem:[#allocation2 + $0x110] sm:$0xf] %v1993
      %2048 = vst [vmem:[#allocation2 + $0x118] sm:$0xf] %v1994
      %2049 = vrot.lane.b32.xlu0 %v1993, 127
      %v2050 = vpop.permute.xlu0 %2049
      %2051 = vrot.lane.b32.xlu0 %v1994, 127
      %v2052 = vpop.permute.xlu0 %2051
      %v2053 = vsel %vm454, %v2050, %v2052
      %v2056 = vsel %vm400, %v2053, 0.0
      %v2057 = vsel %vm401, %v2052, 0.0
      %v2060 = vrot.slane %v2056, 4
      %v2061 = vrot.slane %v2057, 4
      %2064 = vst [vmem:[#allocation2 + $0x110] sm:$0xf0] %v2060
      %2065 = vst.msk [vmem:[#allocation2 + $0x118] sm:$0xf0] %vm467, %v2061
      %2066 = vrot.lane.b32.xlu0 %v1993, 113
      %v2067 = vpop.permute.xlu0 %2066
      %2068 = vrot.lane.b32.xlu0 %v1994, 113
      %v2069 = vpop.permute.xlu0 %2068
      %v2070 = vsel %vm476, %v2067, %v2069
      %v2073 = vsel %vm364, %v2070, 0.0
      %v2074 = vsel %vm365, %v2069, 0.0
      %2075 = vst [vmem:[#allocation2 + $0x120] sm:$0xf] %v2073
      %2076 = vst.msk [vmem:[#allocation2 + $0x128] sm:$0xf] %vm483, %v2074
      %2077 = vrot.lane.b32.xlu0 %v2008, 112
      %v2078 = vpop.permute.xlu0 %2077
      %2079 = vrot.lane.b32.xlu0 %v2009, 112
      %v2080 = vpop.permute.xlu0 %2079
      %v2081 = vsel %vm493, %v2078, %v2080
      %2084 = vst [vmem:[#allocation2 + $0x120] sm:$0xf0] %v2081
      %2085 = vst.msk [vmem:[#allocation2 + $0x128] sm:$0xf0] %vm498, %v2080
      %2086 = vrot.lane.b32.xlu0 %v1993, 111
      %v2087 = vpop.permute.xlu0 %2086
      %2088 = vrot.lane.b32.xlu0 %v1994, 111
      %v2089 = vpop.permute.xlu0 %2088
      %v2090 = vsel %vm507, %v2087, %v2089
      %v2093 = vsel %vm400, %v2090, 0.0
      %v2094 = vsel %vm401, %v2089, 0.0
      %2095 = vst [vmem:[#allocation2 + $0x130] sm:$0xf] %v2093
      %2096 = vst.msk [vmem:[#allocation2 + $0x138] sm:$0xf] %vm514, %v2094
      %s2097 = scalar_lea.vmem %s4, 4
      %v2098 = vld [vmem:[%s2097] sm:$0xf]
      %v2099 = vld [vmem:[#allocation2] sm:$0xff]
      %v2100 = vld [vmem:[#allocation2 + $0x8] sm:$0xff]
      %v2101 = vld [vmem:[#allocation2 + $0x10] sm:$0xff]
      %v2102 = vld [vmem:[#allocation2 + $0x18] sm:$0xff]
      %v2103 = vld [vmem:[#allocation2 + $0x20] sm:$0xff]
      %v2104 = vld [vmem:[#allocation2 + $0x28] sm:$0xff]
      %v2105 = vld [vmem:[#allocation2 + $0x30] sm:$0xff]
      %v2106 = vld [vmem:[#allocation2 + $0x38] sm:$0xff]
      %v2107 = vld [vmem:[#allocation2 + $0x40] sm:$0xff]
      %v2108 = vld [vmem:[#allocation2 + $0x48] sm:$0xff]
      %v2109 = vld [vmem:[#allocation2 + $0x50] sm:$0xff]
      %v2110 = vld [vmem:[#allocation2 + $0x58] sm:$0xff]
      %v2111 = vld [vmem:[#allocation2 + $0x60] sm:$0xff]
      %v2112 = vld [vmem:[#allocation2 + $0x68] sm:$0xff]
      %v2113 = vld [vmem:[#allocation2 + $0x70] sm:$0xff]
      %v2114 = vld [vmem:[#allocation2 + $0x78] sm:$0xff]
      %v2115 = vld [vmem:[#allocation2 + $0x80] sm:$0xff]
      %v2116 = vld [vmem:[#allocation2 + $0x88] sm:$0xff]
      %v2117 = vld [vmem:[#allocation2 + $0x90] sm:$0xff]
      %v2118 = vld [vmem:[#allocation2 + $0x98] sm:$0xff]
      %v2119 = vld [vmem:[#allocation2 + $0xa0] sm:$0xff]
      %v2120 = vld [vmem:[#allocation2 + $0xa8] sm:$0xff]
      %v2121 = vld [vmem:[#allocation2 + $0xb0] sm:$0xff]
      %v2122 = vld [vmem:[#allocation2 + $0xb8] sm:$0xff]
      %v2123 = vld [vmem:[#allocation2 + $0xc0] sm:$0xff]
      %v2124 = vld [vmem:[#allocation2 + $0xc8] sm:$0xff]
      %v2125 = vld [vmem:[#allocation2 + $0xd0] sm:$0xff]
      %v2126 = vld [vmem:[#allocation2 + $0xd8] sm:$0xff]
      %v2127 = vld [vmem:[#allocation2 + $0xe0] sm:$0xff]
      %v2128 = vld [vmem:[#allocation2 + $0xe8] sm:$0xff]
      %v2129 = vld [vmem:[#allocation2 + $0xf0] sm:$0xff]
      %v2130 = vld [vmem:[#allocation2 + $0xf8] sm:$0xff]
      %v2131 = vld [vmem:[#allocation2 + $0x100] sm:$0xff]
      %v2132 = vld [vmem:[#allocation2 + $0x108] sm:$0xff]
      %v2133 = vld [vmem:[#allocation2 + $0x110] sm:$0xff]
      %v2134 = vld [vmem:[#allocation2 + $0x118] sm:$0xff]
      %v2135 = vld [vmem:[#allocation2 + $0x120] sm:$0xff]
      %v2136 = vld [vmem:[#allocation2 + $0x128] sm:$0xff]
      %v2137 = vld [vmem:[#allocation2 + $0x130] sm:$0xff]
      %v2138 = vld [vmem:[#allocation2 + $0x138] sm:$0xff]
      %v2139 = vpack.c.bf16 %v2101, %v2099
      %v2140 = vpack.c.bf16 %v2102, %v2100
      %v2141 = vpack.c.bf16 %v2105, %v2103
      %v2142 = vpack.c.bf16 %v2106, %v2104
      %v2143 = vpack.c.bf16 %v2109, %v2107
      %v2144 = vpack.c.bf16 %v2110, %v2108
      %v2145 = vpack.c.bf16 %v2113, %v2111
      %v2146 = vpack.c.bf16 %v2114, %v2112
      %v2147 = vpack.c.bf16 %v2117, %v2115
      %v2148 = vpack.c.bf16 %v2118, %v2116
      %v2149 = vpack.c.bf16 %v2121, %v2119
      %v2150 = vpack.c.bf16 %v2122, %v2120
      %v2151 = vpack.c.bf16 %v2125, %v2123
      %v2152 = vpack.c.bf16 %v2126, %v2124
      %v2153 = vpack.c.bf16 %v2129, %v2127
      %v2154 = vpack.c.bf16 %v2130, %v2128
      %v2155 = vpack.c.bf16 %v2133, %v2131
      %v2156 = vpack.c.bf16 %v2134, %v2132
      %v2157 = vpack.c.bf16 %v2137, %v2135
      %v2158 = vpack.c.bf16 %v2138, %v2136
      %s2159 = scalar_lea.vmem %s6, 32
      %v2160 = vld [vmem:[%s2159] sm:$0xf]
      %2162 = vset.pattern.permute.xlu0 0
      %2163 = vperm.xlu0 %2162, %v2160
      %v2164 = vpop.permute.xlu0 %2163
      %2167 = vst [vmem:[#allocation1] ss:$4 sm:$0xff] %v2098
      %v2168 = vld.sshfl [vmem:[#allocation1] sm:$0xff pattern:$0x73625140]
      %v2169 = vld.sshfl [vmem:[#allocation1 + $0x8] sm:$0xff pattern:$0x73625140]
      %v2171 = vsel %vm1131, %v2169, 0
      %2173 = vmatpush.bf16.msra.mxu0 %v2153
      %2174 = vmatpush.bf16.msra.mxu0 %v2151
      %2175 = vmatpush.bf16.msra.mxu0 %v2149
      %2176 = vmatpush.bf16.msra.mxu0 %v2147
      %2177 = vmatpush.bf16.msra.mxu0 %v2145
      %2178 = vmatpush.bf16.msra.mxu0 %v2143
      %2179 = vmatpush.bf16.msra.mxu0 %v2141
      %2180 = vmatpush.bf16.msra.mxu0 %v2139
      %2181 = vmatmul.bf16.gmra.mxu0 %v2168
      %v2182 = vpop.f32.mrf.mxu0
      %v2183 = vadd.f32 %v2164, %v2182
      %v2184 = vpop.f32.mrf.mxu0
      %2185 = vdwg.mxu0
      %2186 = vmatpush.bf16.msra.mxu0 0
      %2187 = vmatpush.bf16.msra.mxu0 0
      %2188 = vmatpush.bf16.msra.mxu0 0
      %2189 = vmatpush.bf16.msra.mxu0 0
      %2190 = vmatpush.bf16.msra.mxu0 0
      %2191 = vmatpush.bf16.msra.mxu0 0
      %2192 = vmatpush.bf16.msra.mxu0 %v2157
      %2193 = vmatpush.bf16.msra.mxu0 %v2155
      %2194 = vmatmul.bf16.gmra.mxu0 %v2171
      %v2195 = vpop.f32.mrf.mxu0
      %v2196 = vadd.f32 %v2183, %v2195
      %v2197 = vpop.f32.mrf.mxu0
      %2198 = vdwg.mxu0
      %2199 = vmatpush.bf16.msra.mxu0 %v2154
      %2200 = vmatpush.bf16.msra.mxu0 %v2152
      %2201 = vmatpush.bf16.msra.mxu0 %v2150
      %2202 = vmatpush.bf16.msra.mxu0 %v2148
      %2203 = vmatpush.bf16.msra.mxu0 %v2146
      %2204 = vmatpush.bf16.msra.mxu0 %v2144
      %2205 = vmatpush.bf16.msra.mxu0 %v2142
      %2206 = vmatpush.bf16.msra.mxu0 %v2140
      %2207 = vmatmul.bf16.gmra.mxu0 %v2168
      %v2208 = vpop.f32.mrf.mxu0
      %v2209 = vadd.f32 %v2164, %v2208
      %v2210 = vpop.f32.mrf.mxu0
      %2211 = vdwg.mxu0
      %2212 = vmatpush.bf16.msra.mxu0 0
      %2213 = vmatpush.bf16.msra.mxu0 0
      %2214 = vmatpush.bf16.msra.mxu0 0
      %2215 = vmatpush.bf16.msra.mxu0 0
      %2216 = vmatpush.bf16.msra.mxu0 0
      %2217 = vmatpush.bf16.msra.mxu0 0
      %2218 = vmatpush.bf16.msra.mxu0 %v2158
      %2219 = vmatpush.bf16.msra.mxu0 %v2156
      %2220 = vmatmul.bf16.gmra.mxu0 %v2171
      %v2221 = vpop.f32.mrf.mxu0
      %v2222 = vadd.f32 %v2209, %v2221
      %v2223 = vpop.f32.mrf.mxu0
      %2224 = vdwg.mxu0
      %vm2225 = vcmp.ge.f32.partialorder %v2196, 0.0
      %vm2226 = vcmp.ge.f32.partialorder %v2222, 0.0
      %v2227 = vmul.f32 %v2196, 0.01
      %v2228 = vmul.f32 %v2222, 0.01
      %v2229 = vsel %vm2225, %v2196, %v2227
      %v2230 = vsel %vm2226, %v2222, %v2228
      %2233 = vrot.lane.b32.xlu0 %v2229, 17
      %v2234 = vpop.permute.xlu0 %2233
      %2235 = vrot.lane.b32.xlu0 %v2230, 17
      %v2236 = vpop.permute.xlu0 %2235
      %v2237 = vsel %vm374, %v2234, %v2236
      %v2240 = vsel %vm364, %v2234, 0.0
      %v2241 = vsel %vm365, %v2237, 0.0
      %2242 = vst.msk [vmem:[#allocation2 + $0x140] sm:$0xf] %vm380, %v2240
      %2243 = vst [vmem:[#allocation2 + $0x148] sm:$0xf] %v2241
      %v2244 = vrot.slane %v2229, 4
      %v2245 = vrot.slane %v2230, 4
      %2246 = vrot.lane.b32.xlu0 %v2244, 16
      %v2247 = vpop.permute.xlu0 %2246
      %2248 = vrot.lane.b32.xlu0 %v2245, 16
      %v2249 = vpop.permute.xlu0 %2248
      %v2250 = vsel %vm391, %v2247, %v2249
      %2253 = vst.msk [vmem:[#allocation2 + $0x140] sm:$0xf0] %vm395, %v2247
      %2254 = vst [vmem:[#allocation2 + $0x148] sm:$0xf0] %v2250
      %2255 = vrot.lane.b32.xlu0 %v2229, 15
      %v2256 = vpop.permute.xlu0 %2255
      %2257 = vrot.lane.b32.xlu0 %v2230, 15
      %v2258 = vpop.permute.xlu0 %2257
      %v2259 = vsel %vm409, %v2256, %v2258
      %v2262 = vsel %vm400, %v2256, 0.0
      %v2263 = vsel %vm401, %v2259, 0.0
      %2264 = vst.msk [vmem:[#allocation2 + $0x150] sm:$0xf] %vm415, %v2262
      %2265 = vst [vmem:[#allocation2 + $0x158] sm:$0xf] %v2263
      %2266 = vrot.lane.b32.xlu0 %v2229, 1
      %v2267 = vpop.permute.xlu0 %2266
      %2268 = vrot.lane.b32.xlu0 %v2230, 1
      %v2269 = vpop.permute.xlu0 %2268
      %v2270 = vsel %vm425, %v2267, %v2269
      %v2273 = vsel %vm364, %v2267, 0.0
      %v2274 = vsel %vm365, %v2270, 0.0
      %v2277 = vrot.slane %v2273, 4
      %v2278 = vrot.slane %v2274, 4
      %2281 = vst.msk [vmem:[#allocation2 + $0x150] sm:$0xf0] %vm437, %v2277
      %2282 = vst [vmem:[#allocation2 + $0x158] sm:$0xf0] %v2278
      %2283 = vst [vmem:[#allocation2 + $0x160] sm:$0xf] %v2229
      %2284 = vst [vmem:[#allocation2 + $0x168] sm:$0xf] %v2230
      %2285 = vrot.lane.b32.xlu0 %v2229, 127
      %v2286 = vpop.permute.xlu0 %2285
      %2287 = vrot.lane.b32.xlu0 %v2230, 127
      %v2288 = vpop.permute.xlu0 %2287
      %v2289 = vsel %vm454, %v2286, %v2288
      %v2292 = vsel %vm400, %v2289, 0.0
      %v2293 = vsel %vm401, %v2288, 0.0
      %v2296 = vrot.slane %v2292, 4
      %v2297 = vrot.slane %v2293, 4
      %2300 = vst [vmem:[#allocation2 + $0x160] sm:$0xf0] %v2296
      %2301 = vst.msk [vmem:[#allocation2 + $0x168] sm:$0xf0] %vm467, %v2297
      %2302 = vrot.lane.b32.xlu0 %v2229, 113
      %v2303 = vpop.permute.xlu0 %2302
      %2304 = vrot.lane.b32.xlu0 %v2230, 113
      %v2305 = vpop.permute.xlu0 %2304
      %v2306 = vsel %vm476, %v2303, %v2305
      %v2309 = vsel %vm364, %v2306, 0.0
      %v2310 = vsel %vm365, %v2305, 0.0
      %2311 = vst [vmem:[#allocation2 + $0x170] sm:$0xf] %v2309
      %2312 = vst.msk [vmem:[#allocation2 + $0x178] sm:$0xf] %vm483, %v2310
      %2313 = vrot.lane.b32.xlu0 %v2244, 112
      %v2314 = vpop.permute.xlu0 %2313
      %2315 = vrot.lane.b32.xlu0 %v2245, 112
      %v2316 = vpop.permute.xlu0 %2315
      %v2317 = vsel %vm493, %v2314, %v2316
      %2320 = vst [vmem:[#allocation2 + $0x170] sm:$0xf0] %v2317
      %2321 = vst.msk [vmem:[#allocation2 + $0x178] sm:$0xf0] %vm498, %v2316
      %2322 = vrot.lane.b32.xlu0 %v2229, 111
      %v2323 = vpop.permute.xlu0 %2322
      %2324 = vrot.lane.b32.xlu0 %v2230, 111
      %v2325 = vpop.permute.xlu0 %2324
      %v2326 = vsel %vm507, %v2323, %v2325
      %v2329 = vsel %vm400, %v2326, 0.0
      %v2330 = vsel %vm401, %v2325, 0.0
      %2331 = vst [vmem:[#allocation2 + $0x180] sm:$0xf] %v2329
      %2332 = vst.msk [vmem:[#allocation2 + $0x188] sm:$0xf] %vm514, %v2330
      %s2333 = scalar_lea.vmem %s5, 4
      %v2334 = vld [vmem:[%s2333] sm:$0xf]
      %v2335 = vld [vmem:[#allocation2] sm:$0xff]
      %v2336 = vld [vmem:[#allocation2 + $0x8] sm:$0xff]
      %v2337 = vld [vmem:[#allocation2 + $0x10] sm:$0xff]
      %v2338 = vld [vmem:[#allocation2 + $0x18] sm:$0xff]
      %v2339 = vld [vmem:[#allocation2 + $0x20] sm:$0xff]
      %v2340 = vld [vmem:[#allocation2 + $0x28] sm:$0xff]
      %v2341 = vld [vmem:[#allocation2 + $0x30] sm:$0xff]
      %v2342 = vld [vmem:[#allocation2 + $0x38] sm:$0xff]
      %v2343 = vld [vmem:[#allocation2 + $0x40] sm:$0xff]
      %v2344 = vld [vmem:[#allocation2 + $0x48] sm:$0xff]
      %v2345 = vld [vmem:[#allocation2 + $0x50] sm:$0xff]
      %v2346 = vld [vmem:[#allocation2 + $0x58] sm:$0xff]
      %v2347 = vld [vmem:[#allocation2 + $0x60] sm:$0xff]
      %v2348 = vld [vmem:[#allocation2 + $0x68] sm:$0xff]
      %v2349 = vld [vmem:[#allocation2 + $0x70] sm:$0xff]
      %v2350 = vld [vmem:[#allocation2 + $0x78] sm:$0xff]
      %v2351 = vld [vmem:[#allocation2 + $0x80] sm:$0xff]
      %v2352 = vld [vmem:[#allocation2 + $0x88] sm:$0xff]
      %v2353 = vld [vmem:[#allocation2 + $0x90] sm:$0xff]
      %v2354 = vld [vmem:[#allocation2 + $0x98] sm:$0xff]
      %v2355 = vld [vmem:[#allocation2 + $0xa0] sm:$0xff]
      %v2356 = vld [vmem:[#allocation2 + $0xa8] sm:$0xff]
      %v2357 = vld [vmem:[#allocation2 + $0xb0] sm:$0xff]
      %v2358 = vld [vmem:[#allocation2 + $0xb8] sm:$0xff]
      %v2359 = vld [vmem:[#allocation2 + $0xc0] sm:$0xff]
      %v2360 = vld [vmem:[#allocation2 + $0xc8] sm:$0xff]
      %v2361 = vld [vmem:[#allocation2 + $0xd0] sm:$0xff]
      %v2362 = vld [vmem:[#allocation2 + $0xd8] sm:$0xff]
      %v2363 = vld [vmem:[#allocation2 + $0xe0] sm:$0xff]
      %v2364 = vld [vmem:[#allocation2 + $0xe8] sm:$0xff]
      %v2365 = vld [vmem:[#allocation2 + $0xf0] sm:$0xff]
      %v2366 = vld [vmem:[#allocation2 + $0xf8] sm:$0xff]
      %v2367 = vld [vmem:[#allocation2 + $0x100] sm:$0xff]
      %v2368 = vld [vmem:[#allocation2 + $0x108] sm:$0xff]
      %v2369 = vld [vmem:[#allocation2 + $0x110] sm:$0xff]
      %v2370 = vld [vmem:[#allocation2 + $0x118] sm:$0xff]
      %v2371 = vld [vmem:[#allocation2 + $0x120] sm:$0xff]
      %v2372 = vld [vmem:[#allocation2 + $0x128] sm:$0xff]
      %v2373 = vld [vmem:[#allocation2 + $0x130] sm:$0xff]
      %v2374 = vld [vmem:[#allocation2 + $0x138] sm:$0xff]
      %v2375 = vld [vmem:[#allocation2 + $0x140] sm:$0xff]
      %v2376 = vld [vmem:[#allocation2 + $0x148] sm:$0xff]
      %v2377 = vld [vmem:[#allocation2 + $0x150] sm:$0xff]
      %v2378 = vld [vmem:[#allocation2 + $0x158] sm:$0xff]
      %v2379 = vld [vmem:[#allocation2 + $0x160] sm:$0xff]
      %v2380 = vld [vmem:[#allocation2 + $0x168] sm:$0xff]
      %v2381 = vld [vmem:[#allocation2 + $0x170] sm:$0xff]
      %v2382 = vld [vmem:[#allocation2 + $0x178] sm:$0xff]
      %v2383 = vld [vmem:[#allocation2 + $0x180] sm:$0xff]
      %v2384 = vld [vmem:[#allocation2 + $0x188] sm:$0xff]
      %v2385 = vpack.c.bf16 %v2337, %v2335
      %v2386 = vpack.c.bf16 %v2338, %v2336
      %v2387 = vpack.c.bf16 %v2341, %v2339
      %v2388 = vpack.c.bf16 %v2342, %v2340
      %v2389 = vpack.c.bf16 %v2345, %v2343
      %v2390 = vpack.c.bf16 %v2346, %v2344
      %v2391 = vpack.c.bf16 %v2349, %v2347
      %v2392 = vpack.c.bf16 %v2350, %v2348
      %v2393 = vpack.c.bf16 %v2353, %v2351
      %v2394 = vpack.c.bf16 %v2354, %v2352
      %v2395 = vpack.c.bf16 %v2357, %v2355
      %v2396 = vpack.c.bf16 %v2358, %v2356
      %v2397 = vpack.c.bf16 %v2361, %v2359
      %v2398 = vpack.c.bf16 %v2362, %v2360
      %v2399 = vpack.c.bf16 %v2365, %v2363
      %v2400 = vpack.c.bf16 %v2366, %v2364
      %v2401 = vpack.c.bf16 %v2369, %v2367
      %v2402 = vpack.c.bf16 %v2370, %v2368
      %v2403 = vpack.c.bf16 %v2373, %v2371
      %v2404 = vpack.c.bf16 %v2374, %v2372
      %v2405 = vpack.c.bf16 %v2377, %v2375
      %v2406 = vpack.c.bf16 %v2378, %v2376
      %v2407 = vpack.c.bf16 %v2381, %v2379
      %v2408 = vpack.c.bf16 %v2382, %v2380
      %v2409 = vpack.c.bf16 %v2383, %v2383
      %v2410 = vpack.c.bf16 %v2384, %v2384
      %s2411 = scalar_lea.vmem %s6, 36
      %v2412 = vld [vmem:[%s2411] sm:$0xf]
      %2414 = vset.pattern.permute.xlu0 0
      %2415 = vperm.xlu0 %2414, %v2412
      %v2416 = vpop.permute.xlu0 %2415
      %2419 = vst [vmem:[#allocation1] ss:$4 sm:$0xff] %v2334
      %v2420 = vld.sshfl [vmem:[#allocation1] sm:$0xff pattern:$0x73625140]
      %v2421 = vld.sshfl [vmem:[#allocation1 + $0x8] sm:$0xff pattern:$0x73625140]
      %v2423 = vsel %vm1383, %v2421, 0
      %v2426 = vsel %vm543, %v2409, 0
      %v2429 = vsel %vm543, %v2410, 0
      %2431 = vmatpush.bf16.msra.mxu0 %v2399
      %2432 = vmatpush.bf16.msra.mxu0 %v2397
      %2433 = vmatpush.bf16.msra.mxu0 %v2395
      %2434 = vmatpush.bf16.msra.mxu0 %v2393
      %2435 = vmatpush.bf16.msra.mxu0 %v2391
      %2436 = vmatpush.bf16.msra.mxu0 %v2389
      %2437 = vmatpush.bf16.msra.mxu0 %v2387
      %2438 = vmatpush.bf16.msra.mxu0 %v2385
      %2439 = vmatmul.bf16.gmra.mxu0 %v2420
      %v2440 = vpop.f32.mrf.mxu0
      %v2441 = vadd.f32 %v2416, %v2440
      %v2442 = vpop.f32.mrf.mxu0
      %2443 = vdwg.mxu0
      %2444 = vmatpush.bf16.msra.mxu0 0
      %2445 = vmatpush.bf16.msra.mxu0 0
      %2446 = vmatpush.bf16.msra.mxu0 0
      %2447 = vmatpush.bf16.msra.mxu0 %v2426
      %2448 = vmatpush.bf16.msra.mxu0 %v2407
      %2449 = vmatpush.bf16.msra.mxu0 %v2405
      %2450 = vmatpush.bf16.msra.mxu0 %v2403
      %2451 = vmatpush.bf16.msra.mxu0 %v2401
      %2452 = vmatmul.bf16.gmra.mxu0 %v2423
      %v2453 = vpop.f32.mrf.mxu0
      %v2454 = vadd.f32 %v2441, %v2453
      %v2455 = vpop.f32.mrf.mxu0
      %2456 = vdwg.mxu0
      %2457 = vmatpush.bf16.msra.mxu0 %v2400
      %2458 = vmatpush.bf16.msra.mxu0 %v2398
      %2459 = vmatpush.bf16.msra.mxu0 %v2396
      %2460 = vmatpush.bf16.msra.mxu0 %v2394
      %2461 = vmatpush.bf16.msra.mxu0 %v2392
      %2462 = vmatpush.bf16.msra.mxu0 %v2390
      %2463 = vmatpush.bf16.msra.mxu0 %v2388
      %2464 = vmatpush.bf16.msra.mxu0 %v2386
      %2465 = vmatmul.bf16.gmra.mxu0 %v2420
      %v2466 = vpop.f32.mrf.mxu0
      %v2467 = vadd.f32 %v2416, %v2466
      %v2468 = vpop.f32.mrf.mxu0
      %2469 = vdwg.mxu0
      %2470 = vmatpush.bf16.msra.mxu0 0
      %2471 = vmatpush.bf16.msra.mxu0 0
      %2472 = vmatpush.bf16.msra.mxu0 0
      %2473 = vmatpush.bf16.msra.mxu0 %v2429
      %2474 = vmatpush.bf16.msra.mxu0 %v2408
      %2475 = vmatpush.bf16.msra.mxu0 %v2406
      %2476 = vmatpush.bf16.msra.mxu0 %v2404
      %2477 = vmatpush.bf16.msra.mxu0 %v2402
      %2478 = vmatmul.bf16.gmra.mxu0 %v2423
      %v2479 = vpop.f32.mrf.mxu0
      %v2480 = vadd.f32 %v2467, %v2479
      %v2481 = vpop.f32.mrf.mxu0
      %2482 = vdwg.mxu0
      %v2483 = vmul.f32 %v2454, 0.2
      %v2484 = vmul.f32 %v2480, 0.2
      %v2485 = vadd.f32 %v2483, %v1451
      %v2486 = vadd.f32 %v2484, %v1452
      %2489 = vrot.lane.b32.xlu0 %v2485, 17
      %v2490 = vpop.permute.xlu0 %2489
      %2491 = vrot.lane.b32.xlu0 %v2486, 17
      %v2492 = vpop.permute.xlu0 %2491
      %v2493 = vsel %vm374, %v2490, %v2492
      %v2496 = vsel %vm364, %v2490, 0.0
      %v2497 = vsel %vm365, %v2493, 0.0
      %2498 = vst.msk [vmem:[#allocation2] sm:$0xf] %vm380, %v2496
      %2499 = vst [vmem:[#allocation2 + $0x8] sm:$0xf] %v2497
      %v2500 = vrot.slane %v2485, 4
      %v2501 = vrot.slane %v2486, 4
      %2502 = vrot.lane.b32.xlu0 %v2500, 16
      %v2503 = vpop.permute.xlu0 %2502
      %2504 = vrot.lane.b32.xlu0 %v2501, 16
      %v2505 = vpop.permute.xlu0 %2504
      %v2506 = vsel %vm391, %v2503, %v2505
      %2509 = vst.msk [vmem:[#allocation2] sm:$0xf0] %vm395, %v2503
      %2510 = vst [vmem:[#allocation2 + $0x8] sm:$0xf0] %v2506
      %2511 = vrot.lane.b32.xlu0 %v2485, 15
      %v2512 = vpop.permute.xlu0 %2511
      %2513 = vrot.lane.b32.xlu0 %v2486, 15
      %v2514 = vpop.permute.xlu0 %2513
      %v2515 = vsel %vm409, %v2512, %v2514
      %v2518 = vsel %vm400, %v2512, 0.0
      %v2519 = vsel %vm401, %v2515, 0.0
      %2520 = vst.msk [vmem:[#allocation2 + $0x10] sm:$0xf] %vm415, %v2518
      %2521 = vst [vmem:[#allocation2 + $0x18] sm:$0xf] %v2519
      %2522 = vrot.lane.b32.xlu0 %v2485, 1
      %v2523 = vpop.permute.xlu0 %2522
      %2524 = vrot.lane.b32.xlu0 %v2486, 1
      %v2525 = vpop.permute.xlu0 %2524
      %v2526 = vsel %vm425, %v2523, %v2525
      %v2529 = vsel %vm364, %v2523, 0.0
      %v2530 = vsel %vm365, %v2526, 0.0
      %v2533 = vrot.slane %v2529, 4
      %v2534 = vrot.slane %v2530, 4
      %2537 = vst.msk [vmem:[#allocation2 + $0x10] sm:$0xf0] %vm437, %v2533
      %2538 = vst [vmem:[#allocation2 + $0x18] sm:$0xf0] %v2534
      %2539 = vst [vmem:[#allocation2 + $0x20] sm:$0xf] %v2485
      %2540 = vst [vmem:[#allocation2 + $0x28] sm:$0xf] %v2486
      %2541 = vrot.lane.b32.xlu0 %v2485, 127
      %v2542 = vpop.permute.xlu0 %2541
      %2543 = vrot.lane.b32.xlu0 %v2486, 127
      %v2544 = vpop.permute.xlu0 %2543
      %v2545 = vsel %vm454, %v2542, %v2544
      %v2548 = vsel %vm400, %v2545, 0.0
      %v2549 = vsel %vm401, %v2544, 0.0
      %v2552 = vrot.slane %v2548, 4
      %v2553 = vrot.slane %v2549, 4
      %2556 = vst [vmem:[#allocation2 + $0x20] sm:$0xf0] %v2552
      %2557 = vst.msk [vmem:[#allocation2 + $0x28] sm:$0xf0] %vm467, %v2553
      %2558 = vrot.lane.b32.xlu0 %v2485, 113
      %v2559 = vpop.permute.xlu0 %2558
      %2560 = vrot.lane.b32.xlu0 %v2486, 113
      %v2561 = vpop.permute.xlu0 %2560
      %v2562 = vsel %vm476, %v2559, %v2561
      %v2565 = vsel %vm364, %v2562, 0.0
      %v2566 = vsel %vm365, %v2561, 0.0
      %2567 = vst [vmem:[#allocation2 + $0x30] sm:$0xf] %v2565
      %2568 = vst.msk [vmem:[#allocation2 + $0x38] sm:$0xf] %vm483, %v2566
      %2569 = vrot.lane.b32.xlu0 %v2500, 112
      %v2570 = vpop.permute.xlu0 %2569
      %2571 = vrot.lane.b32.xlu0 %v2501, 112
      %v2572 = vpop.permute.xlu0 %2571
      %v2573 = vsel %vm493, %v2570, %v2572
      %2576 = vst [vmem:[#allocation2 + $0x30] sm:$0xf0] %v2573
      %2577 = vst.msk [vmem:[#allocation2 + $0x38] sm:$0xf0] %vm498, %v2572
      %2578 = vrot.lane.b32.xlu0 %v2485, 111
      %v2579 = vpop.permute.xlu0 %2578
      %2580 = vrot.lane.b32.xlu0 %v2486, 111
      %v2581 = vpop.permute.xlu0 %2580
      %v2582 = vsel %vm507, %v2579, %v2581
      %v2585 = vsel %vm400, %v2582, 0.0
      %v2586 = vsel %vm401, %v2581, 0.0
      %2587 = vst [vmem:[#allocation2 + $0x40] sm:$0xf] %v2585
      %2588 = vst.msk [vmem:[#allocation2 + $0x48] sm:$0xf] %vm514, %v2586
      %s2589 = scalar_lea.vmem %s1, 4
      %v2590 = vld [vmem:[%s2589] sm:$0x3]
      %v2591 = vld [vmem:[#allocation2] sm:$0xff]
      %v2592 = vld [vmem:[#allocation2 + $0x8] sm:$0xff]
      %v2593 = vld [vmem:[#allocation2 + $0x10] sm:$0xff]
      %v2594 = vld [vmem:[#allocation2 + $0x18] sm:$0xff]
      %v2595 = vld [vmem:[#allocation2 + $0x20] sm:$0xff]
      %v2596 = vld [vmem:[#allocation2 + $0x28] sm:$0xff]
      %v2597 = vld [vmem:[#allocation2 + $0x30] sm:$0xff]
      %v2598 = vld [vmem:[#allocation2 + $0x38] sm:$0xff]
      %v2599 = vld [vmem:[#allocation2 + $0x40] sm:$0xff]
      %v2600 = vld [vmem:[#allocation2 + $0x48] sm:$0xff]
      %v2601 = vpack.c.bf16 %v2593, %v2591
      %v2602 = vpack.c.bf16 %v2594, %v2592
      %v2603 = vpack.c.bf16 %v2597, %v2595
      %v2604 = vpack.c.bf16 %v2598, %v2596
      %v2605 = vpack.c.bf16 %v2599, %v2599
      %v2606 = vpack.c.bf16 %v2600, %v2600
      %s2607 = scalar_lea.vmem %s6, 40
      %v2608 = vld [vmem:[%s2607] sm:$0xf]
      %2610 = vset.pattern.permute.xlu0 0
      %2611 = vperm.xlu0 %2610, %v2608
      %v2612 = vpop.permute.xlu0 %2611
      %v2615 = vsel %vm539, %v2590, 0
      %v2618 = vsel %vm543, %v2605, 0
      %v2621 = vsel %vm543, %v2606, 0
      %2623 = vmatpush.bf16.msra.mxu0 0
      %2624 = vmatpush.bf16.msra.mxu0 0
      %2625 = vmatpush.bf16.msra.mxu0 0
      %2626 = vmatpush.bf16.msra.mxu0 0
      %2627 = vmatpush.bf16.msra.mxu0 0
      %2628 = vmatpush.bf16.msra.mxu0 %v2618
      %2629 = vmatpush.bf16.msra.mxu0 %v2603
      %2630 = vmatpush.bf16.msra.mxu0 %v2601
      %2631 = vmatmul.bf16.gmra.mxu0 %v2615
      %v2632 = vpop.f32.mrf.mxu0
      %v2633 = vadd.f32 %v2612, %v2632
      %v2634 = vpop.f32.mrf.mxu0
      %2635 = vdwg.mxu0
      %2636 = vmatpush.bf16.msra.mxu0 0
      %2637 = vmatpush.bf16.msra.mxu0 0
      %2638 = vmatpush.bf16.msra.mxu0 0
      %2639 = vmatpush.bf16.msra.mxu0 0
      %2640 = vmatpush.bf16.msra.mxu0 0
      %2641 = vmatpush.bf16.msra.mxu0 %v2621
      %2642 = vmatpush.bf16.msra.mxu0 %v2604
      %2643 = vmatpush.bf16.msra.mxu0 %v2602
      %2644 = vmatmul.bf16.gmra.mxu0 %v2615
      %v2645 = vpop.f32.mrf.mxu0
      %v2646 = vadd.f32 %v2612, %v2645
      %v2647 = vpop.f32.mrf.mxu0
      %2648 = vdwg.mxu0
      %vm2649 = vcmp.ge.f32.partialorder %v2633, 0.0
      %vm2650 = vcmp.ge.f32.partialorder %v2646, 0.0
      %v2651 = vmul.f32 %v2633, 0.01
      %v2652 = vmul.f32 %v2646, 0.01
      %v2653 = vsel %vm2649, %v2633, %v2651
      %v2654 = vsel %vm2650, %v2646, %v2652
      %2657 = vrot.lane.b32.xlu0 %v2653, 17
      %v2658 = vpop.permute.xlu0 %2657
      %2659 = vrot.lane.b32.xlu0 %v2654, 17
      %v2660 = vpop.permute.xlu0 %2659
      %v2661 = vsel %vm374, %v2658, %v2660
      %v2664 = vsel %vm364, %v2658, 0.0
      %v2665 = vsel %vm365, %v2661, 0.0
      %2666 = vst.msk [vmem:[#allocation2 + $0x50] sm:$0xf] %vm380, %v2664
      %2667 = vst [vmem:[#allocation2 + $0x58] sm:$0xf] %v2665
      %v2668 = vrot.slane %v2653, 4
      %v2669 = vrot.slane %v2654, 4
      %2670 = vrot.lane.b32.xlu0 %v2668, 16
      %v2671 = vpop.permute.xlu0 %2670
      %2672 = vrot.lane.b32.xlu0 %v2669, 16
      %v2673 = vpop.permute.xlu0 %2672
      %v2674 = vsel %vm391, %v2671, %v2673
      %2677 = vst.msk [vmem:[#allocation2 + $0x50] sm:$0xf0] %vm395, %v2671
      %2678 = vst [vmem:[#allocation2 + $0x58] sm:$0xf0] %v2674
      %2679 = vrot.lane.b32.xlu0 %v2653, 15
      %v2680 = vpop.permute.xlu0 %2679
      %2681 = vrot.lane.b32.xlu0 %v2654, 15
      %v2682 = vpop.permute.xlu0 %2681
      %v2683 = vsel %vm409, %v2680, %v2682
      %v2686 = vsel %vm400, %v2680, 0.0
      %v2687 = vsel %vm401, %v2683, 0.0
      %2688 = vst.msk [vmem:[#allocation2 + $0x60] sm:$0xf] %vm415, %v2686
      %2689 = vst [vmem:[#allocation2 + $0x68] sm:$0xf] %v2687
      %2690 = vrot.lane.b32.xlu0 %v2653, 1
      %v2691 = vpop.permute.xlu0 %2690
      %2692 = vrot.lane.b32.xlu0 %v2654, 1
      %v2693 = vpop.permute.xlu0 %2692
      %v2694 = vsel %vm425, %v2691, %v2693
      %v2697 = vsel %vm364, %v2691, 0.0
      %v2698 = vsel %vm365, %v2694, 0.0
      %v2701 = vrot.slane %v2697, 4
      %v2702 = vrot.slane %v2698, 4
      %2705 = vst.msk [vmem:[#allocation2 + $0x60] sm:$0xf0] %vm437, %v2701
      %2706 = vst [vmem:[#allocation2 + $0x68] sm:$0xf0] %v2702
      %2707 = vst [vmem:[#allocation2 + $0x70] sm:$0xf] %v2653
      %2708 = vst [vmem:[#allocation2 + $0x78] sm:$0xf] %v2654
      %2709 = vrot.lane.b32.xlu0 %v2653, 127
      %v2710 = vpop.permute.xlu0 %2709
      %2711 = vrot.lane.b32.xlu0 %v2654, 127
      %v2712 = vpop.permute.xlu0 %2711
      %v2713 = vsel %vm454, %v2710, %v2712
      %v2716 = vsel %vm400, %v2713, 0.0
      %v2717 = vsel %vm401, %v2712, 0.0
      %v2720 = vrot.slane %v2716, 4
      %v2721 = vrot.slane %v2717, 4
      %2724 = vst [vmem:[#allocation2 + $0x70] sm:$0xf0] %v2720
      %2725 = vst.msk [vmem:[#allocation2 + $0x78] sm:$0xf0] %vm467, %v2721
      %2726 = vrot.lane.b32.xlu0 %v2653, 113
      %v2727 = vpop.permute.xlu0 %2726
      %2728 = vrot.lane.b32.xlu0 %v2654, 113
      %v2729 = vpop.permute.xlu0 %2728
      %v2730 = vsel %vm476, %v2727, %v2729
      %v2733 = vsel %vm364, %v2730, 0.0
      %v2734 = vsel %vm365, %v2729, 0.0
      %2735 = vst [vmem:[#allocation2 + $0x80] sm:$0xf] %v2733
      %2736 = vst.msk [vmem:[#allocation2 + $0x88] sm:$0xf] %vm483, %v2734
      %2737 = vrot.lane.b32.xlu0 %v2668, 112
      %v2738 = vpop.permute.xlu0 %2737
      %2739 = vrot.lane.b32.xlu0 %v2669, 112
      %v2740 = vpop.permute.xlu0 %2739
      %v2741 = vsel %vm493, %v2738, %v2740
      %2744 = vst [vmem:[#allocation2 + $0x80] sm:$0xf0] %v2741
      %2745 = vst.msk [vmem:[#allocation2 + $0x88] sm:$0xf0] %vm498, %v2740
      %2746 = vrot.lane.b32.xlu0 %v2653, 111
      %v2747 = vpop.permute.xlu0 %2746
      %2748 = vrot.lane.b32.xlu0 %v2654, 111
      %v2749 = vpop.permute.xlu0 %2748
      %v2750 = vsel %vm507, %v2747, %v2749
      %v2753 = vsel %vm400, %v2750, 0.0
      %v2754 = vsel %vm401, %v2749, 0.0
      %2755 = vst [vmem:[#allocation2 + $0x90] sm:$0xf] %v2753
      %2756 = vst.msk [vmem:[#allocation2 + $0x98] sm:$0xf] %vm514, %v2754
      %s2757 = scalar_lea.vmem %s2, 4
      %v2758 = vld [vmem:[%s2757] sm:$0x3]
      %v2759 = vld [vmem:[#allocation2] sm:$0xff]
      %v2760 = vld [vmem:[#allocation2 + $0x8] sm:$0xff]
      %v2761 = vld [vmem:[#allocation2 + $0x10] sm:$0xff]
      %v2762 = vld [vmem:[#allocation2 + $0x18] sm:$0xff]
      %v2763 = vld [vmem:[#allocation2 + $0x20] sm:$0xff]
      %v2764 = vld [vmem:[#allocation2 + $0x28] sm:$0xff]
      %v2765 = vld [vmem:[#allocation2 + $0x30] sm:$0xff]
      %v2766 = vld [vmem:[#allocation2 + $0x38] sm:$0xff]
      %v2767 = vld [vmem:[#allocation2 + $0x40] sm:$0xff]
      %v2768 = vld [vmem:[#allocation2 + $0x48] sm:$0xff]
      %v2769 = vld [vmem:[#allocation2 + $0x50] sm:$0xff]
      %v2770 = vld [vmem:[#allocation2 + $0x58] sm:$0xff]
      %v2771 = vld [vmem:[#allocation2 + $0x60] sm:$0xff]
      %v2772 = vld [vmem:[#allocation2 + $0x68] sm:$0xff]
      %v2773 = vld [vmem:[#allocation2 + $0x70] sm:$0xff]
      %v2774 = vld [vmem:[#allocation2 + $0x78] sm:$0xff]
      %v2775 = vld [vmem:[#allocation2 + $0x80] sm:$0xff]
      %v2776 = vld [vmem:[#allocation2 + $0x88] sm:$0xff]
      %v2777 = vld [vmem:[#allocation2 + $0x90] sm:$0xff]
      %v2778 = vld [vmem:[#allocation2 + $0x98] sm:$0xff]
      %v2779 = vpack.c.bf16 %v2761, %v2759
      %v2780 = vpack.c.bf16 %v2762, %v2760
      %v2781 = vpack.c.bf16 %v2765, %v2763
      %v2782 = vpack.c.bf16 %v2766, %v2764
      %v2783 = vpack.c.bf16 %v2769, %v2767
      %v2784 = vpack.c.bf16 %v2770, %v2768
      %v2785 = vpack.c.bf16 %v2773, %v2771
      %v2786 = vpack.c.bf16 %v2774, %v2772
      %v2787 = vpack.c.bf16 %v2777, %v2775
      %v2788 = vpack.c.bf16 %v2778, %v2776
      %s2789 = scalar_lea.vmem %s6, 44
      %v2790 = vld [vmem:[%s2789] sm:$0xf]
      %2792 = vset.pattern.permute.xlu0 0
      %2793 = vperm.xlu0 %2792, %v2790
      %v2794 = vpop.permute.xlu0 %2793
      %v2797 = vsel %vm722, %v2758, 0
      %2799 = vmatpush.bf16.msra.mxu0 0
      %2800 = vmatpush.bf16.msra.mxu0 0
      %2801 = vmatpush.bf16.msra.mxu0 0
      %2802 = vmatpush.bf16.msra.mxu0 %v2787
      %2803 = vmatpush.bf16.msra.mxu0 %v2785
      %2804 = vmatpush.bf16.msra.mxu0 %v2783
      %2805 = vmatpush.bf16.msra.mxu0 %v2781
      %2806 = vmatpush.bf16.msra.mxu0 %v2779
      %2807 = vmatmul.bf16.gmra.mxu0 %v2797
      %v2808 = vpop.f32.mrf.mxu0
      %v2809 = vadd.f32 %v2794, %v2808
      %v2810 = vpop.f32.mrf.mxu0
      %2811 = vdwg.mxu0
      %2812 = vmatpush.bf16.msra.mxu0 0
      %2813 = vmatpush.bf16.msra.mxu0 0
      %2814 = vmatpush.bf16.msra.mxu0 0
      %2815 = vmatpush.bf16.msra.mxu0 %v2788
      %2816 = vmatpush.bf16.msra.mxu0 %v2786
      %2817 = vmatpush.bf16.msra.mxu0 %v2784
      %2818 = vmatpush.bf16.msra.mxu0 %v2782
      %2819 = vmatpush.bf16.msra.mxu0 %v2780
      %2820 = vmatmul.bf16.gmra.mxu0 %v2797
      %v2821 = vpop.f32.mrf.mxu0
      %v2822 = vadd.f32 %v2794, %v2821
      %v2823 = vpop.f32.mrf.mxu0
      %2824 = vdwg.mxu0
      %vm2825 = vcmp.ge.f32.partialorder %v2809, 0.0
      %vm2826 = vcmp.ge.f32.partialorder %v2822, 0.0
      %v2827 = vmul.f32 %v2809, 0.01
      %v2828 = vmul.f32 %v2822, 0.01
      %v2829 = vsel %vm2825, %v2809, %v2827
      %v2830 = vsel %vm2826, %v2822, %v2828
      %2833 = vrot.lane.b32.xlu0 %v2829, 17
      %v2834 = vpop.permute.xlu0 %2833
      %2835 = vrot.lane.b32.xlu0 %v2830, 17
      %v2836 = vpop.permute.xlu0 %2835
      %v2837 = vsel %vm374, %v2834, %v2836
      %v2840 = vsel %vm364, %v2834, 0.0
      %v2841 = vsel %vm365, %v2837, 0.0
      %2842 = vst.msk [vmem:[#allocation2 + $0xa0] sm:$0xf] %vm380, %v2840
      %2843 = vst [vmem:[#allocation2 + $0xa8] sm:$0xf] %v2841
      %v2844 = vrot.slane %v2829, 4
      %v2845 = vrot.slane %v2830, 4
      %2846 = vrot.lane.b32.xlu0 %v2844, 16
      %v2847 = vpop.permute.xlu0 %2846
      %2848 = vrot.lane.b32.xlu0 %v2845, 16
      %v2849 = vpop.permute.xlu0 %2848
      %v2850 = vsel %vm391, %v2847, %v2849
      %2853 = vst.msk [vmem:[#allocation2 + $0xa0] sm:$0xf0] %vm395, %v2847
      %2854 = vst [vmem:[#allocation2 + $0xa8] sm:$0xf0] %v2850
      %2855 = vrot.lane.b32.xlu0 %v2829, 15
      %v2856 = vpop.permute.xlu0 %2855
      %2857 = vrot.lane.b32.xlu0 %v2830, 15
      %v2858 = vpop.permute.xlu0 %2857
      %v2859 = vsel %vm409, %v2856, %v2858
      %v2862 = vsel %vm400, %v2856, 0.0
      %v2863 = vsel %vm401, %v2859, 0.0
      %2864 = vst.msk [vmem:[#allocation2 + $0xb0] sm:$0xf] %vm415, %v2862
      %2865 = vst [vmem:[#allocation2 + $0xb8] sm:$0xf] %v2863
      %2866 = vrot.lane.b32.xlu0 %v2829, 1
      %v2867 = vpop.permute.xlu0 %2866
      %2868 = vrot.lane.b32.xlu0 %v2830, 1
      %v2869 = vpop.permute.xlu0 %2868
      %v2870 = vsel %vm425, %v2867, %v2869
      %v2873 = vsel %vm364, %v2867, 0.0
      %v2874 = vsel %vm365, %v2870, 0.0
      %v2877 = vrot.slane %v2873, 4
      %v2878 = vrot.slane %v2874, 4
      %2881 = vst.msk [vmem:[#allocation2 + $0xb0] sm:$0xf0] %vm437, %v2877
      %2882 = vst [vmem:[#allocation2 + $0xb8] sm:$0xf0] %v2878
      %2883 = vst [vmem:[#allocation2 + $0xc0] sm:$0xf] %v2829
      %2884 = vst [vmem:[#allocation2 + $0xc8] sm:$0xf] %v2830
      %2885 = vrot.lane.b32.xlu0 %v2829, 127
      %v2886 = vpop.permute.xlu0 %2885
      %2887 = vrot.lane.b32.xlu0 %v2830, 127
      %v2888 = vpop.permute.xlu0 %2887
      %v2889 = vsel %vm454, %v2886, %v2888
      %v2892 = vsel %vm400, %v2889, 0.0
      %v2893 = vsel %vm401, %v2888, 0.0
      %v2896 = vrot.slane %v2892, 4
      %v2897 = vrot.slane %v2893, 4
      %2900 = vst [vmem:[#allocation2 + $0xc0] sm:$0xf0] %v2896
      %2901 = vst.msk [vmem:[#allocation2 + $0xc8] sm:$0xf0] %vm467, %v2897
      %2902 = vrot.lane.b32.xlu0 %v2829, 113
      %v2903 = vpop.permute.xlu0 %2902
      %2904 = vrot.lane.b32.xlu0 %v2830, 113
      %v2905 = vpop.permute.xlu0 %2904
      %v2906 = vsel %vm476, %v2903, %v2905
      %v2909 = vsel %vm364, %v2906, 0.0
      %v2910 = vsel %vm365, %v2905, 0.0
      %2911 = vst [vmem:[#allocation2 + $0xd0] sm:$0xf] %v2909
      %2912 = vst.msk [vmem:[#allocation2 + $0xd8] sm:$0xf] %vm483, %v2910
      %2913 = vrot.lane.b32.xlu0 %v2844, 112
      %v2914 = vpop.permute.xlu0 %2913
      %2915 = vrot.lane.b32.xlu0 %v2845, 112
      %v2916 = vpop.permute.xlu0 %2915
      %v2917 = vsel %vm493, %v2914, %v2916
      %2920 = vst [vmem:[#allocation2 + $0xd0] sm:$0xf0] %v2917
      %2921 = vst.msk [vmem:[#allocation2 + $0xd8] sm:$0xf0] %vm498, %v2916
      %2922 = vrot.lane.b32.xlu0 %v2829, 111
      %v2923 = vpop.permute.xlu0 %2922
      %2924 = vrot.lane.b32.xlu0 %v2830, 111
      %v2925 = vpop.permute.xlu0 %2924
      %v2926 = vsel %vm507, %v2923, %v2925
      %v2929 = vsel %vm400, %v2926, 0.0
      %v2930 = vsel %vm401, %v2925, 0.0
      %2931 = vst [vmem:[#allocation2 + $0xe0] sm:$0xf] %v2929
      %2932 = vst.msk [vmem:[#allocation2 + $0xe8] sm:$0xf] %vm514, %v2930
      %s2933 = scalar_lea.vmem %s3, 4
      %v2934 = vld [vmem:[%s2933] sm:$0x3]
      %v2935 = vld [vmem:[#allocation2] sm:$0xff]
      %v2936 = vld [vmem:[#allocation2 + $0x8] sm:$0xff]
      %v2937 = vld [vmem:[#allocation2 + $0x10] sm:$0xff]
      %v2938 = vld [vmem:[#allocation2 + $0x18] sm:$0xff]
      %v2939 = vld [vmem:[#allocation2 + $0x20] sm:$0xff]
      %v2940 = vld [vmem:[#allocation2 + $0x28] sm:$0xff]
      %v2941 = vld [vmem:[#allocation2 + $0x30] sm:$0xff]
      %v2942 = vld [vmem:[#allocation2 + $0x38] sm:$0xff]
      %v2943 = vld [vmem:[#allocation2 + $0x40] sm:$0xff]
      %v2944 = vld [vmem:[#allocation2 + $0x48] sm:$0xff]
      %v2945 = vld [vmem:[#allocation2 + $0x50] sm:$0xff]
      %v2946 = vld [vmem:[#allocation2 + $0x58] sm:$0xff]
      %v2947 = vld [vmem:[#allocation2 + $0x60] sm:$0xff]
      %v2948 = vld [vmem:[#allocation2 + $0x68] sm:$0xff]
      %v2949 = vld [vmem:[#allocation2 + $0x70] sm:$0xff]
      %v2950 = vld [vmem:[#allocation2 + $0x78] sm:$0xff]
      %v2951 = vld [vmem:[#allocation2 + $0x80] sm:$0xff]
      %v2952 = vld [vmem:[#allocation2 + $0x88] sm:$0xff]
      %v2953 = vld [vmem:[#allocation2 + $0x90] sm:$0xff]
      %v2954 = vld [vmem:[#allocation2 + $0x98] sm:$0xff]
      %v2955 = vld [vmem:[#allocation2 + $0xa0] sm:$0xff]
      %v2956 = vld [vmem:[#allocation2 + $0xa8] sm:$0xff]
      %v2957 = vld [vmem:[#allocation2 + $0xb0] sm:$0xff]
      %v2958 = vld [vmem:[#allocation2 + $0xb8] sm:$0xff]
      %v2959 = vld [vmem:[#allocation2 + $0xc0] sm:$0xff]
      %v2960 = vld [vmem:[#allocation2 + $0xc8] sm:$0xff]
      %v2961 = vld [vmem:[#allocation2 + $0xd0] sm:$0xff]
      %v2962 = vld [vmem:[#allocation2 + $0xd8] sm:$0xff]
      %v2963 = vld [vmem:[#allocation2 + $0xe0] sm:$0xff]
      %v2964 = vld [vmem:[#allocation2 + $0xe8] sm:$0xff]
      %v2965 = vpack.c.bf16 %v2937, %v2935
      %v2966 = vpack.c.bf16 %v2938, %v2936
      %v2967 = vpack.c.bf16 %v2941, %v2939
      %v2968 = vpack.c.bf16 %v2942, %v2940
      %v2969 = vpack.c.bf16 %v2945, %v2943
      %v2970 = vpack.c.bf16 %v2946, %v2944
      %v2971 = vpack.c.bf16 %v2949, %v2947
      %v2972 = vpack.c.bf16 %v2950, %v2948
      %v2973 = vpack.c.bf16 %v2953, %v2951
      %v2974 = vpack.c.bf16 %v2954, %v2952
      %v2975 = vpack.c.bf16 %v2957, %v2955
      %v2976 = vpack.c.bf16 %v2958, %v2956
      %v2977 = vpack.c.bf16 %v2961, %v2959
      %v2978 = vpack.c.bf16 %v2962, %v2960
      %v2979 = vpack.c.bf16 %v2963, %v2963
      %v2980 = vpack.c.bf16 %v2964, %v2964
      %s2981 = scalar_lea.vmem %s6, 48
      %v2982 = vld [vmem:[%s2981] sm:$0xf]
      %2984 = vset.pattern.permute.xlu0 0
      %2985 = vperm.xlu0 %2984, %v2982
      %v2986 = vpop.permute.xlu0 %2985
      %v2989 = vsel %vm914, %v2934, 0
      %v2992 = vsel %vm543, %v2979, 0
      %v2995 = vsel %vm543, %v2980, 0
      %2997 = vmatpush.bf16.msra.mxu0 %v2992
      %2998 = vmatpush.bf16.msra.mxu0 %v2977
      %2999 = vmatpush.bf16.msra.mxu0 %v2975
      %3000 = vmatpush.bf16.msra.mxu0 %v2973
      %3001 = vmatpush.bf16.msra.mxu0 %v2971
      %3002 = vmatpush.bf16.msra.mxu0 %v2969
      %3003 = vmatpush.bf16.msra.mxu0 %v2967
      %3004 = vmatpush.bf16.msra.mxu0 %v2965
      %3005 = vmatmul.bf16.gmra.mxu0 %v2989
      %v3006 = vpop.f32.mrf.mxu0
      %v3007 = vadd.f32 %v2986, %v3006
      %v3008 = vpop.f32.mrf.mxu0
      %3009 = vdwg.mxu0
      %3010 = vmatpush.bf16.msra.mxu0 %v2995
      %3011 = vmatpush.bf16.msra.mxu0 %v2978
      %3012 = vmatpush.bf16.msra.mxu0 %v2976
      %3013 = vmatpush.bf16.msra.mxu0 %v2974
      %3014 = vmatpush.bf16.msra.mxu0 %v2972
      %3015 = vmatpush.bf16.msra.mxu0 %v2970
      %3016 = vmatpush.bf16.msra.mxu0 %v2968
      %3017 = vmatpush.bf16.msra.mxu0 %v2966
      %3018 = vmatmul.bf16.gmra.mxu0 %v2989
      %v3019 = vpop.f32.mrf.mxu0
      %v3020 = vadd.f32 %v2986, %v3019
      %v3021 = vpop.f32.mrf.mxu0
      %3022 = vdwg.mxu0
      %vm3023 = vcmp.ge.f32.partialorder %v3007, 0.0
      %vm3024 = vcmp.ge.f32.partialorder %v3020, 0.0
      %v3025 = vmul.f32 %v3007, 0.01
      %v3026 = vmul.f32 %v3020, 0.01
      %v3027 = vsel %vm3023, %v3007, %v3025
      %v3028 = vsel %vm3024, %v3020, %v3026
      %3031 = vrot.lane.b32.xlu0 %v3027, 17
      %v3032 = vpop.permute.xlu0 %3031
      %3033 = vrot.lane.b32.xlu0 %v3028, 17
      %v3034 = vpop.permute.xlu0 %3033
      %v3035 = vsel %vm374, %v3032, %v3034
      %v3038 = vsel %vm364, %v3032, 0.0
      %v3039 = vsel %vm365, %v3035, 0.0
      %3040 = vst.msk [vmem:[#allocation2 + $0xf0] sm:$0xf] %vm380, %v3038
      %3041 = vst [vmem:[#allocation2 + $0xf8] sm:$0xf] %v3039
      %v3042 = vrot.slane %v3027, 4
      %v3043 = vrot.slane %v3028, 4
      %3044 = vrot.lane.b32.xlu0 %v3042, 16
      %v3045 = vpop.permute.xlu0 %3044
      %3046 = vrot.lane.b32.xlu0 %v3043, 16
      %v3047 = vpop.permute.xlu0 %3046
      %v3048 = vsel %vm391, %v3045, %v3047
      %3051 = vst.msk [vmem:[#allocation2 + $0xf0] sm:$0xf0] %vm395, %v3045
      %3052 = vst [vmem:[#allocation2 + $0xf8] sm:$0xf0] %v3048
      %3053 = vrot.lane.b32.xlu0 %v3027, 15
      %v3054 = vpop.permute.xlu0 %3053
      %3055 = vrot.lane.b32.xlu0 %v3028, 15
      %v3056 = vpop.permute.xlu0 %3055
      %v3057 = vsel %vm409, %v3054, %v3056
      %v3060 = vsel %vm400, %v3054, 0.0
      %v3061 = vsel %vm401, %v3057, 0.0
      %3062 = vst.msk [vmem:[#allocation2 + $0x100] sm:$0xf] %vm415, %v3060
      %3063 = vst [vmem:[#allocation2 + $0x108] sm:$0xf] %v3061
      %3064 = vrot.lane.b32.xlu0 %v3027, 1
      %v3065 = vpop.permute.xlu0 %3064
      %3066 = vrot.lane.b32.xlu0 %v3028, 1
      %v3067 = vpop.permute.xlu0 %3066
      %v3068 = vsel %vm425, %v3065, %v3067
      %v3071 = vsel %vm364, %v3065, 0.0
      %v3072 = vsel %vm365, %v3068, 0.0
      %v3075 = vrot.slane %v3071, 4
      %v3076 = vrot.slane %v3072, 4
      %3079 = vst.msk [vmem:[#allocation2 + $0x100] sm:$0xf0] %vm437, %v3075
      %3080 = vst [vmem:[#allocation2 + $0x108] sm:$0xf0] %v3076
      %3081 = vst [vmem:[#allocation2 + $0x110] sm:$0xf] %v3027
      %3082 = vst [vmem:[#allocation2 + $0x118] sm:$0xf] %v3028
      %3083 = vrot.lane.b32.xlu0 %v3027, 127
      %v3084 = vpop.permute.xlu0 %3083
      %3085 = vrot.lane.b32.xlu0 %v3028, 127
      %v3086 = vpop.permute.xlu0 %3085
      %v3087 = vsel %vm454, %v3084, %v3086
      %v3090 = vsel %vm400, %v3087, 0.0
      %v3091 = vsel %vm401, %v3086, 0.0
      %v3094 = vrot.slane %v3090, 4
      %v3095 = vrot.slane %v3091, 4
      %3098 = vst [vmem:[#allocation2 + $0x110] sm:$0xf0] %v3094
      %3099 = vst.msk [vmem:[#allocation2 + $0x118] sm:$0xf0] %vm467, %v3095
      %3100 = vrot.lane.b32.xlu0 %v3027, 113
      %v3101 = vpop.permute.xlu0 %3100
      %3102 = vrot.lane.b32.xlu0 %v3028, 113
      %v3103 = vpop.permute.xlu0 %3102
      %v3104 = vsel %vm476, %v3101, %v3103
      %v3107 = vsel %vm364, %v3104, 0.0
      %v3108 = vsel %vm365, %v3103, 0.0
      %3109 = vst [vmem:[#allocation2 + $0x120] sm:$0xf] %v3107
      %3110 = vst.msk [vmem:[#allocation2 + $0x128] sm:$0xf] %vm483, %v3108
      %3111 = vrot.lane.b32.xlu0 %v3042, 112
      %v3112 = vpop.permute.xlu0 %3111
      %3113 = vrot.lane.b32.xlu0 %v3043, 112
      %v3114 = vpop.permute.xlu0 %3113
      %v3115 = vsel %vm493, %v3112, %v3114
      %3118 = vst [vmem:[#allocation2 + $0x120] sm:$0xf0] %v3115
      %3119 = vst.msk [vmem:[#allocation2 + $0x128] sm:$0xf0] %vm498, %v3114
      %3120 = vrot.lane.b32.xlu0 %v3027, 111
      %v3121 = vpop.permute.xlu0 %3120
      %3122 = vrot.lane.b32.xlu0 %v3028, 111
      %v3123 = vpop.permute.xlu0 %3122
      %v3124 = vsel %vm507, %v3121, %v3123
      %v3127 = vsel %vm400, %v3124, 0.0
      %v3128 = vsel %vm401, %v3123, 0.0
      %3129 = vst [vmem:[#allocation2 + $0x130] sm:$0xf] %v3127
      %3130 = vst.msk [vmem:[#allocation2 + $0x138] sm:$0xf] %vm514, %v3128
      %s3131 = scalar_lea.vmem %s4, 8
      %v3132 = vld [vmem:[%s3131] sm:$0xf]
      %v3133 = vld [vmem:[#allocation2] sm:$0xff]
      %v3134 = vld [vmem:[#allocation2 + $0x8] sm:$0xff]
      %v3135 = vld [vmem:[#allocation2 + $0x10] sm:$0xff]
      %v3136 = vld [vmem:[#allocation2 + $0x18] sm:$0xff]
      %v3137 = vld [vmem:[#allocation2 + $0x20] sm:$0xff]
      %v3138 = vld [vmem:[#allocation2 + $0x28] sm:$0xff]
      %v3139 = vld [vmem:[#allocation2 + $0x30] sm:$0xff]
      %v3140 = vld [vmem:[#allocation2 + $0x38] sm:$0xff]
      %v3141 = vld [vmem:[#allocation2 + $0x40] sm:$0xff]
      %v3142 = vld [vmem:[#allocation2 + $0x48] sm:$0xff]
      %v3143 = vld [vmem:[#allocation2 + $0x50] sm:$0xff]
      %v3144 = vld [vmem:[#allocation2 + $0x58] sm:$0xff]
      %v3145 = vld [vmem:[#allocation2 + $0x60] sm:$0xff]
      %v3146 = vld [vmem:[#allocation2 + $0x68] sm:$0xff]
      %v3147 = vld [vmem:[#allocation2 + $0x70] sm:$0xff]
      %v3148 = vld [vmem:[#allocation2 + $0x78] sm:$0xff]
      %v3149 = vld [vmem:[#allocation2 + $0x80] sm:$0xff]
      %v3150 = vld [vmem:[#allocation2 + $0x88] sm:$0xff]
      %v3151 = vld [vmem:[#allocation2 + $0x90] sm:$0xff]
      %v3152 = vld [vmem:[#allocation2 + $0x98] sm:$0xff]
      %v3153 = vld [vmem:[#allocation2 + $0xa0] sm:$0xff]
      %v3154 = vld [vmem:[#allocation2 + $0xa8] sm:$0xff]
      %v3155 = vld [vmem:[#allocation2 + $0xb0] sm:$0xff]
      %v3156 = vld [vmem:[#allocation2 + $0xb8] sm:$0xff]
      %v3157 = vld [vmem:[#allocation2 + $0xc0] sm:$0xff]
      %v3158 = vld [vmem:[#allocation2 + $0xc8] sm:$0xff]
      %v3159 = vld [vmem:[#allocation2 + $0xd0] sm:$0xff]
      %v3160 = vld [vmem:[#allocation2 + $0xd8] sm:$0xff]
      %v3161 = vld [vmem:[#allocation2 + $0xe0] sm:$0xff]
      %v3162 = vld [vmem:[#allocation2 + $0xe8] sm:$0xff]
      %v3163 = vld [vmem:[#allocation2 + $0xf0] sm:$0xff]
      %v3164 = vld [vmem:[#allocation2 + $0xf8] sm:$0xff]
      %v3165 = vld [vmem:[#allocation2 + $0x100] sm:$0xff]
      %v3166 = vld [vmem:[#allocation2 + $0x108] sm:$0xff]
      %v3167 = vld [vmem:[#allocation2 + $0x110] sm:$0xff]
      %v3168 = vld [vmem:[#allocation2 + $0x118] sm:$0xff]
      %v3169 = vld [vmem:[#allocation2 + $0x120] sm:$0xff]
      %v3170 = vld [vmem:[#allocation2 + $0x128] sm:$0xff]
      %v3171 = vld [vmem:[#allocation2 + $0x130] sm:$0xff]
      %v3172 = vld [vmem:[#allocation2 + $0x138] sm:$0xff]
      %v3173 = vpack.c.bf16 %v3135, %v3133
      %v3174 = vpack.c.bf16 %v3136, %v3134
      %v3175 = vpack.c.bf16 %v3139, %v3137
      %v3176 = vpack.c.bf16 %v3140, %v3138
      %v3177 = vpack.c.bf16 %v3143, %v3141
      %v3178 = vpack.c.bf16 %v3144, %v3142
      %v3179 = vpack.c.bf16 %v3147, %v3145
      %v3180 = vpack.c.bf16 %v3148, %v3146
      %v3181 = vpack.c.bf16 %v3151, %v3149
      %v3182 = vpack.c.bf16 %v3152, %v3150
      %v3183 = vpack.c.bf16 %v3155, %v3153
      %v3184 = vpack.c.bf16 %v3156, %v3154
      %v3185 = vpack.c.bf16 %v3159, %v3157
      %v3186 = vpack.c.bf16 %v3160, %v3158
      %v3187 = vpack.c.bf16 %v3163, %v3161
      %v3188 = vpack.c.bf16 %v3164, %v3162
      %v3189 = vpack.c.bf16 %v3167, %v3165
      %v3190 = vpack.c.bf16 %v3168, %v3166
      %v3191 = vpack.c.bf16 %v3171, %v3169
      %v3192 = vpack.c.bf16 %v3172, %v3170
      %s3193 = scalar_lea.vmem %s6, 52
      %v3194 = vld [vmem:[%s3193] sm:$0xf]
      %3196 = vset.pattern.permute.xlu0 0
      %3197 = vperm.xlu0 %3196, %v3194
      %v3198 = vpop.permute.xlu0 %3197
      %3201 = vst [vmem:[#allocation1] ss:$4 sm:$0xff] %v3132
      %v3202 = vld.sshfl [vmem:[#allocation1] sm:$0xff pattern:$0x73625140]
      %v3203 = vld.sshfl [vmem:[#allocation1 + $0x8] sm:$0xff pattern:$0x73625140]
      %v3205 = vsel %vm1131, %v3203, 0
      %3207 = vmatpush.bf16.msra.mxu0 %v3187
      %3208 = vmatpush.bf16.msra.mxu0 %v3185
      %3209 = vmatpush.bf16.msra.mxu0 %v3183
      %3210 = vmatpush.bf16.msra.mxu0 %v3181
      %3211 = vmatpush.bf16.msra.mxu0 %v3179
      %3212 = vmatpush.bf16.msra.mxu0 %v3177
      %3213 = vmatpush.bf16.msra.mxu0 %v3175
      %3214 = vmatpush.bf16.msra.mxu0 %v3173
      %3215 = vmatmul.bf16.gmra.mxu0 %v3202
      %v3216 = vpop.f32.mrf.mxu0
      %v3217 = vadd.f32 %v3198, %v3216
      %v3218 = vpop.f32.mrf.mxu0
      %3219 = vdwg.mxu0
      %3220 = vmatpush.bf16.msra.mxu0 0
      %3221 = vmatpush.bf16.msra.mxu0 0
      %3222 = vmatpush.bf16.msra.mxu0 0
      %3223 = vmatpush.bf16.msra.mxu0 0
      %3224 = vmatpush.bf16.msra.mxu0 0
      %3225 = vmatpush.bf16.msra.mxu0 0
      %3226 = vmatpush.bf16.msra.mxu0 %v3191
      %3227 = vmatpush.bf16.msra.mxu0 %v3189
      %3228 = vmatmul.bf16.gmra.mxu0 %v3205
      %v3229 = vpop.f32.mrf.mxu0
      %v3230 = vadd.f32 %v3217, %v3229
      %v3231 = vpop.f32.mrf.mxu0
      %3232 = vdwg.mxu0
      %3233 = vmatpush.bf16.msra.mxu0 %v3188
      %3234 = vmatpush.bf16.msra.mxu0 %v3186
      %3235 = vmatpush.bf16.msra.mxu0 %v3184
      %3236 = vmatpush.bf16.msra.mxu0 %v3182
      %3237 = vmatpush.bf16.msra.mxu0 %v3180
      %3238 = vmatpush.bf16.msra.mxu0 %v3178
      %3239 = vmatpush.bf16.msra.mxu0 %v3176
      %3240 = vmatpush.bf16.msra.mxu0 %v3174
      %3241 = vmatmul.bf16.gmra.mxu0 %v3202
      %v3242 = vpop.f32.mrf.mxu0
      %v3243 = vadd.f32 %v3198, %v3242
      %v3244 = vpop.f32.mrf.mxu0
      %3245 = vdwg.mxu0
      %3246 = vmatpush.bf16.msra.mxu0 0
      %3247 = vmatpush.bf16.msra.mxu0 0
      %3248 = vmatpush.bf16.msra.mxu0 0
      %3249 = vmatpush.bf16.msra.mxu0 0
      %3250 = vmatpush.bf16.msra.mxu0 0
      %3251 = vmatpush.bf16.msra.mxu0 0
      %3252 = vmatpush.bf16.msra.mxu0 %v3192
      %3253 = vmatpush.bf16.msra.mxu0 %v3190
      %3254 = vmatmul.bf16.gmra.mxu0 %v3205
      %v3255 = vpop.f32.mrf.mxu0
      %v3256 = vadd.f32 %v3243, %v3255
      %v3257 = vpop.f32.mrf.mxu0
      %3258 = vdwg.mxu0
      %vm3259 = vcmp.ge.f32.partialorder %v3230, 0.0
      %vm3260 = vcmp.ge.f32.partialorder %v3256, 0.0
      %v3261 = vmul.f32 %v3230, 0.01
      %v3262 = vmul.f32 %v3256, 0.01
      %v3263 = vsel %vm3259, %v3230, %v3261
      %v3264 = vsel %vm3260, %v3256, %v3262
      %3267 = vrot.lane.b32.xlu0 %v3263, 17
      %v3268 = vpop.permute.xlu0 %3267
      %3269 = vrot.lane.b32.xlu0 %v3264, 17
      %v3270 = vpop.permute.xlu0 %3269
      %v3271 = vsel %vm374, %v3268, %v3270
      %v3274 = vsel %vm364, %v3268, 0.0
      %v3275 = vsel %vm365, %v3271, 0.0
      %3276 = vst.msk [vmem:[#allocation2 + $0x140] sm:$0xf] %vm380, %v3274
      %3277 = vst [vmem:[#allocation2 + $0x148] sm:$0xf] %v3275
      %v3278 = vrot.slane %v3263, 4
      %v3279 = vrot.slane %v3264, 4
      %3280 = vrot.lane.b32.xlu0 %v3278, 16
      %v3281 = vpop.permute.xlu0 %3280
      %3282 = vrot.lane.b32.xlu0 %v3279, 16
      %v3283 = vpop.permute.xlu0 %3282
      %v3284 = vsel %vm391, %v3281, %v3283
      %3287 = vst.msk [vmem:[#allocation2 + $0x140] sm:$0xf0] %vm395, %v3281
      %3288 = vst [vmem:[#allocation2 + $0x148] sm:$0xf0] %v3284
      %3289 = vrot.lane.b32.xlu0 %v3263, 15
      %v3290 = vpop.permute.xlu0 %3289
      %3291 = vrot.lane.b32.xlu0 %v3264, 15
      %v3292 = vpop.permute.xlu0 %3291
      %v3293 = vsel %vm409, %v3290, %v3292
      %v3296 = vsel %vm400, %v3290, 0.0
      %v3297 = vsel %vm401, %v3293, 0.0
      %3298 = vst.msk [vmem:[#allocation2 + $0x150] sm:$0xf] %vm415, %v3296
      %3299 = vst [vmem:[#allocation2 + $0x158] sm:$0xf] %v3297
      %3300 = vrot.lane.b32.xlu0 %v3263, 1
      %v3301 = vpop.permute.xlu0 %3300
      %3302 = vrot.lane.b32.xlu0 %v3264, 1
      %v3303 = vpop.permute.xlu0 %3302
      %v3304 = vsel %vm425, %v3301, %v3303
      %v3307 = vsel %vm364, %v3301, 0.0
      %v3308 = vsel %vm365, %v3304, 0.0
      %v3311 = vrot.slane %v3307, 4
      %v3312 = vrot.slane %v3308, 4
      %3315 = vst.msk [vmem:[#allocation2 + $0x150] sm:$0xf0] %vm437, %v3311
      %3316 = vst [vmem:[#allocation2 + $0x158] sm:$0xf0] %v3312
      %3317 = vst [vmem:[#allocation2 + $0x160] sm:$0xf] %v3263
      %3318 = vst [vmem:[#allocation2 + $0x168] sm:$0xf] %v3264
      %3319 = vrot.lane.b32.xlu0 %v3263, 127
      %v3320 = vpop.permute.xlu0 %3319
      %3321 = vrot.lane.b32.xlu0 %v3264, 127
      %v3322 = vpop.permute.xlu0 %3321
      %v3323 = vsel %vm454, %v3320, %v3322
      %v3326 = vsel %vm400, %v3323, 0.0
      %v3327 = vsel %vm401, %v3322, 0.0
      %v3330 = vrot.slane %v3326, 4
      %v3331 = vrot.slane %v3327, 4
      %3334 = vst [vmem:[#allocation2 + $0x160] sm:$0xf0] %v3330
      %3335 = vst.msk [vmem:[#allocation2 + $0x168] sm:$0xf0] %vm467, %v3331
      %3336 = vrot.lane.b32.xlu0 %v3263, 113
      %v3337 = vpop.permute.xlu0 %3336
      %3338 = vrot.lane.b32.xlu0 %v3264, 113
      %v3339 = vpop.permute.xlu0 %3338
      %v3340 = vsel %vm476, %v3337, %v3339
      %v3343 = vsel %vm364, %v3340, 0.0
      %v3344 = vsel %vm365, %v3339, 0.0
      %3345 = vst [vmem:[#allocation2 + $0x170] sm:$0xf] %v3343
      %3346 = vst.msk [vmem:[#allocation2 + $0x178] sm:$0xf] %vm483, %v3344
      %3347 = vrot.lane.b32.xlu0 %v3278, 112
      %v3348 = vpop.permute.xlu0 %3347
      %3349 = vrot.lane.b32.xlu0 %v3279, 112
      %v3350 = vpop.permute.xlu0 %3349
      %v3351 = vsel %vm493, %v3348, %v3350
      %3354 = vst [vmem:[#allocation2 + $0x170] sm:$0xf0] %v3351
      %3355 = vst.msk [vmem:[#allocation2 + $0x178] sm:$0xf0] %vm498, %v3350
      %3356 = vrot.lane.b32.xlu0 %v3263, 111
      %v3357 = vpop.permute.xlu0 %3356
      %3358 = vrot.lane.b32.xlu0 %v3264, 111
      %v3359 = vpop.permute.xlu0 %3358
      %v3360 = vsel %vm507, %v3357, %v3359
      %v3363 = vsel %vm400, %v3360, 0.0
      %v3364 = vsel %vm401, %v3359, 0.0
      %3365 = vst [vmem:[#allocation2 + $0x180] sm:$0xf] %v3363
      %3366 = vst.msk [vmem:[#allocation2 + $0x188] sm:$0xf] %vm514, %v3364
      %s3367 = scalar_lea.vmem %s5, 8
      %v3368 = vld [vmem:[%s3367] sm:$0xf]
      %v3369 = vld [vmem:[#allocation2] sm:$0xff]
      %v3370 = vld [vmem:[#allocation2 + $0x8] sm:$0xff]
      %v3371 = vld [vmem:[#allocation2 + $0x10] sm:$0xff]
      %v3372 = vld [vmem:[#allocation2 + $0x18] sm:$0xff]
      %v3373 = vld [vmem:[#allocation2 + $0x20] sm:$0xff]
      %v3374 = vld [vmem:[#allocation2 + $0x28] sm:$0xff]
      %v3375 = vld [vmem:[#allocation2 + $0x30] sm:$0xff]
      %v3376 = vld [vmem:[#allocation2 + $0x38] sm:$0xff]
      %v3377 = vld [vmem:[#allocation2 + $0x40] sm:$0xff]
      %v3378 = vld [vmem:[#allocation2 + $0x48] sm:$0xff]
      %v3379 = vld [vmem:[#allocation2 + $0x50] sm:$0xff]
      %v3380 = vld [vmem:[#allocation2 + $0x58] sm:$0xff]
      %v3381 = vld [vmem:[#allocation2 + $0x60] sm:$0xff]
      %v3382 = vld [vmem:[#allocation2 + $0x68] sm:$0xff]
      %v3383 = vld [vmem:[#allocation2 + $0x70] sm:$0xff]
      %v3384 = vld [vmem:[#allocation2 + $0x78] sm:$0xff]
      %v3385 = vld [vmem:[#allocation2 + $0x80] sm:$0xff]
      %v3386 = vld [vmem:[#allocation2 + $0x88] sm:$0xff]
      %v3387 = vld [vmem:[#allocation2 + $0x90] sm:$0xff]
      %v3388 = vld [vmem:[#allocation2 + $0x98] sm:$0xff]
      %v3389 = vld [vmem:[#allocation2 + $0xa0] sm:$0xff]
      %v3390 = vld [vmem:[#allocation2 + $0xa8] sm:$0xff]
      %v3391 = vld [vmem:[#allocation2 + $0xb0] sm:$0xff]
      %v3392 = vld [vmem:[#allocation2 + $0xb8] sm:$0xff]
      %v3393 = vld [vmem:[#allocation2 + $0xc0] sm:$0xff]
      %v3394 = vld [vmem:[#allocation2 + $0xc8] sm:$0xff]
      %v3395 = vld [vmem:[#allocation2 + $0xd0] sm:$0xff]
      %v3396 = vld [vmem:[#allocation2 + $0xd8] sm:$0xff]
      %v3397 = vld [vmem:[#allocation2 + $0xe0] sm:$0xff]
      %v3398 = vld [vmem:[#allocation2 + $0xe8] sm:$0xff]
      %v3399 = vld [vmem:[#allocation2 + $0xf0] sm:$0xff]
      %v3400 = vld [vmem:[#allocation2 + $0xf8] sm:$0xff]
      %v3401 = vld [vmem:[#allocation2 + $0x100] sm:$0xff]
      %v3402 = vld [vmem:[#allocation2 + $0x108] sm:$0xff]
      %v3403 = vld [vmem:[#allocation2 + $0x110] sm:$0xff]
      %v3404 = vld [vmem:[#allocation2 + $0x118] sm:$0xff]
      %v3405 = vld [vmem:[#allocation2 + $0x120] sm:$0xff]
      %v3406 = vld [vmem:[#allocation2 + $0x128] sm:$0xff]
      %v3407 = vld [vmem:[#allocation2 + $0x130] sm:$0xff]
      %v3408 = vld [vmem:[#allocation2 + $0x138] sm:$0xff]
      %v3409 = vld [vmem:[#allocation2 + $0x140] sm:$0xff]
      %v3410 = vld [vmem:[#allocation2 + $0x148] sm:$0xff]
      %v3411 = vld [vmem:[#allocation2 + $0x150] sm:$0xff]
      %v3412 = vld [vmem:[#allocation2 + $0x158] sm:$0xff]
      %v3413 = vld [vmem:[#allocation2 + $0x160] sm:$0xff]
      %v3414 = vld [vmem:[#allocation2 + $0x168] sm:$0xff]
      %v3415 = vld [vmem:[#allocation2 + $0x170] sm:$0xff]
      %v3416 = vld [vmem:[#allocation2 + $0x178] sm:$0xff]
      %v3417 = vld [vmem:[#allocation2 + $0x180] sm:$0xff]
      %v3418 = vld [vmem:[#allocation2 + $0x188] sm:$0xff]
      %v3419 = vpack.c.bf16 %v3371, %v3369
      %v3420 = vpack.c.bf16 %v3372, %v3370
      %v3421 = vpack.c.bf16 %v3375, %v3373
      %v3422 = vpack.c.bf16 %v3376, %v3374
      %v3423 = vpack.c.bf16 %v3379, %v3377
      %v3424 = vpack.c.bf16 %v3380, %v3378
      %v3425 = vpack.c.bf16 %v3383, %v3381
      %v3426 = vpack.c.bf16 %v3384, %v3382
      %v3427 = vpack.c.bf16 %v3387, %v3385
      %v3428 = vpack.c.bf16 %v3388, %v3386
      %v3429 = vpack.c.bf16 %v3391, %v3389
      %v3430 = vpack.c.bf16 %v3392, %v3390
      %v3431 = vpack.c.bf16 %v3395, %v3393
      %v3432 = vpack.c.bf16 %v3396, %v3394
      %v3433 = vpack.c.bf16 %v3399, %v3397
      %v3434 = vpack.c.bf16 %v3400, %v3398
      %v3435 = vpack.c.bf16 %v3403, %v3401
      %v3436 = vpack.c.bf16 %v3404, %v3402
      %v3437 = vpack.c.bf16 %v3407, %v3405
      %v3438 = vpack.c.bf16 %v3408, %v3406
      %v3439 = vpack.c.bf16 %v3411, %v3409
      %v3440 = vpack.c.bf16 %v3412, %v3410
      %v3441 = vpack.c.bf16 %v3415, %v3413
      %v3442 = vpack.c.bf16 %v3416, %v3414
      %v3443 = vpack.c.bf16 %v3417, %v3417
      %v3444 = vpack.c.bf16 %v3418, %v3418
      %s3445 = scalar_lea.vmem %s6, 56
      %v3446 = vld [vmem:[%s3445] sm:$0xf]
      %3448 = vset.pattern.permute.xlu0 0
      %3449 = vperm.xlu0 %3448, %v3446
      %v3450 = vpop.permute.xlu0 %3449
      %3453 = vst [vmem:[#allocation1] ss:$4 sm:$0xff] %v3368
      %v3454 = vld.sshfl [vmem:[#allocation1] sm:$0xff pattern:$0x73625140]
      %v3455 = vld.sshfl [vmem:[#allocation1 + $0x8] sm:$0xff pattern:$0x73625140]
      %v3457 = vsel %vm1383, %v3455, 0
      %v3460 = vsel %vm543, %v3443, 0
      %v3463 = vsel %vm543, %v3444, 0
      %3465 = vmatpush.bf16.msra.mxu0 %v3433
      %3466 = vmatpush.bf16.msra.mxu0 %v3431
      %3467 = vmatpush.bf16.msra.mxu0 %v3429
      %3468 = vmatpush.bf16.msra.mxu0 %v3427
      %3469 = vmatpush.bf16.msra.mxu0 %v3425
      %3470 = vmatpush.bf16.msra.mxu0 %v3423
      %3471 = vmatpush.bf16.msra.mxu0 %v3421
      %3472 = vmatpush.bf16.msra.mxu0 %v3419
      %3473 = vmatmul.bf16.gmra.mxu0 %v3454
      %v3474 = vpop.f32.mrf.mxu0
      %v3475 = vadd.f32 %v3450, %v3474
      %v3476 = vpop.f32.mrf.mxu0
      %3477 = vdwg.mxu0
      %3478 = vmatpush.bf16.msra.mxu0 0
      %3479 = vmatpush.bf16.msra.mxu0 0
      %3480 = vmatpush.bf16.msra.mxu0 0
      %3481 = vmatpush.bf16.msra.mxu0 %v3460
      %3482 = vmatpush.bf16.msra.mxu0 %v3441
      %3483 = vmatpush.bf16.msra.mxu0 %v3439
      %3484 = vmatpush.bf16.msra.mxu0 %v3437
      %3485 = vmatpush.bf16.msra.mxu0 %v3435
      %3486 = vmatmul.bf16.gmra.mxu0 %v3457
      %v3487 = vpop.f32.mrf.mxu0
      %v3488 = vadd.f32 %v3475, %v3487
      %v3489 = vpop.f32.mrf.mxu0
      %3490 = vdwg.mxu0
      %3491 = vmatpush.bf16.msra.mxu0 %v3434
      %3492 = vmatpush.bf16.msra.mxu0 %v3432
      %3493 = vmatpush.bf16.msra.mxu0 %v3430
      %3494 = vmatpush.bf16.msra.mxu0 %v3428
      %3495 = vmatpush.bf16.msra.mxu0 %v3426
      %3496 = vmatpush.bf16.msra.mxu0 %v3424
      %3497 = vmatpush.bf16.msra.mxu0 %v3422
      %3498 = vmatpush.bf16.msra.mxu0 %v3420
      %3499 = vmatmul.bf16.gmra.mxu0 %v3454
      %v3500 = vpop.f32.mrf.mxu0
      %v3501 = vadd.f32 %v3450, %v3500
      %v3502 = vpop.f32.mrf.mxu0
      %3503 = vdwg.mxu0
      %3504 = vmatpush.bf16.msra.mxu0 0
      %3505 = vmatpush.bf16.msra.mxu0 0
      %3506 = vmatpush.bf16.msra.mxu0 0
      %3507 = vmatpush.bf16.msra.mxu0 %v3463
      %3508 = vmatpush.bf16.msra.mxu0 %v3442
      %3509 = vmatpush.bf16.msra.mxu0 %v3440
      %3510 = vmatpush.bf16.msra.mxu0 %v3438
      %3511 = vmatpush.bf16.msra.mxu0 %v3436
      %3512 = vmatmul.bf16.gmra.mxu0 %v3457
      %v3513 = vpop.f32.mrf.mxu0
      %v3514 = vadd.f32 %v3501, %v3513
      %v3515 = vpop.f32.mrf.mxu0
      %3516 = vdwg.mxu0
      %v3517 = vmul.f32 %v3488, 0.2
      %v3518 = vmul.f32 %v3514, 0.2
      %v3519 = vadd.f32 %v3517, %v2485
      %v3520 = vadd.f32 %v3518, %v2486
      %v3521 = vmul.f32 %v3519, 0.2
      %v3522 = vmul.f32 %v3520, 0.2
      %3523 = vst [vmem:[#allocation1] ss:$2 sm:$0xff] %v361
      %v3524 = vld.sshfl [vmem:[#allocation1] sm:$0xff pattern:$0x75316420]
      %v3525 = vld.sshfl [vmem:[#allocation1 + $0x8] sm:$0xff pattern:$0x75316420]
      %v3528 = vadd.f32 %v3521, %v3524
      %v3529 = vadd.f32 %v3522, %v3525
      %v3532 = vrot.slane %v3529, 4
      %v3533 = vsel %vm543, %v3528, %v3532
      %3535 = vst [vmem:[%s278] sm:$0xff] %v3533
      %p3536 = scmp.lt.s32.totalorder %s18, 1
      %s3537 = scalar_select %p3536, %s18, 1
      %s3538 = smul.addr %s3537, 2
      %s3539 = smul.addr %s3538, 4
      %s3540 = scalar_lea.vmem %s7, %s3539
      // Predicated region
      $region49: #{res_in_res_dense_block.1} parent=47 // pred_check
        %p3541 = pneg %p188
      $region50: #{res_in_res_dense_block.1} parent=47 // pred_check_branch
        %3543 = sbr.rel (%p3541) target = $region52
      $region51: #{res_in_res_dense_block.1} parent=47 // pred_region
        _
      $region52: #{res_in_res_dense_block.1} parent=47 // pred_fallthru
        _
    $region48: #{res_in_res_dense_block.1} parent=5 // pred_fallthru
      _
    %p3544 = scmp.le.s32.totalorder 2, %s13
    // Predicated region
    $region53: #{res_in_res_dense_block.1} parent=5 // pred_check
      %p3545 = pneg %p3544
    $region54: #{res_in_res_dense_block.1} parent=5 // pred_check_branch
      %3547 = sbr.rel (%p3545) target = $region56
    $region55: #{res_in_res_dense_block.1} parent=5 // pred_region
      %s3548 = ssub.s32 %s13, 2
      // Predicated region
      $region57: #{res_in_res_dense_block.1} parent=55 // pred_check
        %p3549 = pneg %p194
      $region58: #{res_in_res_dense_block.1} parent=55 // pred_check_branch
        %3551 = sbr.rel (%p3549) target = $region60
      $region59: #{res_in_res_dense_block.1} parent=55 // pred_region
        %p3552 = scmp.lt.s32.totalorder %s19, 1
        %s3553 = scalar_select %p3552, %s19, 1
        %s3554 = smul.addr %s3553, 2
        %s3555 = smul.addr %s3554, 4
        %s3556 = scalar_lea.vmem %s7, %s3555
      $region60: #{res_in_res_dense_block.1} parent=55 // pred_fallthru
        _
    $region56: #{res_in_res_dense_block.1} parent=5 // pred_fallthru
      _
  $region6: #{res_in_res_dense_block.1} parent=0 // loop_footer
    %s17 = sadd.s32 1, %s13
  $region7: #{res_in_res_dense_block.1} parent=0 // loop_footer_branch
    %12 = sbr.rel target = $region3
  $region8: #{res_in_res_dense_block.1} parent=0 // loop_exit
    _

</llo_original>
